<compile_context>
chip_gen: v7x
topology: tpu7x:2x2x1
jax: 0.10.0
libtpu: 0.0.40
codegen_flags: <defaults>
</compile_context>

<pallas_src>
import jax
import jax.numpy as jnp
from jax.experimental import pallas as pl
from jax.experimental.pallas import tpu as pltpu

BN_EPS = 1e-3  # ultralytics Conv uses nn.BatchNorm2d(c2, eps=0.001)


def _basic_block_kernel(x_ref, w1_ref, b1_ref, w2_ref, ws_ref, b2_ref,
                        o_ref, bandx_ref, band1_ref):
    """Fused BasicBlock for one batch element (flattened-spatial NHWC layout).

    x_ref    : (H*W, Cin)         bf16  input image, rows = h*W + w, channels on lanes
    w1_ref   : (3, 3*Cin, Cout)   bf16  cv1 weights (BN1 scale folded), leading dim = kh
    b1_ref   : (1, Cout)          f32   BN1 bias
    w2_ref   : (3, 3*Cout, Cout)  bf16  cv2 weights (BN2 scale folded), leading dim = kh
    ws_ref   : (Cin, Cout)        bf16  shortcut 1x1 weights (BNs scale folded)
    b2_ref   : (1, Cout)          f32   BN2 bias + BNs bias (merged)
    o_ref    : (H*W, Cout)        bf16  output
    bandx_ref: ((H+2)*W, 3*Cin)   bf16  scratch: kw-folded, H-padded band of x
    band1_ref: ((H+2)*W, 3*Cout)  bf16  scratch: kw-folded, H-padded band of cv1 output
    """
    HW, _ = x_ref.shape
    W = (bandx_ref.shape[0] - HW) // 2        # bands carry H+2 padded rows of width W
    BF = jnp.bfloat16
    F32 = jnp.float32

    # Column-position edge masks, shape (HW, 1): a +/-1 pixel shift in w is a +/-1 row
    # shift of the flat (h*W + w) index, invalid at the w==0 / w==W-1 image borders.
    col = jax.lax.broadcasted_iota(jnp.int32, (HW, 1), 0) % W
    at_w0 = col == 0
    at_wend = col == W - 1

    def build_band(band_ref, center_f32, center_bf16, c):
        # Zero only the 2*W H-padding border rows; re-done every grid step so the
        # scratch stays correct if the parallel N axis is split across TensorCores.
        band_ref[0:W, :] = jnp.zeros((W, 3 * c), BF)
        band_ref[HW + W:HW + 2 * W, :] = jnp.zeros((W, 3 * c), BF)
        # kw slabs stored separately (no (HW, 3*c) concat temp).  pltpu.roll(shift=1)
        # reads row i-1 (pixel w-1); shift=HW-1 == roll(-1) reads row i+1 (pixel w+1);
        # wrapped rows land on masked border columns, so they are killed by the masks.
        left = jnp.where(at_w0, 0.0, pltpu.roll(center_f32, shift=1, axis=0))
        right = jnp.where(at_wend, 0.0, pltpu.roll(center_f32, shift=HW - 1, axis=0))
        band_ref[W:W + HW, 0:c] = left.astype(BF)
        band_ref[W:W + HW, c:2 * c] = center_bf16
        band_ref[W:W + HW, 2 * c:3 * c] = right.astype(BF)

    def conv3x3(band_ref, w_ref):
        # 3x3 conv as 3 MXU matmuls: kw folded into K, kh taps are aligned
        # row-offset slices of the band ref.
        acc = jnp.zeros((HW, w_ref.shape[-1]), F32)
        for kh in range(3):
            acc = acc + jnp.dot(band_ref[kh * W:kh * W + HW, :], w_ref[kh],
                                preferred_element_type=F32)
        return acc

    # ---- cv1: 3x3 conv (K = 3*Cin) + BN1 bias + SiLU -----------------------------
    x = x_ref[...]                                        # bf16, reused by the shortcut
    build_band(bandx_ref, x.astype(F32), x, x_ref.shape[1])
    y1 = conv3x3(bandx_ref, w1_ref) + b1_ref[...]
    y1 = y1 * jax.nn.sigmoid(y1)                          # SiLU in f32 (EUP)

    # ---- cv2: 3x3 conv over y1 (K = 3*Cout) --------------------------------------
    build_band(band1_ref, y1, y1.astype(BF), o_ref.shape[1])
    y2 = conv3x3(band1_ref, w2_ref)

    # ---- 1x1 projection shortcut, residual add, merged bias, ReLU ----------------
    sc = jnp.dot(x, ws_ref[...], preferred_element_type=F32)
    o_ref[...] = jnp.maximum(y2 + sc + b2_ref[...], 0.0).astype(o_ref.dtype)


def _prepare(p):
    """Fold BN scales into conv weights, pack kw taps into K, cast weights to bf16."""
    _, _, cin, cout = p["w1"].shape
    w1p = (p["w1"] * p["sb1"][0]).reshape(3, 3 * cin, cout).astype(jnp.bfloat16)
    w2p = (p["w2"] * p["sb2"][0]).reshape(3, 3 * cout, cout).astype(jnp.bfloat16)
    wsp = (p["ws"] * p["sbs"][0]).reshape(cin, cout).astype(jnp.bfloat16)
    b1 = p["sb1"][1].reshape(1, cout).astype(jnp.float32)
    b2s = (p["sb2"][1] + p["sbs"][1]).reshape(1, cout).astype(jnp.float32)
    return w1p, b1, w2p, wsp, b2s


@jax.jit
def basic_block_forward(x_nchw, p):
    """BasicBlock forward. x_nchw: (N, Cin, H, W) like PyTorch; returns NCHW f32."""
    N, Cin, H, W = x_nchw.shape
    Cout = p["w1"].shape[-1]
    assert W % 8 == 0, "W must be a multiple of 8 (sublane alignment of flat layout)"
    w1p, b1, w2p, wsp, b2s = _prepare(p)

    # Single bf16 input per image: (H*W, Cin).  Both the 3x3 band and the 1x1
    # shortcut are derived from it inside the kernel (no wrapper-built kw band,
    # no duplicate x input).
    x = jnp.transpose(x_nchw, (0, 2, 3, 1)).astype(jnp.bfloat16).reshape(N, H * W, Cin)

    out_flat = pl.pallas_call(
        _basic_block_kernel,
        out_shape=jax.ShapeDtypeStruct((N, H * W, Cout), jnp.bfloat16),
        grid_spec=pltpu.PrefetchScalarGridSpec(
            num_scalar_prefetch=0,
            grid=(N,),
            in_specs=[
                pl.BlockSpec((pl.Squeezed(), H * W, Cin), lambda n: (n, 0, 0)),
                pl.BlockSpec((3, 3 * Cin, Cout), lambda n: (0, 0, 0)),
                pl.BlockSpec((1, Cout), lambda n: (0, 0)),
                pl.BlockSpec((3, 3 * Cout, Cout), lambda n: (0, 0, 0)),
                pl.BlockSpec((Cin, Cout), lambda n: (0, 0)),
                pl.BlockSpec((1, Cout), lambda n: (0, 0)),
            ],
            out_specs=pl.BlockSpec((pl.Squeezed(), H * W, Cout),
                                   lambda n: (n, 0, 0)),
            scratch_shapes=[
                pltpu.VMEM(((H + 2) * W, 3 * Cin), jnp.bfloat16),
                pltpu.VMEM(((H + 2) * W, 3 * Cout), jnp.bfloat16),
            ],
        ),
        compiler_params=pltpu.CompilerParams(
            dimension_semantics=("parallel",),
            vmem_limit_bytes=48 * 1024 * 1024,
        ),
    )(x, w1p, b1, w2p, wsp, b2s)

    # Kernel writes bf16 (next block would consume bf16); upcast only for the
    # PyTorch-semantics f32 NCHW return of this standalone wrapper.
    out = out_flat.astype(jnp.float32).reshape(N, H, W, Cout)
    return jnp.transpose(out, (0, 3, 1, 2))


def _fold_bn(key, cout):
    """Deterministic BN params folded to (2, Cout) = [scale; bias]."""
    k1, k2, k3, k4 = jax.random.split(key, 4)
    gamma = 1.0 + 0.1 * jax.random.normal(k1, (cout,), jnp.float32)
    beta = 0.1 * jax.random.normal(k2, (cout,), jnp.float32)
    mean = 0.1 * jax.random.normal(k3, (cout,), jnp.float32)
    var = jax.nn.softplus(jax.random.normal(k4, (cout,), jnp.float32)) + 0.5
    scale = gamma / jnp.sqrt(var + BN_EPS)
    bias = beta - mean * scale
    return jnp.stack([scale, bias]).astype(jnp.float32)


def init_params(key, cin, cout):
    ks = jax.random.split(key, 6)
    return dict(
        w1=0.1 * jax.random.normal(ks[0], (3, 3, cin, cout), jnp.float32),
        sb1=_fold_bn(ks[3], cout),
        w2=0.1 * jax.random.normal(ks[1], (3, 3, cout, cout), jnp.float32),
        sb2=_fold_bn(ks[4], cout),
        ws=0.1 * jax.random.normal(ks[2], (1, 1, cin, cout), jnp.float32),
        sbs=_fold_bn(ks[5], cout),
    )


def _conv(v, w, pad):
    return jax.lax.conv_general_dilated(
        v, w, (1, 1), [(pad, pad), (pad, pad)],
        dimension_numbers=("NHWC", "HWIO", "NHWC"),
        preferred_element_type=jnp.float32)


def _reference(x_nchw, p):
    """Precision-mirrored reference: bf16 storage, f32 accumulation (lax.conv)."""
    x = jnp.transpose(x_nchw, (0, 2, 3, 1))
    s1, b1 = p["sb1"][0], p["sb1"][1]
    s2, b2 = p["sb2"][0], p["sb2"][1]
    ss, bs = p["sbs"][0], p["sbs"][1]
    x16 = x.astype(jnp.bfloat16)
    y = _conv(x16, (p["w1"] * s1).astype(jnp.bfloat16), 1) + b1
    y = y * jax.nn.sigmoid(y)
    y = _conv(y.astype(jnp.bfloat16), (p["w2"] * s2).astype(jnp.bfloat16), 1) + b2
    s = _conv(x16, (p["ws"] * ss).astype(jnp.bfloat16), 0) + bs
    return jnp.transpose(jnp.maximum(y + s, 0.0), (0, 3, 1, 2))


def _reference_f32(x_nchw, p):
    """Pure-f32 reference matching PyTorch eval-mode semantics (loose sanity check)."""
    x = jnp.transpose(x_nchw, (0, 2, 3, 1))

    def conv_bn(v, w, sb, pad, act):
        y = jax.lax.conv_general_dilated(
            v, w, (1, 1), [(pad, pad), (pad, pad)],
            dimension_numbers=("NHWC", "HWIO", "NHWC"))
        y = y * sb[0] + sb[1]
        return y * jax.nn.sigmoid(y) if act else y

    y = conv_bn(conv_bn(x, p["w1"], p["sb1"], 1, True), p["w2"], p["sb2"], 1, False)
    s = conv_bn(x, p["ws"], p["sbs"], 0, False)
    return jnp.transpose(jnp.maximum(y + s, 0.0), (0, 3, 1, 2))


if __name__ == "__main__":
    key = jax.random.PRNGKey(0)
    kx, kp = jax.random.split(key)

    N, Cin, H, W = 2, 4, 16, 16
    Cout = 8                         # stride=1, Cin != Cout -> projection shortcut
    x = jax.random.normal(kx, (N, Cin, H, W), jnp.float32)   # PyTorch NCHW
    params = init_params(kp, Cin, Cout)

    out = jax.block_until_ready(basic_block_forward(x, params))
    ref = jax.block_until_ready(_reference(x, params))
    ref_f32 = jax.block_until_ready(_reference_f32(x, params))

    assert out.shape == (N, Cout, H, W), out.shape
    err = float(jnp.max(jnp.abs(out - ref)))
    assert err < 5e-2, f"mismatch vs bf16-mirrored reference: {err}"
    err32 = float(jnp.max(jnp.abs(out - ref_f32)))
    assert err32 < 2e-1, f"mismatch vs f32 reference: {err32}"
    print("KERNEL_OK")
</pallas_src>

<mosaic_0001>
module attributes {stable_mosaic.version = 11 : i64} {
  func.func @_basic_block_kernel(%arg0: i32, %arg1: memref<1x256x4xbf16, #tpu.memory_space<vmem>>, %arg2: memref<3x12x8xbf16, #tpu.memory_space<vmem>>, %arg3: memref<1x8xf32, #tpu.memory_space<vmem>>, %arg4: memref<3x24x8xbf16, #tpu.memory_space<vmem>>, %arg5: memref<4x8xbf16, #tpu.memory_space<vmem>>, %arg6: memref<1x8xf32, #tpu.memory_space<vmem>>, %arg7: memref<1x256x8xbf16, #tpu.memory_space<vmem>>, %arg8: memref<288x12xbf16, #tpu.memory_space<vmem>>, %arg9: memref<288x24xbf16, #tpu.memory_space<vmem>>) attributes {dimension_semantics = [#tpu.dimension_semantics<parallel>], iteration_bounds = array<i64: 2>, scalar_prefetch = 0 : i64, scratch_operands = 2 : i64, tpu.core_type = #tpu.core_type<tc>, window_params = [{transform_indices = @transform_0, window_bounds = array<i64: 1, 256, 4>}, {pipeline_mode = #tpu.pipeline_mode<synchronous>, transform_indices = @transform_1, window_bounds = array<i64: 3, 12, 8>}, {pipeline_mode = #tpu.pipeline_mode<synchronous>, transform_indices = @transform_2, window_bounds = array<i64: 1, 8>}, {pipeline_mode = #tpu.pipeline_mode<synchronous>, transform_indices = @transform_3, window_bounds = array<i64: 3, 24, 8>}, {pipeline_mode = #tpu.pipeline_mode<synchronous>, transform_indices = @transform_4, window_bounds = array<i64: 4, 8>}, {pipeline_mode = #tpu.pipeline_mode<synchronous>, transform_indices = @transform_5, window_bounds = array<i64: 1, 8>}, {transform_indices = @transform_6, window_bounds = array<i64: 1, 256, 8>}]} {
    %0 = tpu.iota {dimensions = array<i32: 0>} : vector<256x1xi32>
    %c16_i32 = arith.constant 16 : i32
    %c0_i32 = arith.constant 0 : i32
    %1 = arith.cmpi eq, %c16_i32, %c0_i32 : i32
    %c1_i32 = arith.constant 1 : i32
    %2 = arith.select %1, %c1_i32, %c16_i32 : i32
    %3 = vector.broadcast %2 : i32 to vector<256x1xi32>
    %4 = arith.remsi %0, %3 : vector<256x1xi32>
    %c0_i32_0 = arith.constant 0 : i32
    %5 = vector.broadcast %c0_i32_0 : i32 to vector<256x1xi32>
    %6 = arith.cmpi ne, %4, %5 : vector<256x1xi32>
    %c0_i32_1 = arith.constant 0 : i32
    %7 = vector.broadcast %c0_i32_1 : i32 to vector<256x1xi32>
    %8 = arith.cmpi slt, %4, %7 : vector<256x1xi32>
    %c0_i32_2 = arith.constant 0 : i32
    %9 = arith.cmpi slt, %2, %c0_i32_2 : i32
    %10 = vector.broadcast %9 : i1 to vector<256x1xi1>
    %11 = vector.broadcast %10 : vector<256x1xi1> to vector<256x1xi1>
    %12 = arith.xori %8, %11 : vector<256x1xi1>
    %13 = arith.andi %12, %6 : vector<256x1xi1>
    %14 = vector.broadcast %2 : i32 to vector<256x1xi32>
    %15 = arith.addi %4, %14 : vector<256x1xi32>
    %16 = arith.select %13, %15, %4 : vector<256x1xi1>, vector<256x1xi32>
    %c0_i32_3 = arith.constant 0 : i32
    %17 = vector.broadcast %c0_i32_3 : i32 to vector<256x1xi32>
    %18 = arith.cmpi eq, %16, %17 : vector<256x1xi32>
    %c15_i32 = arith.constant 15 : i32
    %19 = vector.broadcast %c15_i32 : i32 to vector<256x1xi32>
    %20 = arith.cmpi eq, %16, %19 : vector<256x1xi32>
    %c0 = arith.constant 0 : index
    %c0_4 = arith.constant 0 : index
    %c0_5 = arith.constant 0 : index
    %21 = vector.load %arg1[%c0, %c0_4, %c0_5] : memref<1x256x4xbf16, #tpu.memory_space<vmem>>, vector<1x256x4xbf16>
    %22 = vector.shape_cast %21 : vector<1x256x4xbf16> to vector<256x4xbf16>
    %23 = arith.extf %22 : vector<256x4xbf16> to vector<256x4xf32>
    %cst = arith.constant 0.000000e+00 : bf16
    %24 = vector.broadcast %cst : bf16 to vector<16x12xbf16>
    %c0_6 = arith.constant 0 : index
    %c0_7 = arith.constant 0 : index
    %25 = vector.load %arg8[%c0_6, %c0_7] : memref<288x12xbf16, #tpu.memory_space<vmem>>, vector<16x12xbf16>
    tpu.vector_store %arg8[%c0_6, %c0_7], %24 {strides = array<i32>} : memref<288x12xbf16, #tpu.memory_space<vmem>>, vector<16x12xbf16>,
    %cst_8 = arith.constant 0.000000e+00 : bf16
    %26 = vector.broadcast %cst_8 : bf16 to vector<16x12xbf16>
    %c272 = arith.constant 272 : index
    %c0_9 = arith.constant 0 : index
    %27 = vector.load %arg8[%c272, %c0_9] : memref<288x12xbf16, #tpu.memory_space<vmem>>, vector<16x12xbf16>
    tpu.vector_store %arg8[%c272, %c0_9], %26 {strides = array<i32>} : memref<288x12xbf16, #tpu.memory_space<vmem>>, vector<16x12xbf16>,
    %c1_i32_10 = arith.constant 1 : i32
    %28 = tpu.dynamic_rotate %23 by %c1_i32_10 dim 0 : vector<256x4xf32>, i32 -> vector<256x4xf32>
    %cst_11 = arith.constant 0.000000e+00 : f32
    %29 = vector.shape_cast %18 : vector<256x1xi1> to vector<256x1xi1>
    %30 = vector.broadcast %29 : vector<256x1xi1> to vector<256x4xi1>
    %31 = vector.broadcast %cst_11 : f32 to vector<256x4xf32>
    %32 = arith.select %30, %31, %28 : vector<256x4xi1>, vector<256x4xf32>
    %c255_i32 = arith.constant 255 : i32
    %33 = tpu.dynamic_rotate %23 by %c255_i32 dim 0 : vector<256x4xf32>, i32 -> vector<256x4xf32>
    %cst_12 = arith.constant 0.000000e+00 : f32
    %34 = vector.shape_cast %20 : vector<256x1xi1> to vector<256x1xi1>
    %35 = vector.broadcast %34 : vector<256x1xi1> to vector<256x4xi1>
    %36 = vector.broadcast %cst_12 : f32 to vector<256x4xf32>
    %37 = arith.select %35, %36, %33 : vector<256x4xi1>, vector<256x4xf32>
    %38 = arith.truncf %32 : vector<256x4xf32> to vector<256x4xbf16>
    %c16 = arith.constant 16 : index
    %c0_13 = arith.constant 0 : index
    %39 = vector.load %arg8[%c16, %c0_13] : memref<288x12xbf16, #tpu.memory_space<vmem>>, vector<256x4xbf16>
    tpu.vector_store %arg8[%c16, %c0_13], %38 {strides = array<i32>} : memref<288x12xbf16, #tpu.memory_space<vmem>>, vector<256x4xbf16>,
    %c16_14 = arith.constant 16 : index
    %c4 = arith.constant 4 : index
    %40 = vector.load %arg8[%c16_14, %c4] : memref<288x12xbf16, #tpu.memory_space<vmem>>, vector<256x4xbf16>
    tpu.vector_store %arg8[%c16_14, %c4], %22 {strides = array<i32>} : memref<288x12xbf16, #tpu.memory_space<vmem>>, vector<256x4xbf16>,
    %41 = arith.truncf %37 : vector<256x4xf32> to vector<256x4xbf16>
    %c16_15 = arith.constant 16 : index
    %c8 = arith.constant 8 : index
    %42 = vector.load %arg8[%c16_15, %c8] : memref<288x12xbf16, #tpu.memory_space<vmem>>, vector<256x4xbf16>
    tpu.vector_store %arg8[%c16_15, %c8], %41 {strides = array<i32>} : memref<288x12xbf16, #tpu.memory_space<vmem>>, vector<256x4xbf16>,
    %cst_16 = arith.constant 0.000000e+00 : f32
    %43 = vector.broadcast %cst_16 : f32 to vector<256x8xf32>
    %c0_17 = arith.constant 0 : index
    %c0_18 = arith.constant 0 : index
    %44 = vector.load %arg8[%c0_17, %c0_18] : memref<288x12xbf16, #tpu.memory_space<vmem>>, vector<256x12xbf16>
    %c0_19 = arith.constant 0 : index
    %c0_20 = arith.constant 0 : index
    %c0_21 = arith.constant 0 : index
    %45 = vector.load %arg2[%c0_19, %c0_20, %c0_21] : memref<3x12x8xbf16, #tpu.memory_space<vmem>>, vector<1x12x8xbf16>
    %46 = vector.shape_cast %45 : vector<1x12x8xbf16> to vector<12x8xbf16>
    %cst_22 = arith.constant dense<0.000000e+00> : vector<256x8xf32>
    %47 = tpu.matmul %44, %46, %cst_22 {dimension_numbers = #tpu.dot_dimension_numbers<[1], [0], [0], [1], [0, 0, 1, 1], [], []>} : vector<256x12xbf16>, vector<12x8xbf16>, vector<256x8xf32> -> vector<256x8xf32>
    %48 = arith.addf %43, %47 : vector<256x8xf32>
    %c16_23 = arith.constant 16 : index
    %c0_24 = arith.constant 0 : index
    %49 = vector.load %arg8[%c16_23, %c0_24] : memref<288x12xbf16, #tpu.memory_space<vmem>>, vector<256x12xbf16>
    %c1 = arith.constant 1 : index
    %c0_25 = arith.constant 0 : index
    %c0_26 = arith.constant 0 : index
    %50 = vector.load %arg2[%c1, %c0_25, %c0_26] : memref<3x12x8xbf16, #tpu.memory_space<vmem>>, vector<1x12x8xbf16>
    %51 = vector.shape_cast %50 : vector<1x12x8xbf16> to vector<12x8xbf16>
    %cst_27 = arith.constant dense<0.000000e+00> : vector<256x8xf32>
    %52 = tpu.matmul %49, %51, %cst_27 {dimension_numbers = #tpu.dot_dimension_numbers<[1], [0], [0], [1], [0, 0, 1, 1], [], []>} : vector<256x12xbf16>, vector<12x8xbf16>, vector<256x8xf32> -> vector<256x8xf32>
    %53 = arith.addf %48, %52 : vector<256x8xf32>
    %c32 = arith.constant 32 : index
    %c0_28 = arith.constant 0 : index
    %54 = vector.load %arg8[%c32, %c0_28] : memref<288x12xbf16, #tpu.memory_space<vmem>>, vector<256x12xbf16>
    %c2 = arith.constant 2 : index
    %c0_29 = arith.constant 0 : index
    %c0_30 = arith.constant 0 : index
    %55 = vector.load %arg2[%c2, %c0_29, %c0_30] : memref<3x12x8xbf16, #tpu.memory_space<vmem>>, vector<1x12x8xbf16>
    %56 = vector.shape_cast %55 : vector<1x12x8xbf16> to vector<12x8xbf16>
    %cst_31 = arith.constant dense<0.000000e+00> : vector<256x8xf32>
    %57 = tpu.matmul %54, %56, %cst_31 {dimension_numbers = #tpu.dot_dimension_numbers<[1], [0], [0], [1], [0, 0, 1, 1], [], []>} : vector<256x12xbf16>, vector<12x8xbf16>, vector<256x8xf32> -> vector<256x8xf32>
    %58 = arith.addf %53, %57 : vector<256x8xf32>
    %c0_32 = arith.constant 0 : index
    %c0_33 = arith.constant 0 : index
    %59 = vector.load %arg3[%c0_32, %c0_33] : memref<1x8xf32, #tpu.memory_space<vmem>>, vector<1x8xf32>
    %60 = vector.broadcast %59 : vector<1x8xf32> to vector<256x8xf32>
    %61 = arith.addf %58, %60 : vector<256x8xf32>
    %62 = arith.negf %61 : vector<256x8xf32>
    %63 = math.exp %62 : vector<256x8xf32>
    %cst_34 = arith.constant 1.000000e+00 : f32
    %64 = vector.broadcast %cst_34 : f32 to vector<256x8xf32>
    %65 = arith.addf %64, %63 : vector<256x8xf32>
    %66 = arith.divf %64, %65 : vector<256x8xf32>
    %67 = arith.mulf %61, %66 : vector<256x8xf32>
    %68 = arith.truncf %67 : vector<256x8xf32> to vector<256x8xbf16>
    %cst_35 = arith.constant 0.000000e+00 : bf16
    %69 = vector.broadcast %cst_35 : bf16 to vector<16x24xbf16>
    %c0_36 = arith.constant 0 : index
    %c0_37 = arith.constant 0 : index
    %70 = vector.load %arg9[%c0_36, %c0_37] : memref<288x24xbf16, #tpu.memory_space<vmem>>, vector<16x24xbf16>
    tpu.vector_store %arg9[%c0_36, %c0_37], %69 {strides = array<i32>} : memref<288x24xbf16, #tpu.memory_space<vmem>>, vector<16x24xbf16>,
    %cst_38 = arith.constant 0.000000e+00 : bf16
    %71 = vector.broadcast %cst_38 : bf16 to vector<16x24xbf16>
    %c272_39 = arith.constant 272 : index
    %c0_40 = arith.constant 0 : index
    %72 = vector.load %arg9[%c272_39, %c0_40] : memref<288x24xbf16, #tpu.memory_space<vmem>>, vector<16x24xbf16>
    tpu.vector_store %arg9[%c272_39, %c0_40], %71 {strides = array<i32>} : memref<288x24xbf16, #tpu.memory_space<vmem>>, vector<16x24xbf16>,
    %c1_i32_41 = arith.constant 1 : i32
    %73 = tpu.dynamic_rotate %67 by %c1_i32_41 dim 0 : vector<256x8xf32>, i32 -> vector<256x8xf32>
    %cst_42 = arith.constant 0.000000e+00 : f32
    %74 = vector.shape_cast %18 : vector<256x1xi1> to vector<256x1xi1>
    %75 = vector.broadcast %74 : vector<256x1xi1> to vector<256x8xi1>
    %76 = vector.broadcast %cst_42 : f32 to vector<256x8xf32>
    %77 = arith.select %75, %76, %73 : vector<256x8xi1>, vector<256x8xf32>
    %c255_i32_43 = arith.constant 255 : i32
    %78 = tpu.dynamic_rotate %67 by %c255_i32_43 dim 0 : vector<256x8xf32>, i32 -> vector<256x8xf32>
    %cst_44 = arith.constant 0.000000e+00 : f32
    %79 = vector.shape_cast %20 : vector<256x1xi1> to vector<256x1xi1>
    %80 = vector.broadcast %79 : vector<256x1xi1> to vector<256x8xi1>
    %81 = vector.broadcast %cst_44 : f32 to vector<256x8xf32>
    %82 = arith.select %80, %81, %78 : vector<256x8xi1>, vector<256x8xf32>
    %83 = arith.truncf %77 : vector<256x8xf32> to vector<256x8xbf16>
    %c16_45 = arith.constant 16 : index
    %c0_46 = arith.constant 0 : index
    %84 = vector.load %arg9[%c16_45, %c0_46] : memref<288x24xbf16, #tpu.memory_space<vmem>>, vector<256x8xbf16>
    tpu.vector_store %arg9[%c16_45, %c0_46], %83 {strides = array<i32>} : memref<288x24xbf16, #tpu.memory_space<vmem>>, vector<256x8xbf16>,
    %c16_47 = arith.constant 16 : index
    %c8_48 = arith.constant 8 : index
    %85 = vector.load %arg9[%c16_47, %c8_48] : memref<288x24xbf16, #tpu.memory_space<vmem>>, vector<256x8xbf16>
    tpu.vector_store %arg9[%c16_47, %c8_48], %68 {strides = array<i32>} : memref<288x24xbf16, #tpu.memory_space<vmem>>, vector<256x8xbf16>,
    %86 = arith.truncf %82 : vector<256x8xf32> to vector<256x8xbf16>
    %c16_49 = arith.constant 16 : index
    %c16_50 = arith.constant 16 : index
    %87 = vector.load %arg9[%c16_49, %c16_50] : memref<288x24xbf16, #tpu.memory_space<vmem>>, vector<256x8xbf16>
    tpu.vector_store %arg9[%c16_49, %c16_50], %86 {strides = array<i32>} : memref<288x24xbf16, #tpu.memory_space<vmem>>, vector<256x8xbf16>,
    %cst_51 = arith.constant 0.000000e+00 : f32
    %88 = vector.broadcast %cst_51 : f32 to vector<256x8xf32>
    %c0_52 = arith.constant 0 : index
    %c0_53 = arith.constant 0 : index
    %89 = vector.load %arg9[%c0_52, %c0_53] : memref<288x24xbf16, #tpu.memory_space<vmem>>, vector<256x24xbf16>
    %c0_54 = arith.constant 0 : index
    %c0_55 = arith.constant 0 : index
    %c0_56 = arith.constant 0 : index
    %90 = vector.load %arg4[%c0_54, %c0_55, %c0_56] : memref<3x24x8xbf16, #tpu.memory_space<vmem>>, vector<1x24x8xbf16>
    %91 = vector.shape_cast %90 : vector<1x24x8xbf16> to vector<24x8xbf16>
    %cst_57 = arith.constant dense<0.000000e+00> : vector<256x8xf32>
    %92 = tpu.matmul %89, %91, %cst_57 {dimension_numbers = #tpu.dot_dimension_numbers<[1], [0], [0], [1], [0, 0, 1, 1], [], []>} : vector<256x24xbf16>, vector<24x8xbf16>, vector<256x8xf32> -> vector<256x8xf32>
    %93 = arith.addf %88, %92 : vector<256x8xf32>
    %c16_58 = arith.constant 16 : index
    %c0_59 = arith.constant 0 : index
    %94 = vector.load %arg9[%c16_58, %c0_59] : memref<288x24xbf16, #tpu.memory_space<vmem>>, vector<256x24xbf16>
    %c1_60 = arith.constant 1 : index
    %c0_61 = arith.constant 0 : index
    %c0_62 = arith.constant 0 : index
    %95 = vector.load %arg4[%c1_60, %c0_61, %c0_62] : memref<3x24x8xbf16, #tpu.memory_space<vmem>>, vector<1x24x8xbf16>
    %96 = vector.shape_cast %95 : vector<1x24x8xbf16> to vector<24x8xbf16>
    %cst_63 = arith.constant dense<0.000000e+00> : vector<256x8xf32>
    %97 = tpu.matmul %94, %96, %cst_63 {dimension_numbers = #tpu.dot_dimension_numbers<[1], [0], [0], [1], [0, 0, 1, 1], [], []>} : vector<256x24xbf16>, vector<24x8xbf16>, vector<256x8xf32> -> vector<256x8xf32>
    %98 = arith.addf %93, %97 : vector<256x8xf32>
    %c32_64 = arith.constant 32 : index
    %c0_65 = arith.constant 0 : index
    %99 = vector.load %arg9[%c32_64, %c0_65] : memref<288x24xbf16, #tpu.memory_space<vmem>>, vector<256x24xbf16>
    %c2_66 = arith.constant 2 : index
    %c0_67 = arith.constant 0 : index
    %c0_68 = arith.constant 0 : index
    %100 = vector.load %arg4[%c2_66, %c0_67, %c0_68] : memref<3x24x8xbf16, #tpu.memory_space<vmem>>, vector<1x24x8xbf16>
    %101 = vector.shape_cast %100 : vector<1x24x8xbf16> to vector<24x8xbf16>
    %cst_69 = arith.constant dense<0.000000e+00> : vector<256x8xf32>
    %102 = tpu.matmul %99, %101, %cst_69 {dimension_numbers = #tpu.dot_dimension_numbers<[1], [0], [0], [1], [0, 0, 1, 1], [], []>} : vector<256x24xbf16>, vector<24x8xbf16>, vector<256x8xf32> -> vector<256x8xf32>
    %103 = arith.addf %98, %102 : vector<256x8xf32>
    %c0_70 = arith.constant 0 : index
    %c0_71 = arith.constant 0 : index
    %104 = vector.load %arg5[%c0_70, %c0_71] : memref<4x8xbf16, #tpu.memory_space<vmem>>, vector<4x8xbf16>
    %cst_72 = arith.constant dense<0.000000e+00> : vector<256x8xf32>
    %105 = tpu.matmul %22, %104, %cst_72 {dimension_numbers = #tpu.dot_dimension_numbers<[1], [0], [0], [1], [0, 0, 1, 1], [], []>} : vector<256x4xbf16>, vector<4x8xbf16>, vector<256x8xf32> -> vector<256x8xf32>
    %106 = arith.addf %103, %105 : vector<256x8xf32>
    %c0_73 = arith.constant 0 : index
    %c0_74 = arith.constant 0 : index
    %107 = vector.load %arg6[%c0_73, %c0_74] : memref<1x8xf32, #tpu.memory_space<vmem>>, vector<1x8xf32>
    %108 = vector.broadcast %107 : vector<1x8xf32> to vector<256x8xf32>
    %109 = arith.addf %106, %108 : vector<256x8xf32>
    %cst_75 = arith.constant 0.000000e+00 : f32
    %110 = vector.broadcast %cst_75 : f32 to vector<256x8xf32>
    %111 = arith.maximumf %109, %110 : vector<256x8xf32>
    %112 = arith.truncf %111 : vector<256x8xf32> to vector<256x8xbf16>
    %c0_76 = arith.constant 0 : index
    %c0_77 = arith.constant 0 : index
    %c0_78 = arith.constant 0 : index
    %113 = vector.load %arg7[%c0_76, %c0_77, %c0_78] : memref<1x256x8xbf16, #tpu.memory_space<vmem>>, vector<1x256x8xbf16>
    %114 = vector.shape_cast %113 : vector<1x256x8xbf16> to vector<256x8xbf16>
    %115 = vector.shape_cast %112 : vector<256x8xbf16> to vector<1x256x8xbf16>
    tpu.vector_store %arg7[%c0_76, %c0_77, %c0_78], %115 {strides = array<i32>} : memref<1x256x8xbf16, #tpu.memory_space<vmem>>, vector<1x256x8xbf16>,
    return
  }
  func.func @transform_0(%arg0: i32) -> (i32, i32, i32) {
    %c0_i32 = arith.constant 0 : i32
    %c0_i32_0 = arith.constant 0 : i32
    %c0_i32_1 = arith.constant 0 : i32
    return %arg0, %c0_i32, %c0_i32_0 : i32, i32, i32
  }
  func.func @transform_1(%arg0: i32) -> (i32, i32, i32) {
    %c0_i32 = arith.constant 0 : i32
    %c0_i32_0 = arith.constant 0 : i32
    %c0_i32_1 = arith.constant 0 : i32
    %c0_i32_2 = arith.constant 0 : i32
    return %c0_i32, %c0_i32_0, %c0_i32_1 : i32, i32, i32
  }
  func.func @transform_2(%arg0: i32) -> (i32, i32) {
    %c0_i32 = arith.constant 0 : i32
    %c0_i32_0 = arith.constant 0 : i32
    %c0_i32_1 = arith.constant 0 : i32
    return %c0_i32, %c0_i32_0 : i32, i32
  }
  func.func @transform_3(%arg0: i32) -> (i32, i32, i32) {
    %c0_i32 = arith.constant 0 : i32
    %c0_i32_0 = arith.constant 0 : i32
    %c0_i32_1 = arith.constant 0 : i32
    %c0_i32_2 = arith.constant 0 : i32
    return %c0_i32, %c0_i32_0, %c0_i32_1 : i32, i32, i32
  }
  func.func @transform_4(%arg0: i32) -> (i32, i32) {
    %c0_i32 = arith.constant 0 : i32
    %c0_i32_0 = arith.constant 0 : i32
    %c0_i32_1 = arith.constant 0 : i32
    return %c0_i32, %c0_i32_0 : i32, i32
  }
  func.func @transform_5(%arg0: i32) -> (i32, i32) {
    %c0_i32 = arith.constant 0 : i32
    %c0_i32_0 = arith.constant 0 : i32
    %c0_i32_1 = arith.constant 0 : i32
    return %c0_i32, %c0_i32_0 : i32, i32
  }
  func.func @transform_6(%arg0: i32) -> (i32, i32, i32) {
    %c0_i32 = arith.constant 0 : i32
    %c0_i32_0 = arith.constant 0 : i32
    %c0_i32_1 = arith.constant 0 : i32
    return %arg0, %c0_i32, %c0_i32_0 : i32, i32, i32
  }
}

</mosaic_0001>

<llo_original>
// kernel: basic_block_forward.1
$region0: #{basic_block_forward.1}
  #allocation0 [shape = 'u32[]', space=smem, size = 0x4, offset = 0x4, fixed_abs, tag = 'smem constant byte address 0x4 - core index']
  #allocation1 [shape = 'u32[144,128]{1,0:T(1,128)}', space=vmem, size = 0x12000, scoped, tag = 'internal scratch']
  #allocation2 [shape = 'bf16[288,12]{1,0:T(16,128)(2,1)}', space=vmem, size = 0x12000, scoped, tag = 'scratch operand']
  #allocation3 [shape = 'bf16[288,24]{1,0:T(16,128)(2,1)}', space=vmem, size = 0x12000, scoped, tag = 'scratch operand']
  %s0 = inlined_call_operand.vmem [shape: bf16[2,256,4], index: 0, kind: input, shape index: {}]
  %s1 = inlined_call_operand.vmem [shape: bf16[3,12,8], index: 1, kind: input, shape index: {}]
  %s2 = inlined_call_operand.vmem [shape: f32[1,8], index: 2, kind: input, shape index: {}]
  %s3 = inlined_call_operand.vmem [shape: bf16[3,24,8], index: 3, kind: input, shape index: {}]
  %s4 = inlined_call_operand.vmem [shape: bf16[4,8], index: 4, kind: input, shape index: {}]
  %s5 = inlined_call_operand.vmem [shape: f32[1,8], index: 5, kind: input, shape index: {}]
  %s6 = inlined_call_operand.vmem [shape: bf16[2,256,8], index: 6, kind: output, shape index: {}]
  %s7 = sld [smem:[#allocation0]]
  $region57: #{basic_block_forward.1} parent=0
    _
  %s9 = ssub.s32 1, %s7
  %s10 = scalar_select 0, %s9, %s7
  loop: start=0, step=1, limit=4
  $region2: #{basic_block_forward.1} parent=0 // loop_pre_header
    _
  $region3: #{basic_block_forward.1} parent=0 // loop_header
    %s12 = sphi 0, %s16
    %p13 = scmp.ge.s32.totalorder %s12, 4
    %s22 = sphi 0, %s24
    %s25 = sphi 0, %s22
    %s26 = sphi 0, %s25
    %s42 = sphi 0, %s26
    %s46 = sphi 0, %s46
    %s48 = sphi 0, %s46
    %s49 = sphi 0, %s48
    %s63 = sphi 0, %s49
    %s67 = sphi 0, %s67
    %s69 = sphi 0, %s67
    %s70 = sphi 0, %s69
    %s84 = sphi 0, %s70
    %s88 = sphi 0, %s88
    %s90 = sphi 0, %s88
    %s91 = sphi 0, %s90
    %s105 = sphi 0, %s91
    %s109 = sphi 0, %s109
    %s111 = sphi 0, %s109
    %s112 = sphi 0, %s111
    %s126 = sphi 0, %s112
    %s130 = sphi 0, %s130
    %s132 = sphi 0, %s130
    %s133 = sphi 0, %s132
    %s147 = sphi 0, %s133
    %s153 = sphi 0, %s155
    %s156 = sphi 0, %s153
    %s157 = sphi 0, %s156
    %s173 = sphi 0, %s157
  $region4: #{basic_block_forward.1} parent=0 // loop_header_branch
    %15 = sbr.rel (%p13) target = $region8
  $region5: #{basic_block_forward.1} parent=0 // loop_body
    %s17 = ssub.s32 %s12, 1
    %s18 = ssub.s32 %s12, 2
    %s19 = sadd.s32 %s12, 1
    %s20 = ssub.s32 %s12, %s19
    %p21 = scmp.eq.s32.totalorder %s20, 0
    %s23 = sadd.s32 %s22, 1
    %s24 = scalar_select %p21, %s22, %s23
    %p27 = pneg %p21
    %p28 = scmp.eq.s32.totalorder %s12, 1
    %p29 = por %p27, %p28
    %p30 = scmp.ne.s32.totalorder %s22, %s25
    %p31 = scmp.eq.s32.totalorder %s12, 0
    %p32 = por %p30, %p31
    %p33 = scmp.ne.s32.totalorder %s22, %s25
    %p34 = scmp.eq.s32.totalorder %s17, 1
    %p35 = por %p33, %p34
    %p36 = scmp.ne.s32.totalorder %s25, %s26
    %p37 = scmp.eq.s32.totalorder %s17, 0
    %p38 = por %p36, %p37
    %p39 = scmp.ne.s32.totalorder %s25, %s26
    %p40 = scmp.eq.s32.totalorder %s18, 1
    %p41 = por %p39, %p40
    %p43 = scmp.ne.s32.totalorder %s26, %s42
    %p44 = scmp.eq.s32.totalorder %s18, 0
    %p45 = por %p43, %p44
    %s47 = sadd.s32 %s46, 1
    %p50 = scmp.eq.s32.totalorder %s12, 1
    %p51 = scmp.ne.s32.totalorder %s46, %s48
    %p52 = scmp.eq.s32.totalorder %s12, 0
    %p53 = por %p51, %p52
    %p54 = scmp.ne.s32.totalorder %s46, %s48
    %p55 = scmp.eq.s32.totalorder %s17, 1
    %p56 = por %p54, %p55
    %p57 = scmp.ne.s32.totalorder %s48, %s49
    %p58 = scmp.eq.s32.totalorder %s17, 0
    %p59 = por %p57, %p58
    %p60 = scmp.ne.s32.totalorder %s48, %s49
    %p61 = scmp.eq.s32.totalorder %s18, 1
    %p62 = por %p60, %p61
    %p64 = scmp.ne.s32.totalorder %s49, %s63
    %p65 = scmp.eq.s32.totalorder %s18, 0
    %p66 = por %p64, %p65
    %s68 = sadd.s32 %s67, 1
    %p71 = scmp.eq.s32.totalorder %s12, 1
    %p72 = scmp.ne.s32.totalorder %s67, %s69
    %p73 = scmp.eq.s32.totalorder %s12, 0
    %p74 = por %p72, %p73
    %p75 = scmp.ne.s32.totalorder %s67, %s69
    %p76 = scmp.eq.s32.totalorder %s17, 1
    %p77 = por %p75, %p76
    %p78 = scmp.ne.s32.totalorder %s69, %s70
    %p79 = scmp.eq.s32.totalorder %s17, 0
    %p80 = por %p78, %p79
    %p81 = scmp.ne.s32.totalorder %s69, %s70
    %p82 = scmp.eq.s32.totalorder %s18, 1
    %p83 = por %p81, %p82
    %p85 = scmp.ne.s32.totalorder %s70, %s84
    %p86 = scmp.eq.s32.totalorder %s18, 0
    %p87 = por %p85, %p86
    %s89 = sadd.s32 %s88, 1
    %p92 = scmp.eq.s32.totalorder %s12, 1
    %p93 = scmp.ne.s32.totalorder %s88, %s90
    %p94 = scmp.eq.s32.totalorder %s12, 0
    %p95 = por %p93, %p94
    %p96 = scmp.ne.s32.totalorder %s88, %s90
    %p97 = scmp.eq.s32.totalorder %s17, 1
    %p98 = por %p96, %p97
    %p99 = scmp.ne.s32.totalorder %s90, %s91
    %p100 = scmp.eq.s32.totalorder %s17, 0
    %p101 = por %p99, %p100
    %p102 = scmp.ne.s32.totalorder %s90, %s91
    %p103 = scmp.eq.s32.totalorder %s18, 1
    %p104 = por %p102, %p103
    %p106 = scmp.ne.s32.totalorder %s91, %s105
    %p107 = scmp.eq.s32.totalorder %s18, 0
    %p108 = por %p106, %p107
    %s110 = sadd.s32 %s109, 1
    %p113 = scmp.eq.s32.totalorder %s12, 1
    %p114 = scmp.ne.s32.totalorder %s109, %s111
    %p115 = scmp.eq.s32.totalorder %s12, 0
    %p116 = por %p114, %p115
    %p117 = scmp.ne.s32.totalorder %s109, %s111
    %p118 = scmp.eq.s32.totalorder %s17, 1
    %p119 = por %p117, %p118
    %p120 = scmp.ne.s32.totalorder %s111, %s112
    %p121 = scmp.eq.s32.totalorder %s17, 0
    %p122 = por %p120, %p121
    %p123 = scmp.ne.s32.totalorder %s111, %s112
    %p124 = scmp.eq.s32.totalorder %s18, 1
    %p125 = por %p123, %p124
    %p127 = scmp.ne.s32.totalorder %s112, %s126
    %p128 = scmp.eq.s32.totalorder %s18, 0
    %p129 = por %p127, %p128
    %s131 = sadd.s32 %s130, 1
    %p134 = scmp.eq.s32.totalorder %s12, 1
    %p135 = scmp.ne.s32.totalorder %s130, %s132
    %p136 = scmp.eq.s32.totalorder %s12, 0
    %p137 = por %p135, %p136
    %p138 = scmp.ne.s32.totalorder %s130, %s132
    %p139 = scmp.eq.s32.totalorder %s17, 1
    %p140 = por %p138, %p139
    %p141 = scmp.ne.s32.totalorder %s132, %s133
    %p142 = scmp.eq.s32.totalorder %s17, 0
    %p143 = por %p141, %p142
    %p144 = scmp.ne.s32.totalorder %s132, %s133
    %p145 = scmp.eq.s32.totalorder %s18, 1
    %p146 = por %p144, %p145
    %p148 = scmp.ne.s32.totalorder %s133, %s147
    %p149 = scmp.eq.s32.totalorder %s18, 0
    %p150 = por %p148, %p149
    %s151 = ssub.s32 %s12, %s19
    %p152 = scmp.eq.s32.totalorder %s151, 0
    %s154 = sadd.s32 %s153, 1
    %s155 = scalar_select %p152, %s153, %s154
    %p158 = pneg %p152
    %p159 = scmp.eq.s32.totalorder %s12, 1
    %p160 = por %p158, %p159
    %p161 = scmp.ne.s32.totalorder %s153, %s156
    %p162 = scmp.eq.s32.totalorder %s12, 0
    %p163 = por %p161, %p162
    %p164 = scmp.ne.s32.totalorder %s153, %s156
    %p165 = scmp.eq.s32.totalorder %s17, 1
    %p166 = por %p164, %p165
    %p167 = scmp.ne.s32.totalorder %s156, %s157
    %p168 = scmp.eq.s32.totalorder %s17, 0
    %p169 = por %p167, %p168
    %p170 = scmp.ne.s32.totalorder %s156, %s157
    %p171 = scmp.eq.s32.totalorder %s18, 1
    %p172 = por %p170, %p171
    %p174 = scmp.ne.s32.totalorder %s157, %s173
    %p175 = scmp.eq.s32.totalorder %s18, 0
    %p176 = por %p174, %p175
    %p177 = scmp.le.s32.totalorder 1, %s12
    %p178 = scmp.lt.s32.totalorder %s12, 3
    %p179 = pnand %p177, %p178
    %p180 = pneg %p179
    // Predicated region
    $region9: #{basic_block_forward.1} parent=5 // pred_check
      _
    $region10: #{basic_block_forward.1} parent=5 // pred_check_branch
      %182 = sbr.rel (%p179) target = $region12
    $region11: #{basic_block_forward.1} parent=5 // pred_region
      %s183 = ssub.s32 %s12, 1
      // Predicated region
      $region13: #{basic_block_forward.1} parent=11 // pred_check
        %p184 = pneg %p59
      $region14: #{basic_block_forward.1} parent=11 // pred_check_branch
        %186 = sbr.rel (%p184) target = $region16
      $region15: #{basic_block_forward.1} parent=11 // pred_region
        _
      $region16: #{basic_block_forward.1} parent=11 // pred_fallthru
        _
      // Predicated region
      $region17: #{basic_block_forward.1} parent=11 // pred_check
        %p187 = pneg %p80
      $region18: #{basic_block_forward.1} parent=11 // pred_check_branch
        %189 = sbr.rel (%p187) target = $region20
      $region19: #{basic_block_forward.1} parent=11 // pred_region
        _
      $region20: #{basic_block_forward.1} parent=11 // pred_fallthru
        _
      // Predicated region
      $region21: #{basic_block_forward.1} parent=11 // pred_check
        %p190 = pneg %p101
      $region22: #{basic_block_forward.1} parent=11 // pred_check_branch
        %192 = sbr.rel (%p190) target = $region24
      $region23: #{basic_block_forward.1} parent=11 // pred_region
        _
      $region24: #{basic_block_forward.1} parent=11 // pred_fallthru
        _
      // Predicated region
      $region25: #{basic_block_forward.1} parent=11 // pred_check
        %p193 = pneg %p122
      $region26: #{basic_block_forward.1} parent=11 // pred_check_branch
        %195 = sbr.rel (%p193) target = $region28
      $region27: #{basic_block_forward.1} parent=11 // pred_region
        _
      $region28: #{basic_block_forward.1} parent=11 // pred_fallthru
        _
      // Predicated region
      $region29: #{basic_block_forward.1} parent=11 // pred_check
        %p196 = pneg %p143
      $region30: #{basic_block_forward.1} parent=11 // pred_check_branch
        %198 = sbr.rel (%p196) target = $region32
      $region31: #{basic_block_forward.1} parent=11 // pred_region
        _
      $region32: #{basic_block_forward.1} parent=11 // pred_fallthru
        _
    $region12: #{basic_block_forward.1} parent=5 // pred_fallthru
      _
    %p199 = scmp.lt.s32.totalorder %s12, 2
    // Predicated region
    $region33: #{basic_block_forward.1} parent=5 // pred_check
      %p200 = pneg %p199
    $region34: #{basic_block_forward.1} parent=5 // pred_check_branch
      %202 = sbr.rel (%p200) target = $region36
    $region35: #{basic_block_forward.1} parent=5 // pred_region
      // Predicated region
      $region37: #{basic_block_forward.1} parent=35 // pred_check
        %p203 = pneg %p32
      $region38: #{basic_block_forward.1} parent=35 // pred_check_branch
        %205 = sbr.rel (%p203) target = $region40
      $region39: #{basic_block_forward.1} parent=35 // pred_region
        %p206 = scmp.lt.s32.totalorder %s12, 1
        %s207 = scalar_select %p206, %s12, 1
        %s208 = smul.addr %s207, 32
        %s209 = smul.addr %s208, 4
        %s210 = scalar_lea.vmem %s0, %s209
      $region40: #{basic_block_forward.1} parent=35 // pred_fallthru
        _
    $region36: #{basic_block_forward.1} parent=5 // pred_fallthru
      _
    %p211 = scmp.le.s32.totalorder 1, %s12
    %p212 = scmp.lt.s32.totalorder %s12, 3
    %p213 = pnand %p211, %p212
    %p214 = pneg %p213
    // Predicated region
    $region41: #{basic_block_forward.1} parent=5 // pred_check
      _
    $region42: #{basic_block_forward.1} parent=5 // pred_check_branch
      %216 = sbr.rel (%p213) target = $region44
    $region43: #{basic_block_forward.1} parent=5 // pred_region
      %s217 = ssub.s32 %s12, 1
      %p218 = scmp.lt.s32.totalorder %s17, 1
      %s219 = scalar_select %p218, %s17, 1
      %s220 = smul.addr %s219, 32
      %s221 = smul.addr %s220, 4
      %s222 = scalar_lea.vmem %s0, %s221
      %p223 = pneg %p38
      %p224 = pneg %p35
      %p225 = pneg %p59
      %p226 = pneg %p56
      %p227 = pneg %p80
      %p228 = pneg %p77
      %p229 = pneg %p101
      %p230 = pneg %p98
      %p231 = pneg %p122
      %p232 = pneg %p119
      %p233 = pneg %p143
      %p234 = pneg %p140
      %p235 = pneg %p169
      %p236 = pneg %p166
      %p237 = scmp.lt.s32.totalorder %s17, 1
      %s238 = scalar_select %p237, %s17, 1
      %s239 = smul.addr %s238, 32
      %s240 = smul.addr %s239, 4
      %s241 = scalar_lea.vmem %s6, %s240
      %p242 = scmp.lt.s32.totalorder %s17, 1
      %s243 = scalar_select %p242, %s17, 1
      %s244 = smul.addr %s243, 32
      %s245 = smul.addr %s244, 4
      %s246 = scalar_lea.vmem %s0, %s245
      %p247 = scmp.lt.s32.totalorder %s17, 1
      %s248 = scalar_select %p247, %s17, 1
      %s249 = smul.addr %s248, 32
      %s250 = smul.addr %s249, 4
      %s251 = scalar_lea.vmem %s6, %s250
      %v253 = vlaneseq
      %v254 = vshrl.u32 %v253, 7
      %v255 = vadd.s32 %v254, 8
      %v256 = vadd.s32 %v254, 16
      %v257 = vadd.s32 %v254, 24
      %v258 = vadd.s32 %v254, 32
      %v259 = vadd.s32 %v254, 40
      %v260 = vadd.s32 %v254, 48
      %v261 = vadd.s32 %v254, 56
      %v262 = vadd.s32 %v254, 64
      %v263 = vadd.s32 %v254, 72
      %v264 = vadd.s32 %v254, 80
      %v265 = vadd.s32 %v254, 88
      %v266 = vadd.s32 %v254, 96
      %v267 = vadd.s32 %v254, 104
      %v268 = vadd.s32 %v254, 112
      %v269 = vadd.s32 %v254, 120
      %v270 = vadd.s32 %v254, 128
      %v271 = vadd.s32 %v254, 136
      %v272 = vadd.s32 %v254, 144
      %v273 = vadd.s32 %v254, 152
      %v274 = vadd.s32 %v254, 160
      %v275 = vadd.s32 %v254, 168
      %v276 = vadd.s32 %v254, 176
      %v277 = vadd.s32 %v254, 184
      %v278 = vadd.s32 %v254, 192
      %v279 = vadd.s32 %v254, 200
      %v280 = vadd.s32 %v254, 208
      %v281 = vadd.s32 %v254, 216
      %v282 = vadd.s32 %v254, 224
      %v283 = vadd.s32 %v254, 232
      %v284 = vadd.s32 %v254, 240
      %v285 = vadd.s32 %v254, 248
      %vm286 = vcmp.lt.s32.totalorder %v254, 0
      %v287 = vsub.s32 0, %v254
      %v288 = vsel %vm286, %v287, %v254
      %v289 = vshrl.u32 %v288, 4
      %v290 = vand.u32 %v288, 15
      %v291 = vsub.s32 0, %v290
      %v292 = vsel %vm286, %v291, %v290
      %vm293 = vcmp.lt.s32.totalorder %v255, 0
      %v294 = vsub.s32 0, %v255
      %v295 = vsel %vm293, %v294, %v255
      %v296 = vshrl.u32 %v295, 4
      %v297 = vand.u32 %v295, 15
      %v298 = vsub.s32 0, %v297
      %v299 = vsel %vm293, %v298, %v297
      %vm300 = vcmp.lt.s32.totalorder %v256, 0
      %v301 = vsub.s32 0, %v256
      %v302 = vsel %vm300, %v301, %v256
      %v303 = vshrl.u32 %v302, 4
      %v304 = vand.u32 %v302, 15
      %v305 = vsub.s32 0, %v304
      %v306 = vsel %vm300, %v305, %v304
      %vm307 = vcmp.lt.s32.totalorder %v257, 0
      %v308 = vsub.s32 0, %v257
      %v309 = vsel %vm307, %v308, %v257
      %v310 = vshrl.u32 %v309, 4
      %v311 = vand.u32 %v309, 15
      %v312 = vsub.s32 0, %v311
      %v313 = vsel %vm307, %v312, %v311
      %vm314 = vcmp.lt.s32.totalorder %v258, 0
      %v315 = vsub.s32 0, %v258
      %v316 = vsel %vm314, %v315, %v258
      %v317 = vshrl.u32 %v316, 4
      %v318 = vand.u32 %v316, 15
      %v319 = vsub.s32 0, %v318
      %v320 = vsel %vm314, %v319, %v318
      %vm321 = vcmp.lt.s32.totalorder %v259, 0
      %v322 = vsub.s32 0, %v259
      %v323 = vsel %vm321, %v322, %v259
      %v324 = vshrl.u32 %v323, 4
      %v325 = vand.u32 %v323, 15
      %v326 = vsub.s32 0, %v325
      %v327 = vsel %vm321, %v326, %v325
      %vm328 = vcmp.lt.s32.totalorder %v260, 0
      %v329 = vsub.s32 0, %v260
      %v330 = vsel %vm328, %v329, %v260
      %v331 = vshrl.u32 %v330, 4
      %v332 = vand.u32 %v330, 15
      %v333 = vsub.s32 0, %v332
      %v334 = vsel %vm328, %v333, %v332
      %vm335 = vcmp.lt.s32.totalorder %v261, 0
      %v336 = vsub.s32 0, %v261
      %v337 = vsel %vm335, %v336, %v261
      %v338 = vshrl.u32 %v337, 4
      %v339 = vand.u32 %v337, 15
      %v340 = vsub.s32 0, %v339
      %v341 = vsel %vm335, %v340, %v339
      %vm342 = vcmp.lt.s32.totalorder %v262, 0
      %v343 = vsub.s32 0, %v262
      %v344 = vsel %vm342, %v343, %v262
      %v345 = vshrl.u32 %v344, 4
      %v346 = vand.u32 %v344, 15
      %v347 = vsub.s32 0, %v346
      %v348 = vsel %vm342, %v347, %v346
      %vm349 = vcmp.lt.s32.totalorder %v263, 0
      %v350 = vsub.s32 0, %v263
      %v351 = vsel %vm349, %v350, %v263
      %v352 = vshrl.u32 %v351, 4
      %v353 = vand.u32 %v351, 15
      %v354 = vsub.s32 0, %v353
      %v355 = vsel %vm349, %v354, %v353
      %vm356 = vcmp.lt.s32.totalorder %v264, 0
      %v357 = vsub.s32 0, %v264
      %v358 = vsel %vm356, %v357, %v264
      %v359 = vshrl.u32 %v358, 4
      %v360 = vand.u32 %v358, 15
      %v361 = vsub.s32 0, %v360
      %v362 = vsel %vm356, %v361, %v360
      %vm363 = vcmp.lt.s32.totalorder %v265, 0
      %v364 = vsub.s32 0, %v265
      %v365 = vsel %vm363, %v364, %v265
      %v366 = vshrl.u32 %v365, 4
      %v367 = vand.u32 %v365, 15
      %v368 = vsub.s32 0, %v367
      %v369 = vsel %vm363, %v368, %v367
      %vm370 = vcmp.lt.s32.totalorder %v266, 0
      %v371 = vsub.s32 0, %v266
      %v372 = vsel %vm370, %v371, %v266
      %v373 = vshrl.u32 %v372, 4
      %v374 = vand.u32 %v372, 15
      %v375 = vsub.s32 0, %v374
      %v376 = vsel %vm370, %v375, %v374
      %vm377 = vcmp.lt.s32.totalorder %v267, 0
      %v378 = vsub.s32 0, %v267
      %v379 = vsel %vm377, %v378, %v267
      %v380 = vshrl.u32 %v379, 4
      %v381 = vand.u32 %v379, 15
      %v382 = vsub.s32 0, %v381
      %v383 = vsel %vm377, %v382, %v381
      %vm384 = vcmp.lt.s32.totalorder %v268, 0
      %v385 = vsub.s32 0, %v268
      %v386 = vsel %vm384, %v385, %v268
      %v387 = vshrl.u32 %v386, 4
      %v388 = vand.u32 %v386, 15
      %v389 = vsub.s32 0, %v388
      %v390 = vsel %vm384, %v389, %v388
      %vm391 = vcmp.lt.s32.totalorder %v269, 0
      %v392 = vsub.s32 0, %v269
      %v393 = vsel %vm391, %v392, %v269
      %v394 = vshrl.u32 %v393, 4
      %v395 = vand.u32 %v393, 15
      %v396 = vsub.s32 0, %v395
      %v397 = vsel %vm391, %v396, %v395
      %vm398 = vcmp.lt.s32.totalorder %v270, 0
      %v399 = vsub.s32 0, %v270
      %v400 = vsel %vm398, %v399, %v270
      %v401 = vshrl.u32 %v400, 4
      %v402 = vand.u32 %v400, 15
      %v403 = vsub.s32 0, %v402
      %v404 = vsel %vm398, %v403, %v402
      %vm405 = vcmp.lt.s32.totalorder %v271, 0
      %v406 = vsub.s32 0, %v271
      %v407 = vsel %vm405, %v406, %v271
      %v408 = vshrl.u32 %v407, 4
      %v409 = vand.u32 %v407, 15
      %v410 = vsub.s32 0, %v409
      %v411 = vsel %vm405, %v410, %v409
      %vm412 = vcmp.lt.s32.totalorder %v272, 0
      %v413 = vsub.s32 0, %v272
      %v414 = vsel %vm412, %v413, %v272
      %v415 = vshrl.u32 %v414, 4
      %v416 = vand.u32 %v414, 15
      %v417 = vsub.s32 0, %v416
      %v418 = vsel %vm412, %v417, %v416
      %vm419 = vcmp.lt.s32.totalorder %v273, 0
      %v420 = vsub.s32 0, %v273
      %v421 = vsel %vm419, %v420, %v273
      %v422 = vshrl.u32 %v421, 4
      %v423 = vand.u32 %v421, 15
      %v424 = vsub.s32 0, %v423
      %v425 = vsel %vm419, %v424, %v423
      %vm426 = vcmp.lt.s32.totalorder %v274, 0
      %v427 = vsub.s32 0, %v274
      %v428 = vsel %vm426, %v427, %v274
      %v429 = vshrl.u32 %v428, 4
      %v430 = vand.u32 %v428, 15
      %v431 = vsub.s32 0, %v430
      %v432 = vsel %vm426, %v431, %v430
      %vm433 = vcmp.lt.s32.totalorder %v275, 0
      %v434 = vsub.s32 0, %v275
      %v435 = vsel %vm433, %v434, %v275
      %v436 = vshrl.u32 %v435, 4
      %v437 = vand.u32 %v435, 15
      %v438 = vsub.s32 0, %v437
      %v439 = vsel %vm433, %v438, %v437
      %vm440 = vcmp.lt.s32.totalorder %v276, 0
      %v441 = vsub.s32 0, %v276
      %v442 = vsel %vm440, %v441, %v276
      %v443 = vshrl.u32 %v442, 4
      %v444 = vand.u32 %v442, 15
      %v445 = vsub.s32 0, %v444
      %v446 = vsel %vm440, %v445, %v444
      %vm447 = vcmp.lt.s32.totalorder %v277, 0
      %v448 = vsub.s32 0, %v277
      %v449 = vsel %vm447, %v448, %v277
      %v450 = vshrl.u32 %v449, 4
      %v451 = vand.u32 %v449, 15
      %v452 = vsub.s32 0, %v451
      %v453 = vsel %vm447, %v452, %v451
      %vm454 = vcmp.lt.s32.totalorder %v278, 0
      %v455 = vsub.s32 0, %v278
      %v456 = vsel %vm454, %v455, %v278
      %v457 = vshrl.u32 %v456, 4
      %v458 = vand.u32 %v456, 15
      %v459 = vsub.s32 0, %v458
      %v460 = vsel %vm454, %v459, %v458
      %vm461 = vcmp.lt.s32.totalorder %v279, 0
      %v462 = vsub.s32 0, %v279
      %v463 = vsel %vm461, %v462, %v279
      %v464 = vshrl.u32 %v463, 4
      %v465 = vand.u32 %v463, 15
      %v466 = vsub.s32 0, %v465
      %v467 = vsel %vm461, %v466, %v465
      %vm468 = vcmp.lt.s32.totalorder %v280, 0
      %v469 = vsub.s32 0, %v280
      %v470 = vsel %vm468, %v469, %v280
      %v471 = vshrl.u32 %v470, 4
      %v472 = vand.u32 %v470, 15
      %v473 = vsub.s32 0, %v472
      %v474 = vsel %vm468, %v473, %v472
      %vm475 = vcmp.lt.s32.totalorder %v281, 0
      %v476 = vsub.s32 0, %v281
      %v477 = vsel %vm475, %v476, %v281
      %v478 = vshrl.u32 %v477, 4
      %v479 = vand.u32 %v477, 15
      %v480 = vsub.s32 0, %v479
      %v481 = vsel %vm475, %v480, %v479
      %vm482 = vcmp.lt.s32.totalorder %v282, 0
      %v483 = vsub.s32 0, %v282
      %v484 = vsel %vm482, %v483, %v282
      %v485 = vshrl.u32 %v484, 4
      %v486 = vand.u32 %v484, 15
      %v487 = vsub.s32 0, %v486
      %v488 = vsel %vm482, %v487, %v486
      %vm489 = vcmp.lt.s32.totalorder %v283, 0
      %v490 = vsub.s32 0, %v283
      %v491 = vsel %vm489, %v490, %v283
      %v492 = vshrl.u32 %v491, 4
      %v493 = vand.u32 %v491, 15
      %v494 = vsub.s32 0, %v493
      %v495 = vsel %vm489, %v494, %v493
      %vm496 = vcmp.lt.s32.totalorder %v284, 0
      %v497 = vsub.s32 0, %v284
      %v498 = vsel %vm496, %v497, %v284
      %v499 = vshrl.u32 %v498, 4
      %v500 = vand.u32 %v498, 15
      %v501 = vsub.s32 0, %v500
      %v502 = vsel %vm496, %v501, %v500
      %vm503 = vcmp.lt.s32.totalorder %v285, 0
      %v504 = vsub.s32 0, %v285
      %v505 = vsel %vm503, %v504, %v285
      %v506 = vshrl.u32 %v505, 4
      %v507 = vand.u32 %v505, 15
      %v508 = vsub.s32 0, %v507
      %v509 = vsel %vm503, %v508, %v507
      %vm510 = vcmp.ne.s32.totalorder %v292, 0
      %vm511 = vcmp.ne.s32.totalorder %v299, 0
      %vm512 = vcmp.ne.s32.totalorder %v306, 0
      %vm513 = vcmp.ne.s32.totalorder %v313, 0
      %vm514 = vcmp.ne.s32.totalorder %v320, 0
      %vm515 = vcmp.ne.s32.totalorder %v327, 0
      %vm516 = vcmp.ne.s32.totalorder %v334, 0
      %vm517 = vcmp.ne.s32.totalorder %v341, 0
      %vm518 = vcmp.ne.s32.totalorder %v348, 0
      %vm519 = vcmp.ne.s32.totalorder %v355, 0
      %vm520 = vcmp.ne.s32.totalorder %v362, 0
      %vm521 = vcmp.ne.s32.totalorder %v369, 0
      %vm522 = vcmp.ne.s32.totalorder %v376, 0
      %vm523 = vcmp.ne.s32.totalorder %v383, 0
      %vm524 = vcmp.ne.s32.totalorder %v390, 0
      %vm525 = vcmp.ne.s32.totalorder %v397, 0
      %vm526 = vcmp.ne.s32.totalorder %v404, 0
      %vm527 = vcmp.ne.s32.totalorder %v411, 0
      %vm528 = vcmp.ne.s32.totalorder %v418, 0
      %vm529 = vcmp.ne.s32.totalorder %v425, 0
      %vm530 = vcmp.ne.s32.totalorder %v432, 0
      %vm531 = vcmp.ne.s32.totalorder %v439, 0
      %vm532 = vcmp.ne.s32.totalorder %v446, 0
      %vm533 = vcmp.ne.s32.totalorder %v453, 0
      %vm534 = vcmp.ne.s32.totalorder %v460, 0
      %vm535 = vcmp.ne.s32.totalorder %v467, 0
      %vm536 = vcmp.ne.s32.totalorder %v474, 0
      %vm537 = vcmp.ne.s32.totalorder %v481, 0
      %vm538 = vcmp.ne.s32.totalorder %v488, 0
      %vm539 = vcmp.ne.s32.totalorder %v495, 0
      %vm540 = vcmp.ne.s32.totalorder %v502, 0
      %vm541 = vcmp.ne.s32.totalorder %v509, 0
      %vm542 = vcmp.lt.s32.totalorder %v292, 0
      %vm543 = vcmp.lt.s32.totalorder %v299, 0
      %vm544 = vcmp.lt.s32.totalorder %v306, 0
      %vm545 = vcmp.lt.s32.totalorder %v313, 0
      %vm546 = vcmp.lt.s32.totalorder %v320, 0
      %vm547 = vcmp.lt.s32.totalorder %v327, 0
      %vm548 = vcmp.lt.s32.totalorder %v334, 0
      %vm549 = vcmp.lt.s32.totalorder %v341, 0
      %vm550 = vcmp.lt.s32.totalorder %v348, 0
      %vm551 = vcmp.lt.s32.totalorder %v355, 0
      %vm552 = vcmp.lt.s32.totalorder %v362, 0
      %vm553 = vcmp.lt.s32.totalorder %v369, 0
      %vm554 = vcmp.lt.s32.totalorder %v376, 0
      %vm555 = vcmp.lt.s32.totalorder %v383, 0
      %vm556 = vcmp.lt.s32.totalorder %v390, 0
      %vm557 = vcmp.lt.s32.totalorder %v397, 0
      %vm558 = vcmp.lt.s32.totalorder %v404, 0
      %vm559 = vcmp.lt.s32.totalorder %v411, 0
      %vm560 = vcmp.lt.s32.totalorder %v418, 0
      %vm561 = vcmp.lt.s32.totalorder %v425, 0
      %vm562 = vcmp.lt.s32.totalorder %v432, 0
      %vm563 = vcmp.lt.s32.totalorder %v439, 0
      %vm564 = vcmp.lt.s32.totalorder %v446, 0
      %vm565 = vcmp.lt.s32.totalorder %v453, 0
      %vm566 = vcmp.lt.s32.totalorder %v460, 0
      %vm567 = vcmp.lt.s32.totalorder %v467, 0
      %vm568 = vcmp.lt.s32.totalorder %v474, 0
      %vm569 = vcmp.lt.s32.totalorder %v481, 0
      %vm570 = vcmp.lt.s32.totalorder %v488, 0
      %vm571 = vcmp.lt.s32.totalorder %v495, 0
      %vm572 = vcmp.lt.s32.totalorder %v502, 0
      %vm573 = vcmp.lt.s32.totalorder %v509, 0
      %vm574 = vmand %vm542, %vm510
      %vm575 = vmand %vm543, %vm511
      %vm576 = vmand %vm544, %vm512
      %vm577 = vmand %vm545, %vm513
      %vm578 = vmand %vm546, %vm514
      %vm579 = vmand %vm547, %vm515
      %vm580 = vmand %vm548, %vm516
      %vm581 = vmand %vm549, %vm517
      %vm582 = vmand %vm550, %vm518
      %vm583 = vmand %vm551, %vm519
      %vm584 = vmand %vm552, %vm520
      %vm585 = vmand %vm553, %vm521
      %vm586 = vmand %vm554, %vm522
      %vm587 = vmand %vm555, %vm523
      %vm588 = vmand %vm556, %vm524
      %vm589 = vmand %vm557, %vm525
      %vm590 = vmand %vm558, %vm526
      %vm591 = vmand %vm559, %vm527
      %vm592 = vmand %vm560, %vm528
      %vm593 = vmand %vm561, %vm529
      %vm594 = vmand %vm562, %vm530
      %vm595 = vmand %vm563, %vm531
      %vm596 = vmand %vm564, %vm532
      %vm597 = vmand %vm565, %vm533
      %vm598 = vmand %vm566, %vm534
      %vm599 = vmand %vm567, %vm535
      %vm600 = vmand %vm568, %vm536
      %vm601 = vmand %vm569, %vm537
      %vm602 = vmand %vm570, %vm538
      %vm603 = vmand %vm571, %vm539
      %vm604 = vmand %vm572, %vm540
      %vm605 = vmand %vm573, %vm541
      %v606 = vadd.s32 %v292, 16
      %v607 = vadd.s32 %v299, 16
      %v608 = vadd.s32 %v306, 16
      %v609 = vadd.s32 %v313, 16
      %v610 = vadd.s32 %v320, 16
      %v611 = vadd.s32 %v327, 16
      %v612 = vadd.s32 %v334, 16
      %v613 = vadd.s32 %v341, 16
      %v614 = vadd.s32 %v348, 16
      %v615 = vadd.s32 %v355, 16
      %v616 = vadd.s32 %v362, 16
      %v617 = vadd.s32 %v369, 16
      %v618 = vadd.s32 %v376, 16
      %v619 = vadd.s32 %v383, 16
      %v620 = vadd.s32 %v390, 16
      %v621 = vadd.s32 %v397, 16
      %v622 = vadd.s32 %v404, 16
      %v623 = vadd.s32 %v411, 16
      %v624 = vadd.s32 %v418, 16
      %v625 = vadd.s32 %v425, 16
      %v626 = vadd.s32 %v432, 16
      %v627 = vadd.s32 %v439, 16
      %v628 = vadd.s32 %v446, 16
      %v629 = vadd.s32 %v453, 16
      %v630 = vadd.s32 %v460, 16
      %v631 = vadd.s32 %v467, 16
      %v632 = vadd.s32 %v474, 16
      %v633 = vadd.s32 %v481, 16
      %v634 = vadd.s32 %v488, 16
      %v635 = vadd.s32 %v495, 16
      %v636 = vadd.s32 %v502, 16
      %v637 = vadd.s32 %v509, 16
      %v638 = vsel %vm574, %v606, %v292
      %v639 = vsel %vm575, %v607, %v299
      %v640 = vsel %vm576, %v608, %v306
      %v641 = vsel %vm577, %v609, %v313
      %v642 = vsel %vm578, %v610, %v320
      %v643 = vsel %vm579, %v611, %v327
      %v644 = vsel %vm580, %v612, %v334
      %v645 = vsel %vm581, %v613, %v341
      %v646 = vsel %vm582, %v614, %v348
      %v647 = vsel %vm583, %v615, %v355
      %v648 = vsel %vm584, %v616, %v362
      %v649 = vsel %vm585, %v617, %v369
      %v650 = vsel %vm586, %v618, %v376
      %v651 = vsel %vm587, %v619, %v383
      %v652 = vsel %vm588, %v620, %v390
      %v653 = vsel %vm589, %v621, %v397
      %v654 = vsel %vm590, %v622, %v404
      %v655 = vsel %vm591, %v623, %v411
      %v656 = vsel %vm592, %v624, %v418
      %v657 = vsel %vm593, %v625, %v425
      %v658 = vsel %vm594, %v626, %v432
      %v659 = vsel %vm595, %v627, %v439
      %v660 = vsel %vm596, %v628, %v446
      %v661 = vsel %vm597, %v629, %v453
      %v662 = vsel %vm598, %v630, %v460
      %v663 = vsel %vm599, %v631, %v467
      %v664 = vsel %vm600, %v632, %v474
      %v665 = vsel %vm601, %v633, %v481
      %v666 = vsel %vm602, %v634, %v488
      %v667 = vsel %vm603, %v635, %v495
      %v668 = vsel %vm604, %v636, %v502
      %v669 = vsel %vm605, %v637, %v509
      %vm670 = vcmp.eq.s32.totalorder %v638, 0
      %vm671 = vcmp.eq.s32.totalorder %v639, 0
      %vm672 = vcmp.eq.s32.totalorder %v640, 0
      %vm673 = vcmp.eq.s32.totalorder %v641, 0
      %vm674 = vcmp.eq.s32.totalorder %v642, 0
      %vm675 = vcmp.eq.s32.totalorder %v643, 0
      %vm676 = vcmp.eq.s32.totalorder %v644, 0
      %vm677 = vcmp.eq.s32.totalorder %v645, 0
      %vm678 = vcmp.eq.s32.totalorder %v646, 0
      %vm679 = vcmp.eq.s32.totalorder %v647, 0
      %vm680 = vcmp.eq.s32.totalorder %v648, 0
      %vm681 = vcmp.eq.s32.totalorder %v649, 0
      %vm682 = vcmp.eq.s32.totalorder %v650, 0
      %vm683 = vcmp.eq.s32.totalorder %v651, 0
      %vm684 = vcmp.eq.s32.totalorder %v652, 0
      %vm685 = vcmp.eq.s32.totalorder %v653, 0
      %vm686 = vcmp.eq.s32.totalorder %v654, 0
      %vm687 = vcmp.eq.s32.totalorder %v655, 0
      %vm688 = vcmp.eq.s32.totalorder %v656, 0
      %vm689 = vcmp.eq.s32.totalorder %v657, 0
      %vm690 = vcmp.eq.s32.totalorder %v658, 0
      %vm691 = vcmp.eq.s32.totalorder %v659, 0
      %vm692 = vcmp.eq.s32.totalorder %v660, 0
      %vm693 = vcmp.eq.s32.totalorder %v661, 0
      %vm694 = vcmp.eq.s32.totalorder %v662, 0
      %vm695 = vcmp.eq.s32.totalorder %v663, 0
      %vm696 = vcmp.eq.s32.totalorder %v664, 0
      %vm697 = vcmp.eq.s32.totalorder %v665, 0
      %vm698 = vcmp.eq.s32.totalorder %v666, 0
      %vm699 = vcmp.eq.s32.totalorder %v667, 0
      %vm700 = vcmp.eq.s32.totalorder %v668, 0
      %vm701 = vcmp.eq.s32.totalorder %v669, 0
      %vm702 = vcmp.eq.s32.totalorder %v638, 15
      %vm703 = vcmp.eq.s32.totalorder %v639, 15
      %vm704 = vcmp.eq.s32.totalorder %v640, 15
      %vm705 = vcmp.eq.s32.totalorder %v641, 15
      %vm706 = vcmp.eq.s32.totalorder %v642, 15
      %vm707 = vcmp.eq.s32.totalorder %v643, 15
      %vm708 = vcmp.eq.s32.totalorder %v644, 15
      %vm709 = vcmp.eq.s32.totalorder %v645, 15
      %vm710 = vcmp.eq.s32.totalorder %v646, 15
      %vm711 = vcmp.eq.s32.totalorder %v647, 15
      %vm712 = vcmp.eq.s32.totalorder %v648, 15
      %vm713 = vcmp.eq.s32.totalorder %v649, 15
      %vm714 = vcmp.eq.s32.totalorder %v650, 15
      %vm715 = vcmp.eq.s32.totalorder %v651, 15
      %vm716 = vcmp.eq.s32.totalorder %v652, 15
      %vm717 = vcmp.eq.s32.totalorder %v653, 15
      %vm718 = vcmp.eq.s32.totalorder %v654, 15
      %vm719 = vcmp.eq.s32.totalorder %v655, 15
      %vm720 = vcmp.eq.s32.totalorder %v656, 15
      %vm721 = vcmp.eq.s32.totalorder %v657, 15
      %vm722 = vcmp.eq.s32.totalorder %v658, 15
      %vm723 = vcmp.eq.s32.totalorder %v659, 15
      %vm724 = vcmp.eq.s32.totalorder %v660, 15
      %vm725 = vcmp.eq.s32.totalorder %v661, 15
      %vm726 = vcmp.eq.s32.totalorder %v662, 15
      %vm727 = vcmp.eq.s32.totalorder %v663, 15
      %vm728 = vcmp.eq.s32.totalorder %v664, 15
      %vm729 = vcmp.eq.s32.totalorder %v665, 15
      %vm730 = vcmp.eq.s32.totalorder %v666, 15
      %vm731 = vcmp.eq.s32.totalorder %v667, 15
      %vm732 = vcmp.eq.s32.totalorder %v668, 15
      %vm733 = vcmp.eq.s32.totalorder %v669, 15
      %v734 = vld [vmem:[%s246] sm:$0xf]
      %v735 = vld [vmem:[%s246 + $0x4] sm:$0xf]
      %v736 = vld [vmem:[%s246 + $0x8] sm:$0xf]
      %v737 = vld [vmem:[%s246 + $0xc] sm:$0xf]
      %v738 = vld [vmem:[%s246 + $0x10] sm:$0xf]
      %v739 = vld [vmem:[%s246 + $0x14] sm:$0xf]
      %v740 = vld [vmem:[%s246 + $0x18] sm:$0xf]
      %v741 = vld [vmem:[%s246 + $0x1c] sm:$0xf]
      %v742 = vld [vmem:[%s246 + $0x20] sm:$0xf]
      %v743 = vld [vmem:[%s246 + $0x24] sm:$0xf]
      %v744 = vld [vmem:[%s246 + $0x28] sm:$0xf]
      %v745 = vld [vmem:[%s246 + $0x2c] sm:$0xf]
      %v746 = vld [vmem:[%s246 + $0x30] sm:$0xf]
      %v747 = vld [vmem:[%s246 + $0x34] sm:$0xf]
      %v748 = vld [vmem:[%s246 + $0x38] sm:$0xf]
      %v749 = vld [vmem:[%s246 + $0x3c] sm:$0xf]
      %v750 = vld [vmem:[%s246 + $0x40] sm:$0xf]
      %v751 = vld [vmem:[%s246 + $0x44] sm:$0xf]
      %v752 = vld [vmem:[%s246 + $0x48] sm:$0xf]
      %v753 = vld [vmem:[%s246 + $0x4c] sm:$0xf]
      %v754 = vld [vmem:[%s246 + $0x50] sm:$0xf]
      %v755 = vld [vmem:[%s246 + $0x54] sm:$0xf]
      %v756 = vld [vmem:[%s246 + $0x58] sm:$0xf]
      %v757 = vld [vmem:[%s246 + $0x5c] sm:$0xf]
      %v758 = vld [vmem:[%s246 + $0x60] sm:$0xf]
      %v759 = vld [vmem:[%s246 + $0x64] sm:$0xf]
      %v760 = vld [vmem:[%s246 + $0x68] sm:$0xf]
      %v761 = vld [vmem:[%s246 + $0x6c] sm:$0xf]
      %v762 = vld [vmem:[%s246 + $0x70] sm:$0xf]
      %v763 = vld [vmem:[%s246 + $0x74] sm:$0xf]
      %v764 = vld [vmem:[%s246 + $0x78] sm:$0xf]
      %v765 = vld [vmem:[%s246 + $0x7c] sm:$0xf]
      %v766 = vunpack.c.l.bf16 %v734
      %v767 = vunpack.c.l.bf16 %v735
      %v768 = vunpack.c.l.bf16 %v736
      %v769 = vunpack.c.l.bf16 %v737
      %v770 = vunpack.c.l.bf16 %v738
      %v771 = vunpack.c.l.bf16 %v739
      %v772 = vunpack.c.l.bf16 %v740
      %v773 = vunpack.c.l.bf16 %v741
      %v774 = vunpack.c.l.bf16 %v742
      %v775 = vunpack.c.l.bf16 %v743
      %v776 = vunpack.c.l.bf16 %v744
      %v777 = vunpack.c.l.bf16 %v745
      %v778 = vunpack.c.l.bf16 %v746
      %v779 = vunpack.c.l.bf16 %v747
      %v780 = vunpack.c.l.bf16 %v748
      %v781 = vunpack.c.l.bf16 %v749
      %v782 = vunpack.c.l.bf16 %v750
      %v783 = vunpack.c.l.bf16 %v751
      %v784 = vunpack.c.l.bf16 %v752
      %v785 = vunpack.c.l.bf16 %v753
      %v786 = vunpack.c.l.bf16 %v754
      %v787 = vunpack.c.l.bf16 %v755
      %v788 = vunpack.c.l.bf16 %v756
      %v789 = vunpack.c.l.bf16 %v757
      %v790 = vunpack.c.l.bf16 %v758
      %v791 = vunpack.c.l.bf16 %v759
      %v792 = vunpack.c.l.bf16 %v760
      %v793 = vunpack.c.l.bf16 %v761
      %v794 = vunpack.c.l.bf16 %v762
      %v795 = vunpack.c.l.bf16 %v763
      %v796 = vunpack.c.l.bf16 %v764
      %v797 = vunpack.c.l.bf16 %v765
      %vm798 = vcmask 97280
      %799 = vst.msk [vmem:[#allocation2] sm:$0xff] %vm798, 0
      %800 = vst.msk [vmem:[#allocation2 + $0x88] sm:$0xff] %vm798, 0
      %v801 = vrot.slane %v766, 7
      %v802 = vrot.slane %v767, 7
      %v803 = vrot.slane %v768, 7
      %v804 = vrot.slane %v769, 7
      %v805 = vrot.slane %v770, 7
      %v806 = vrot.slane %v771, 7
      %v807 = vrot.slane %v772, 7
      %v808 = vrot.slane %v773, 7
      %v809 = vrot.slane %v774, 7
      %v810 = vrot.slane %v775, 7
      %v811 = vrot.slane %v776, 7
      %v812 = vrot.slane %v777, 7
      %v813 = vrot.slane %v778, 7
      %v814 = vrot.slane %v779, 7
      %v815 = vrot.slane %v780, 7
      %v816 = vrot.slane %v781, 7
      %v817 = vrot.slane %v782, 7
      %v818 = vrot.slane %v783, 7
      %v819 = vrot.slane %v784, 7
      %v820 = vrot.slane %v785, 7
      %v821 = vrot.slane %v786, 7
      %v822 = vrot.slane %v787, 7
      %v823 = vrot.slane %v788, 7
      %v824 = vrot.slane %v789, 7
      %v825 = vrot.slane %v790, 7
      %v826 = vrot.slane %v791, 7
      %v827 = vrot.slane %v792, 7
      %v828 = vrot.slane %v793, 7
      %v829 = vrot.slane %v794, 7
      %v830 = vrot.slane %v795, 7
      %v831 = vrot.slane %v796, 7
      %v832 = vrot.slane %v797, 7
      %vm833 = vcmp.lt.s32.totalorder %v254, 1
      %v834 = vsel %vm833, %v831, %v832
      %v835 = vsel %vm833, %v830, %v831
      %v836 = vsel %vm833, %v829, %v830
      %v837 = vsel %vm833, %v828, %v829
      %v838 = vsel %vm833, %v827, %v828
      %v839 = vsel %vm833, %v826, %v827
      %v840 = vsel %vm833, %v825, %v826
      %v841 = vsel %vm833, %v824, %v825
      %v842 = vsel %vm833, %v823, %v824
      %v843 = vsel %vm833, %v822, %v823
      %v844 = vsel %vm833, %v821, %v822
      %v845 = vsel %vm833, %v820, %v821
      %v846 = vsel %vm833, %v819, %v820
      %v847 = vsel %vm833, %v818, %v819
      %v848 = vsel %vm833, %v817, %v818
      %v849 = vsel %vm833, %v816, %v817
      %v850 = vsel %vm833, %v815, %v816
      %v851 = vsel %vm833, %v814, %v815
      %v852 = vsel %vm833, %v813, %v814
      %v853 = vsel %vm833, %v812, %v813
      %v854 = vsel %vm833, %v811, %v812
      %v855 = vsel %vm833, %v810, %v811
      %v856 = vsel %vm833, %v809, %v810
      %v857 = vsel %vm833, %v808, %v809
      %v858 = vsel %vm833, %v807, %v808
      %v859 = vsel %vm833, %v806, %v807
      %v860 = vsel %vm833, %v805, %v806
      %v861 = vsel %vm833, %v804, %v805
      %v862 = vsel %vm833, %v803, %v804
      %v863 = vsel %vm833, %v802, %v803
      %v864 = vsel %vm833, %v801, %v802
      %v865 = vsel %vm833, %v832, %v801
      %v866 = vsel %vm670, 1, 0
      %v867 = vsel %vm671, 1, 0
      %v868 = vsel %vm672, 1, 0
      %v869 = vsel %vm673, 1, 0
      %v870 = vsel %vm674, 1, 0
      %v871 = vsel %vm675, 1, 0
      %v872 = vsel %vm676, 1, 0
      %v873 = vsel %vm677, 1, 0
      %v874 = vsel %vm678, 1, 0
      %v875 = vsel %vm679, 1, 0
      %v876 = vsel %vm680, 1, 0
      %v877 = vsel %vm681, 1, 0
      %v878 = vsel %vm682, 1, 0
      %v879 = vsel %vm683, 1, 0
      %v880 = vsel %vm684, 1, 0
      %v881 = vsel %vm685, 1, 0
      %v882 = vsel %vm686, 1, 0
      %v883 = vsel %vm687, 1, 0
      %v884 = vsel %vm688, 1, 0
      %v885 = vsel %vm689, 1, 0
      %v886 = vsel %vm690, 1, 0
      %v887 = vsel %vm691, 1, 0
      %v888 = vsel %vm692, 1, 0
      %v889 = vsel %vm693, 1, 0
      %v890 = vsel %vm694, 1, 0
      %v891 = vsel %vm695, 1, 0
      %v892 = vsel %vm696, 1, 0
      %v893 = vsel %vm697, 1, 0
      %v894 = vsel %vm698, 1, 0
      %v895 = vsel %vm699, 1, 0
      %v896 = vsel %vm700, 1, 0
      %v897 = vsel %vm701, 1, 0
      %vm898 = vcmp.eq.s32.totalorder %v866, 1
      %vm899 = vcmp.eq.s32.totalorder %v867, 1
      %vm900 = vcmp.eq.s32.totalorder %v868, 1
      %vm901 = vcmp.eq.s32.totalorder %v869, 1
      %vm902 = vcmp.eq.s32.totalorder %v870, 1
      %vm903 = vcmp.eq.s32.totalorder %v871, 1
      %vm904 = vcmp.eq.s32.totalorder %v872, 1
      %vm905 = vcmp.eq.s32.totalorder %v873, 1
      %vm906 = vcmp.eq.s32.totalorder %v874, 1
      %vm907 = vcmp.eq.s32.totalorder %v875, 1
      %vm908 = vcmp.eq.s32.totalorder %v876, 1
      %vm909 = vcmp.eq.s32.totalorder %v877, 1
      %vm910 = vcmp.eq.s32.totalorder %v878, 1
      %vm911 = vcmp.eq.s32.totalorder %v879, 1
      %vm912 = vcmp.eq.s32.totalorder %v880, 1
      %vm913 = vcmp.eq.s32.totalorder %v881, 1
      %vm914 = vcmp.eq.s32.totalorder %v882, 1
      %vm915 = vcmp.eq.s32.totalorder %v883, 1
      %vm916 = vcmp.eq.s32.totalorder %v884, 1
      %vm917 = vcmp.eq.s32.totalorder %v885, 1
      %vm918 = vcmp.eq.s32.totalorder %v886, 1
      %vm919 = vcmp.eq.s32.totalorder %v887, 1
      %vm920 = vcmp.eq.s32.totalorder %v888, 1
      %vm921 = vcmp.eq.s32.totalorder %v889, 1
      %vm922 = vcmp.eq.s32.totalorder %v890, 1
      %vm923 = vcmp.eq.s32.totalorder %v891, 1
      %vm924 = vcmp.eq.s32.totalorder %v892, 1
      %vm925 = vcmp.eq.s32.totalorder %v893, 1
      %vm926 = vcmp.eq.s32.totalorder %v894, 1
      %vm927 = vcmp.eq.s32.totalorder %v895, 1
      %vm928 = vcmp.eq.s32.totalorder %v896, 1
      %vm929 = vcmp.eq.s32.totalorder %v897, 1
      %v930 = vsel %vm898, 0.0, %v865
      %v931 = vsel %vm899, 0.0, %v864
      %v932 = vsel %vm900, 0.0, %v863
      %v933 = vsel %vm901, 0.0, %v862
      %v934 = vsel %vm902, 0.0, %v861
      %v935 = vsel %vm903, 0.0, %v860
      %v936 = vsel %vm904, 0.0, %v859
      %v937 = vsel %vm905, 0.0, %v858
      %v938 = vsel %vm906, 0.0, %v857
      %v939 = vsel %vm907, 0.0, %v856
      %v940 = vsel %vm908, 0.0, %v855
      %v941 = vsel %vm909, 0.0, %v854
      %v942 = vsel %vm910, 0.0, %v853
      %v943 = vsel %vm911, 0.0, %v852
      %v944 = vsel %vm912, 0.0, %v851
      %v945 = vsel %vm913, 0.0, %v850
      %v946 = vsel %vm914, 0.0, %v849
      %v947 = vsel %vm915, 0.0, %v848
      %v948 = vsel %vm916, 0.0, %v847
      %v949 = vsel %vm917, 0.0, %v846
      %v950 = vsel %vm918, 0.0, %v845
      %v951 = vsel %vm919, 0.0, %v844
      %v952 = vsel %vm920, 0.0, %v843
      %v953 = vsel %vm921, 0.0, %v842
      %v954 = vsel %vm922, 0.0, %v841
      %v955 = vsel %vm923, 0.0, %v840
      %v956 = vsel %vm924, 0.0, %v839
      %v957 = vsel %vm925, 0.0, %v838
      %v958 = vsel %vm926, 0.0, %v837
      %v959 = vsel %vm927, 0.0, %v836
      %v960 = vsel %vm928, 0.0, %v835
      %v961 = vsel %vm929, 0.0, %v834
      %v962 = vrot.slane %v766, 1
      %v963 = vrot.slane %v767, 1
      %v964 = vrot.slane %v768, 1
      %v965 = vrot.slane %v769, 1
      %v966 = vrot.slane %v770, 1
      %v967 = vrot.slane %v771, 1
      %v968 = vrot.slane %v772, 1
      %v969 = vrot.slane %v773, 1
      %v970 = vrot.slane %v774, 1
      %v971 = vrot.slane %v775, 1
      %v972 = vrot.slane %v776, 1
      %v973 = vrot.slane %v777, 1
      %v974 = vrot.slane %v778, 1
      %v975 = vrot.slane %v779, 1
      %v976 = vrot.slane %v780, 1
      %v977 = vrot.slane %v781, 1
      %v978 = vrot.slane %v782, 1
      %v979 = vrot.slane %v783, 1
      %v980 = vrot.slane %v784, 1
      %v981 = vrot.slane %v785, 1
      %v982 = vrot.slane %v786, 1
      %v983 = vrot.slane %v787, 1
      %v984 = vrot.slane %v788, 1
      %v985 = vrot.slane %v789, 1
      %v986 = vrot.slane %v790, 1
      %v987 = vrot.slane %v791, 1
      %v988 = vrot.slane %v792, 1
      %v989 = vrot.slane %v793, 1
      %v990 = vrot.slane %v794, 1
      %v991 = vrot.slane %v795, 1
      %v992 = vrot.slane %v796, 1
      %v993 = vrot.slane %v797, 1
      %vm994 = vcmp.lt.s32.totalorder %v254, 7
      %v995 = vsel %vm994, %v992, %v993
      %v996 = vsel %vm994, %v991, %v992
      %v997 = vsel %vm994, %v990, %v991
      %v998 = vsel %vm994, %v989, %v990
      %v999 = vsel %vm994, %v988, %v989
      %v1000 = vsel %vm994, %v987, %v988
      %v1001 = vsel %vm994, %v986, %v987
      %v1002 = vsel %vm994, %v985, %v986
      %v1003 = vsel %vm994, %v984, %v985
      %v1004 = vsel %vm994, %v983, %v984
      %v1005 = vsel %vm994, %v982, %v983
      %v1006 = vsel %vm994, %v981, %v982
      %v1007 = vsel %vm994, %v980, %v981
      %v1008 = vsel %vm994, %v979, %v980
      %v1009 = vsel %vm994, %v978, %v979
      %v1010 = vsel %vm994, %v977, %v978
      %v1011 = vsel %vm994, %v976, %v977
      %v1012 = vsel %vm994, %v975, %v976
      %v1013 = vsel %vm994, %v974, %v975
      %v1014 = vsel %vm994, %v973, %v974
      %v1015 = vsel %vm994, %v972, %v973
      %v1016 = vsel %vm994, %v971, %v972
      %v1017 = vsel %vm994, %v970, %v971
      %v1018 = vsel %vm994, %v969, %v970
      %v1019 = vsel %vm994, %v968, %v969
      %v1020 = vsel %vm994, %v967, %v968
      %v1021 = vsel %vm994, %v966, %v967
      %v1022 = vsel %vm994, %v965, %v966
      %v1023 = vsel %vm994, %v964, %v965
      %v1024 = vsel %vm994, %v963, %v964
      %v1025 = vsel %vm994, %v962, %v963
      %v1026 = vsel %vm994, %v993, %v962
      %v1027 = vsel %vm702, 1, 0
      %v1028 = vsel %vm703, 1, 0
      %v1029 = vsel %vm704, 1, 0
      %v1030 = vsel %vm705, 1, 0
      %v1031 = vsel %vm706, 1, 0
      %v1032 = vsel %vm707, 1, 0
      %v1033 = vsel %vm708, 1, 0
      %v1034 = vsel %vm709, 1, 0
      %v1035 = vsel %vm710, 1, 0
      %v1036 = vsel %vm711, 1, 0
      %v1037 = vsel %vm712, 1, 0
      %v1038 = vsel %vm713, 1, 0
      %v1039 = vsel %vm714, 1, 0
      %v1040 = vsel %vm715, 1, 0
      %v1041 = vsel %vm716, 1, 0
      %v1042 = vsel %vm717, 1, 0
      %v1043 = vsel %vm718, 1, 0
      %v1044 = vsel %vm719, 1, 0
      %v1045 = vsel %vm720, 1, 0
      %v1046 = vsel %vm721, 1, 0
      %v1047 = vsel %vm722, 1, 0
      %v1048 = vsel %vm723, 1, 0
      %v1049 = vsel %vm724, 1, 0
      %v1050 = vsel %vm725, 1, 0
      %v1051 = vsel %vm726, 1, 0
      %v1052 = vsel %vm727, 1, 0
      %v1053 = vsel %vm728, 1, 0
      %v1054 = vsel %vm729, 1, 0
      %v1055 = vsel %vm730, 1, 0
      %v1056 = vsel %vm731, 1, 0
      %v1057 = vsel %vm732, 1, 0
      %v1058 = vsel %vm733, 1, 0
      %vm1059 = vcmp.eq.s32.totalorder %v1027, 1
      %vm1060 = vcmp.eq.s32.totalorder %v1028, 1
      %vm1061 = vcmp.eq.s32.totalorder %v1029, 1
      %vm1062 = vcmp.eq.s32.totalorder %v1030, 1
      %vm1063 = vcmp.eq.s32.totalorder %v1031, 1
      %vm1064 = vcmp.eq.s32.totalorder %v1032, 1
      %vm1065 = vcmp.eq.s32.totalorder %v1033, 1
      %vm1066 = vcmp.eq.s32.totalorder %v1034, 1
      %vm1067 = vcmp.eq.s32.totalorder %v1035, 1
      %vm1068 = vcmp.eq.s32.totalorder %v1036, 1
      %vm1069 = vcmp.eq.s32.totalorder %v1037, 1
      %vm1070 = vcmp.eq.s32.totalorder %v1038, 1
      %vm1071 = vcmp.eq.s32.totalorder %v1039, 1
      %vm1072 = vcmp.eq.s32.totalorder %v1040, 1
      %vm1073 = vcmp.eq.s32.totalorder %v1041, 1
      %vm1074 = vcmp.eq.s32.totalorder %v1042, 1
      %vm1075 = vcmp.eq.s32.totalorder %v1043, 1
      %vm1076 = vcmp.eq.s32.totalorder %v1044, 1
      %vm1077 = vcmp.eq.s32.totalorder %v1045, 1
      %vm1078 = vcmp.eq.s32.totalorder %v1046, 1
      %vm1079 = vcmp.eq.s32.totalorder %v1047, 1
      %vm1080 = vcmp.eq.s32.totalorder %v1048, 1
      %vm1081 = vcmp.eq.s32.totalorder %v1049, 1
      %vm1082 = vcmp.eq.s32.totalorder %v1050, 1
      %vm1083 = vcmp.eq.s32.totalorder %v1051, 1
      %vm1084 = vcmp.eq.s32.totalorder %v1052, 1
      %vm1085 = vcmp.eq.s32.totalorder %v1053, 1
      %vm1086 = vcmp.eq.s32.totalorder %v1054, 1
      %vm1087 = vcmp.eq.s32.totalorder %v1055, 1
      %vm1088 = vcmp.eq.s32.totalorder %v1056, 1
      %vm1089 = vcmp.eq.s32.totalorder %v1057, 1
      %vm1090 = vcmp.eq.s32.totalorder %v1058, 1
      %v1091 = vsel %vm1059, 0.0, %v1025
      %v1092 = vsel %vm1060, 0.0, %v1024
      %v1093 = vsel %vm1061, 0.0, %v1023
      %v1094 = vsel %vm1062, 0.0, %v1022
      %v1095 = vsel %vm1063, 0.0, %v1021
      %v1096 = vsel %vm1064, 0.0, %v1020
      %v1097 = vsel %vm1065, 0.0, %v1019
      %v1098 = vsel %vm1066, 0.0, %v1018
      %v1099 = vsel %vm1067, 0.0, %v1017
      %v1100 = vsel %vm1068, 0.0, %v1016
      %v1101 = vsel %vm1069, 0.0, %v1015
      %v1102 = vsel %vm1070, 0.0, %v1014
      %v1103 = vsel %vm1071, 0.0, %v1013
      %v1104 = vsel %vm1072, 0.0, %v1012
      %v1105 = vsel %vm1073, 0.0, %v1011
      %v1106 = vsel %vm1074, 0.0, %v1010
      %v1107 = vsel %vm1075, 0.0, %v1009
      %v1108 = vsel %vm1076, 0.0, %v1008
      %v1109 = vsel %vm1077, 0.0, %v1007
      %v1110 = vsel %vm1078, 0.0, %v1006
      %v1111 = vsel %vm1079, 0.0, %v1005
      %v1112 = vsel %vm1080, 0.0, %v1004
      %v1113 = vsel %vm1081, 0.0, %v1003
      %v1114 = vsel %vm1082, 0.0, %v1002
      %v1115 = vsel %vm1083, 0.0, %v1001
      %v1116 = vsel %vm1084, 0.0, %v1000
      %v1117 = vsel %vm1085, 0.0, %v999
      %v1118 = vsel %vm1086, 0.0, %v998
      %v1119 = vsel %vm1087, 0.0, %v997
      %v1120 = vsel %vm1088, 0.0, %v996
      %v1121 = vsel %vm1089, 0.0, %v995
      %v1122 = vsel %vm1090, 0.0, %v1026
      %v1123 = vpack.c.bf16 %v931, %v930
      %v1124 = vpack.c.bf16 %v933, %v932
      %v1125 = vpack.c.bf16 %v935, %v934
      %v1126 = vpack.c.bf16 %v937, %v936
      %v1127 = vpack.c.bf16 %v939, %v938
      %v1128 = vpack.c.bf16 %v941, %v940
      %v1129 = vpack.c.bf16 %v943, %v942
      %v1130 = vpack.c.bf16 %v945, %v944
      %v1131 = vpack.c.bf16 %v947, %v946
      %v1132 = vpack.c.bf16 %v949, %v948
      %v1133 = vpack.c.bf16 %v951, %v950
      %v1134 = vpack.c.bf16 %v953, %v952
      %v1135 = vpack.c.bf16 %v955, %v954
      %v1136 = vpack.c.bf16 %v957, %v956
      %v1137 = vpack.c.bf16 %v959, %v958
      %v1138 = vpack.c.bf16 %v961, %v960
      %vm1139 = vcmask 31744
      %1140 = vst.msk [vmem:[#allocation2 + $0x8] sm:$0xff] %vm1139, %v1123
      %1141 = vst.msk [vmem:[#allocation2 + $0x10] sm:$0xff] %vm1139, %v1124
      %1142 = vst.msk [vmem:[#allocation2 + $0x18] sm:$0xff] %vm1139, %v1125
      %1143 = vst.msk [vmem:[#allocation2 + $0x20] sm:$0xff] %vm1139, %v1126
      %1144 = vst.msk [vmem:[#allocation2 + $0x28] sm:$0xff] %vm1139, %v1127
      %1145 = vst.msk [vmem:[#allocation2 + $0x30] sm:$0xff] %vm1139, %v1128
      %1146 = vst.msk [vmem:[#allocation2 + $0x38] sm:$0xff] %vm1139, %v1129
      %1147 = vst.msk [vmem:[#allocation2 + $0x40] sm:$0xff] %vm1139, %v1130
      %1148 = vst.msk [vmem:[#allocation2 + $0x48] sm:$0xff] %vm1139, %v1131
      %1149 = vst.msk [vmem:[#allocation2 + $0x50] sm:$0xff] %vm1139, %v1132
      %1150 = vst.msk [vmem:[#allocation2 + $0x58] sm:$0xff] %vm1139, %v1133
      %1151 = vst.msk [vmem:[#allocation2 + $0x60] sm:$0xff] %vm1139, %v1134
      %1152 = vst.msk [vmem:[#allocation2 + $0x68] sm:$0xff] %vm1139, %v1135
      %1153 = vst.msk [vmem:[#allocation2 + $0x70] sm:$0xff] %vm1139, %v1136
      %1154 = vst.msk [vmem:[#allocation2 + $0x78] sm:$0xff] %vm1139, %v1137
      %1155 = vst.msk [vmem:[#allocation2 + $0x80] sm:$0xff] %vm1139, %v1138
      %v1188 = vunpack.c.l.b16 %v734
      %v1189 = vunpack.c.l.b16 %v735
      %v1190 = vunpack.c.l.b16 %v736
      %v1191 = vunpack.c.l.b16 %v737
      %v1192 = vunpack.c.l.b16 %v738
      %v1193 = vunpack.c.l.b16 %v739
      %v1194 = vunpack.c.l.b16 %v740
      %v1195 = vunpack.c.l.b16 %v741
      %v1196 = vunpack.c.l.b16 %v742
      %v1197 = vunpack.c.l.b16 %v743
      %v1198 = vunpack.c.l.b16 %v744
      %v1199 = vunpack.c.l.b16 %v745
      %v1200 = vunpack.c.l.b16 %v746
      %v1201 = vunpack.c.l.b16 %v747
      %v1202 = vunpack.c.l.b16 %v748
      %v1203 = vunpack.c.l.b16 %v749
      %v1204 = vunpack.c.l.b16 %v750
      %v1205 = vunpack.c.l.b16 %v751
      %v1206 = vunpack.c.l.b16 %v752
      %v1207 = vunpack.c.l.b16 %v753
      %v1208 = vunpack.c.l.b16 %v754
      %v1209 = vunpack.c.l.b16 %v755
      %v1210 = vunpack.c.l.b16 %v756
      %v1211 = vunpack.c.l.b16 %v757
      %v1212 = vunpack.c.l.b16 %v758
      %v1213 = vunpack.c.l.b16 %v759
      %v1214 = vunpack.c.l.b16 %v760
      %v1215 = vunpack.c.l.b16 %v761
      %v1216 = vunpack.c.l.b16 %v762
      %v1217 = vunpack.c.l.b16 %v763
      %v1218 = vunpack.c.l.b16 %v764
      %v1219 = vunpack.c.l.b16 %v765
      %v1220 = vpack.c.b16 %v1189, %v1188
      %v1221 = vpack.c.b16 %v1191, %v1190
      %v1222 = vpack.c.b16 %v1193, %v1192
      %v1223 = vpack.c.b16 %v1195, %v1194
      %v1224 = vpack.c.b16 %v1197, %v1196
      %v1225 = vpack.c.b16 %v1199, %v1198
      %v1226 = vpack.c.b16 %v1201, %v1200
      %v1227 = vpack.c.b16 %v1203, %v1202
      %v1228 = vpack.c.b16 %v1205, %v1204
      %v1229 = vpack.c.b16 %v1207, %v1206
      %v1230 = vpack.c.b16 %v1209, %v1208
      %v1231 = vpack.c.b16 %v1211, %v1210
      %v1232 = vpack.c.b16 %v1213, %v1212
      %v1233 = vpack.c.b16 %v1215, %v1214
      %v1234 = vpack.c.b16 %v1217, %v1216
      %v1235 = vpack.c.b16 %v1219, %v1218
      %1236 = vrot.lane.b32.xlu0 %v1220, 4
      %v1237 = vpop.permute.xlu0 %1236
      %1238 = vrot.lane.b32.xlu0 %v1221, 4
      %v1239 = vpop.permute.xlu0 %1238
      %1240 = vrot.lane.b32.xlu0 %v1222, 4
      %v1241 = vpop.permute.xlu0 %1240
      %1242 = vrot.lane.b32.xlu0 %v1223, 4
      %v1243 = vpop.permute.xlu0 %1242
      %1244 = vrot.lane.b32.xlu0 %v1224, 4
      %v1245 = vpop.permute.xlu0 %1244
      %1246 = vrot.lane.b32.xlu0 %v1225, 4
      %v1247 = vpop.permute.xlu0 %1246
      %1248 = vrot.lane.b32.xlu0 %v1226, 4
      %v1249 = vpop.permute.xlu0 %1248
      %1250 = vrot.lane.b32.xlu0 %v1227, 4
      %v1251 = vpop.permute.xlu0 %1250
      %1252 = vrot.lane.b32.xlu0 %v1228, 4
      %v1253 = vpop.permute.xlu0 %1252
      %1254 = vrot.lane.b32.xlu0 %v1229, 4
      %v1255 = vpop.permute.xlu0 %1254
      %1256 = vrot.lane.b32.xlu0 %v1230, 4
      %v1257 = vpop.permute.xlu0 %1256
      %1258 = vrot.lane.b32.xlu0 %v1231, 4
      %v1259 = vpop.permute.xlu0 %1258
      %1260 = vrot.lane.b32.xlu0 %v1232, 4
      %v1261 = vpop.permute.xlu0 %1260
      %1262 = vrot.lane.b32.xlu0 %v1233, 4
      %v1263 = vpop.permute.xlu0 %1262
      %1264 = vrot.lane.b32.xlu0 %v1234, 4
      %v1265 = vpop.permute.xlu0 %1264
      %1266 = vrot.lane.b32.xlu0 %v1235, 4
      %v1267 = vpop.permute.xlu0 %1266
      %vm1284 = vcmask 64544
      %1285 = vst.msk [vmem:[#allocation2 + $0x8] sm:$0xff] %vm1284, %v1237
      %1286 = vst.msk [vmem:[#allocation2 + $0x10] sm:$0xff] %vm1284, %v1239
      %1287 = vst.msk [vmem:[#allocation2 + $0x18] sm:$0xff] %vm1284, %v1241
      %1288 = vst.msk [vmem:[#allocation2 + $0x20] sm:$0xff] %vm1284, %v1243
      %1289 = vst.msk [vmem:[#allocation2 + $0x28] sm:$0xff] %vm1284, %v1245
      %1290 = vst.msk [vmem:[#allocation2 + $0x30] sm:$0xff] %vm1284, %v1247
      %1291 = vst.msk [vmem:[#allocation2 + $0x38] sm:$0xff] %vm1284, %v1249
      %1292 = vst.msk [vmem:[#allocation2 + $0x40] sm:$0xff] %vm1284, %v1251
      %1293 = vst.msk [vmem:[#allocation2 + $0x48] sm:$0xff] %vm1284, %v1253
      %1294 = vst.msk [vmem:[#allocation2 + $0x50] sm:$0xff] %vm1284, %v1255
      %1295 = vst.msk [vmem:[#allocation2 + $0x58] sm:$0xff] %vm1284, %v1257
      %1296 = vst.msk [vmem:[#allocation2 + $0x60] sm:$0xff] %vm1284, %v1259
      %1297 = vst.msk [vmem:[#allocation2 + $0x68] sm:$0xff] %vm1284, %v1261
      %1298 = vst.msk [vmem:[#allocation2 + $0x70] sm:$0xff] %vm1284, %v1263
      %1299 = vst.msk [vmem:[#allocation2 + $0x78] sm:$0xff] %vm1284, %v1265
      %1300 = vst.msk [vmem:[#allocation2 + $0x80] sm:$0xff] %vm1284, %v1267
      %v1301 = vpack.c.bf16 %v1092, %v1091
      %v1302 = vpack.c.bf16 %v1094, %v1093
      %v1303 = vpack.c.bf16 %v1096, %v1095
      %v1304 = vpack.c.bf16 %v1098, %v1097
      %v1305 = vpack.c.bf16 %v1100, %v1099
      %v1306 = vpack.c.bf16 %v1102, %v1101
      %v1307 = vpack.c.bf16 %v1104, %v1103
      %v1308 = vpack.c.bf16 %v1106, %v1105
      %v1309 = vpack.c.bf16 %v1108, %v1107
      %v1310 = vpack.c.bf16 %v1110, %v1109
      %v1311 = vpack.c.bf16 %v1112, %v1111
      %v1312 = vpack.c.bf16 %v1114, %v1113
      %v1313 = vpack.c.bf16 %v1116, %v1115
      %v1314 = vpack.c.bf16 %v1118, %v1117
      %v1315 = vpack.c.bf16 %v1120, %v1119
      %v1316 = vpack.c.bf16 %v1122, %v1121
      %1333 = vrot.lane.b32.xlu0 %v1301, 8
      %v1334 = vpop.permute.xlu0 %1333
      %1335 = vrot.lane.b32.xlu0 %v1302, 8
      %v1336 = vpop.permute.xlu0 %1335
      %1337 = vrot.lane.b32.xlu0 %v1303, 8
      %v1338 = vpop.permute.xlu0 %1337
      %1339 = vrot.lane.b32.xlu0 %v1304, 8
      %v1340 = vpop.permute.xlu0 %1339
      %1341 = vrot.lane.b32.xlu0 %v1305, 8
      %v1342 = vpop.permute.xlu0 %1341
      %1343 = vrot.lane.b32.xlu0 %v1306, 8
      %v1344 = vpop.permute.xlu0 %1343
      %1345 = vrot.lane.b32.xlu0 %v1307, 8
      %v1346 = vpop.permute.xlu0 %1345
      %1347 = vrot.lane.b32.xlu0 %v1308, 8
      %v1348 = vpop.permute.xlu0 %1347
      %1349 = vrot.lane.b32.xlu0 %v1309, 8
      %v1350 = vpop.permute.xlu0 %1349
      %1351 = vrot.lane.b32.xlu0 %v1310, 8
      %v1352 = vpop.permute.xlu0 %1351
      %1353 = vrot.lane.b32.xlu0 %v1311, 8
      %v1354 = vpop.permute.xlu0 %1353
      %1355 = vrot.lane.b32.xlu0 %v1312, 8
      %v1356 = vpop.permute.xlu0 %1355
      %1357 = vrot.lane.b32.xlu0 %v1313, 8
      %v1358 = vpop.permute.xlu0 %1357
      %1359 = vrot.lane.b32.xlu0 %v1314, 8
      %v1360 = vpop.permute.xlu0 %1359
      %1361 = vrot.lane.b32.xlu0 %v1315, 8
      %v1362 = vpop.permute.xlu0 %1361
      %1363 = vrot.lane.b32.xlu0 %v1316, 8
      %v1364 = vpop.permute.xlu0 %1363
      %vm1381 = vcmask 97344
      %1382 = vst.msk [vmem:[#allocation2 + $0x8] sm:$0xff] %vm1381, %v1334
      %1383 = vst.msk [vmem:[#allocation2 + $0x10] sm:$0xff] %vm1381, %v1336
      %1384 = vst.msk [vmem:[#allocation2 + $0x18] sm:$0xff] %vm1381, %v1338
      %1385 = vst.msk [vmem:[#allocation2 + $0x20] sm:$0xff] %vm1381, %v1340
      %1386 = vst.msk [vmem:[#allocation2 + $0x28] sm:$0xff] %vm1381, %v1342
      %1387 = vst.msk [vmem:[#allocation2 + $0x30] sm:$0xff] %vm1381, %v1344
      %1388 = vst.msk [vmem:[#allocation2 + $0x38] sm:$0xff] %vm1381, %v1346
      %1389 = vst.msk [vmem:[#allocation2 + $0x40] sm:$0xff] %vm1381, %v1348
      %1390 = vst.msk [vmem:[#allocation2 + $0x48] sm:$0xff] %vm1381, %v1350
      %1391 = vst.msk [vmem:[#allocation2 + $0x50] sm:$0xff] %vm1381, %v1352
      %1392 = vst.msk [vmem:[#allocation2 + $0x58] sm:$0xff] %vm1381, %v1354
      %1393 = vst.msk [vmem:[#allocation2 + $0x60] sm:$0xff] %vm1381, %v1356
      %1394 = vst.msk [vmem:[#allocation2 + $0x68] sm:$0xff] %vm1381, %v1358
      %1395 = vst.msk [vmem:[#allocation2 + $0x70] sm:$0xff] %vm1381, %v1360
      %1396 = vst.msk [vmem:[#allocation2 + $0x78] sm:$0xff] %vm1381, %v1362
      %1397 = vst.msk [vmem:[#allocation2 + $0x80] sm:$0xff] %vm1381, %v1364
      %v1398 = vld [vmem:[#allocation2] sm:$0xff]
      %v1399 = vld [vmem:[#allocation2 + $0x8] sm:$0xff]
      %v1400 = vld [vmem:[#allocation2 + $0x10] sm:$0xff]
      %v1401 = vld [vmem:[#allocation2 + $0x18] sm:$0xff]
      %v1402 = vld [vmem:[#allocation2 + $0x20] sm:$0xff]
      %v1403 = vld [vmem:[#allocation2 + $0x28] sm:$0xff]
      %v1404 = vld [vmem:[#allocation2 + $0x30] sm:$0xff]
      %v1405 = vld [vmem:[#allocation2 + $0x38] sm:$0xff]
      %v1406 = vld [vmem:[#allocation2 + $0x40] sm:$0xff]
      %v1407 = vld [vmem:[#allocation2 + $0x48] sm:$0xff]
      %v1408 = vld [vmem:[#allocation2 + $0x50] sm:$0xff]
      %v1409 = vld [vmem:[#allocation2 + $0x58] sm:$0xff]
      %v1410 = vld [vmem:[#allocation2 + $0x60] sm:$0xff]
      %v1411 = vld [vmem:[#allocation2 + $0x68] sm:$0xff]
      %v1412 = vld [vmem:[#allocation2 + $0x70] sm:$0xff]
      %v1413 = vld [vmem:[#allocation2 + $0x78] sm:$0xff]
      %v1414 = vld [vmem:[%s1] sm:$0xf]
      %v1415 = vld [vmem:[%s1 + $0x4] sm:$0x3]
      %v1416 = vld [vmem:[#allocation2 + $0x80] sm:$0xff]
      %s1417 = scalar_lea.vmem %s1, 8
      %v1418 = vld [vmem:[%s1417] sm:$0xf]
      %v1419 = vld [vmem:[%s1417 + $0x4] sm:$0x3]
      %v1422 = vunpack.c.l.b16 %v1418
      %v1423 = vunpack.c.l.b16 %v1419
      %v1424 = vpack.c.b16 %v1423, %v1422
      %v1426 = vsel %vm798, %v1399, 0
      %v1429 = vsel %vm798, %v1400, 0
      %v1432 = vsel %vm798, %v1401, 0
      %v1435 = vsel %vm798, %v1402, 0
      %v1438 = vsel %vm798, %v1403, 0
      %v1441 = vsel %vm798, %v1404, 0
      %v1444 = vsel %vm798, %v1405, 0
      %v1447 = vsel %vm798, %v1406, 0
      %v1450 = vsel %vm798, %v1407, 0
      %v1453 = vsel %vm798, %v1408, 0
      %v1456 = vsel %vm798, %v1409, 0
      %v1459 = vsel %vm798, %v1410, 0
      %v1462 = vsel %vm798, %v1411, 0
      %v1465 = vsel %vm798, %v1412, 0
      %v1468 = vsel %vm798, %v1413, 0
      %v1471 = vsel %vm798, %v1416, 0
      %vm1473 = vcmask 1045504
      %v1475 = vsel %vm1473, %v1424, 0
      %1477 = vmatprep.subr.bf16.mxu0 0
      %1478 = vmatpush1.bf16.msra.mxu0 %v1475
      %1479 = vmatprep.subr.bf16.mxu0 0
      %1480 = vmatpush1.bf16.msra.mxu0 0
      %1481 = vmatprep.subr.bf16.mxu0 0
      %1482 = vmatpush1.bf16.msra.mxu0 0
      %1483 = vmatprep.subr.bf16.mxu0 0
      %1484 = vmatpush1.bf16.msra.mxu0 0
      %1485 = vmatprep.subr.bf16.mxu0 0
      %1486 = vmatpush1.bf16.msra.mxu0 0
      %1487 = vmatprep.subr.bf16.mxu0 0
      %1488 = vmatpush1.bf16.msra.mxu0 0
      %1489 = vmatprep.subr.bf16.mxu0 0
      %1490 = vmatpush1.bf16.msra.mxu0 0
      %1491 = vmatprep.subr.bf16.mxu0 0
      %1492 = vmatpush1.bf16.msra.mxu0 0
      %1493 = vmatprep.subr.bf16.mxu0 0
      %1494 = vmatpush1.bf16.msra.mxu0 0
      %1495 = vmatprep.subr.bf16.mxu0 0
      %1496 = vmatpush1.bf16.msra.mxu0 0
      %1497 = vmatprep.subr.bf16.mxu0 0
      %1498 = vmatpush1.bf16.msra.mxu0 0
      %1499 = vmatprep.subr.bf16.mxu0 0
      %1500 = vmatpush1.bf16.msra.mxu0 0
      %1501 = vmatprep.subr.bf16.mxu0 0
      %1502 = vmatpush1.bf16.msra.mxu0 0
      %1503 = vmatprep.subr.bf16.mxu0 0
      %1504 = vmatpush1.bf16.msra.mxu0 0
      %1505 = vmatprep.subr.bf16.mxu0 0
      %1506 = vmatpush1.bf16.msra.mxu0 0
      %1507 = vmatprep.subr.bf16.mxu0 0
      %1508 = vmatpush1.bf16.msra.mxu0 0
      %1509 = vmatprep.mubr.bf16.mxu0 0
      %1510 = vmatmul.mubr.bf16.gmra.mrb[0].mxu0 %v1426
      %v1511 = vpop.f32.mrb[0].mxu0
      %v1512 = vadd.f32 0.0, %v1511
      %v1513 = vpop.f32.mrb[0].mxu0
      %v1514 = vpop.f32.mrb[0].mxu0
      %v1515 = vadd.f32 0.0, %v1514
      %v1516 = vpop.f32.mrb[0].mxu0
      %1517 = vmatprep.mubr.bf16.mxu0 0
      %1518 = vmatmul.mubr.bf16.gmra.mrb[0].mxu0 %v1429
      %v1519 = vpop.f32.mrb[0].mxu0
      %v1520 = vadd.f32 0.0, %v1519
      %v1521 = vpop.f32.mrb[0].mxu0
      %v1522 = vpop.f32.mrb[0].mxu0
      %v1523 = vadd.f32 0.0, %v1522
      %v1524 = vpop.f32.mrb[0].mxu0
      %1525 = vmatprep.mubr.bf16.mxu0 0
      %1526 = vmatmul.mubr.bf16.gmra.mrb[0].mxu0 %v1432
      %v1527 = vpop.f32.mrb[0].mxu0
      %v1528 = vadd.f32 0.0, %v1527
      %v1529 = vpop.f32.mrb[0].mxu0
      %v1530 = vpop.f32.mrb[0].mxu0
      %v1531 = vadd.f32 0.0, %v1530
      %v1532 = vpop.f32.mrb[0].mxu0
      %1533 = vmatprep.mubr.bf16.mxu0 0
      %1534 = vmatmul.mubr.bf16.gmra.mrb[0].mxu0 %v1435
      %v1535 = vpop.f32.mrb[0].mxu0
      %v1536 = vadd.f32 0.0, %v1535
      %v1537 = vpop.f32.mrb[0].mxu0
      %v1538 = vpop.f32.mrb[0].mxu0
      %v1539 = vadd.f32 0.0, %v1538
      %v1540 = vpop.f32.mrb[0].mxu0
      %1541 = vmatprep.mubr.bf16.mxu0 0
      %1542 = vmatmul.mubr.bf16.gmra.mrb[0].mxu0 %v1438
      %v1543 = vpop.f32.mrb[0].mxu0
      %v1544 = vadd.f32 0.0, %v1543
      %v1545 = vpop.f32.mrb[0].mxu0
      %v1546 = vpop.f32.mrb[0].mxu0
      %v1547 = vadd.f32 0.0, %v1546
      %v1548 = vpop.f32.mrb[0].mxu0
      %1549 = vmatprep.mubr.bf16.mxu0 0
      %1550 = vmatmul.mubr.bf16.gmra.mrb[0].mxu0 %v1441
      %v1551 = vpop.f32.mrb[0].mxu0
      %v1552 = vadd.f32 0.0, %v1551
      %v1553 = vpop.f32.mrb[0].mxu0
      %v1554 = vpop.f32.mrb[0].mxu0
      %v1555 = vadd.f32 0.0, %v1554
      %v1556 = vpop.f32.mrb[0].mxu0
      %1557 = vmatprep.mubr.bf16.mxu0 0
      %1558 = vmatmul.mubr.bf16.gmra.mrb[0].mxu0 %v1444
      %v1559 = vpop.f32.mrb[0].mxu0
      %v1560 = vadd.f32 0.0, %v1559
      %v1561 = vpop.f32.mrb[0].mxu0
      %v1562 = vpop.f32.mrb[0].mxu0
      %v1563 = vadd.f32 0.0, %v1562
      %v1564 = vpop.f32.mrb[0].mxu0
      %1565 = vmatprep.mubr.bf16.mxu0 0
      %1566 = vmatmul.mubr.bf16.gmra.mrb[0].mxu0 %v1447
      %v1567 = vpop.f32.mrb[0].mxu0
      %v1568 = vadd.f32 0.0, %v1567
      %v1569 = vpop.f32.mrb[0].mxu0
      %v1570 = vpop.f32.mrb[0].mxu0
      %v1571 = vadd.f32 0.0, %v1570
      %v1572 = vpop.f32.mrb[0].mxu0
      %1573 = vmatprep.mubr.bf16.mxu0 0
      %1574 = vmatmul.mubr.bf16.gmra.mrb[0].mxu0 %v1450
      %v1575 = vpop.f32.mrb[0].mxu0
      %v1576 = vadd.f32 0.0, %v1575
      %v1577 = vpop.f32.mrb[0].mxu0
      %v1578 = vpop.f32.mrb[0].mxu0
      %v1579 = vadd.f32 0.0, %v1578
      %v1580 = vpop.f32.mrb[0].mxu0
      %1581 = vmatprep.mubr.bf16.mxu0 0
      %1582 = vmatmul.mubr.bf16.gmra.mrb[0].mxu0 %v1453
      %v1583 = vpop.f32.mrb[0].mxu0
      %v1584 = vadd.f32 0.0, %v1583
      %v1585 = vpop.f32.mrb[0].mxu0
      %v1586 = vpop.f32.mrb[0].mxu0
      %v1587 = vadd.f32 0.0, %v1586
      %v1588 = vpop.f32.mrb[0].mxu0
      %1589 = vmatprep.mubr.bf16.mxu0 0
      %1590 = vmatmul.mubr.bf16.gmra.mrb[0].mxu0 %v1456
      %v1591 = vpop.f32.mrb[0].mxu0
      %v1592 = vadd.f32 0.0, %v1591
      %v1593 = vpop.f32.mrb[0].mxu0
      %v1594 = vpop.f32.mrb[0].mxu0
      %v1595 = vadd.f32 0.0, %v1594
      %v1596 = vpop.f32.mrb[0].mxu0
      %1597 = vmatprep.mubr.bf16.mxu0 0
      %1598 = vmatmul.mubr.bf16.gmra.mrb[0].mxu0 %v1459
      %v1599 = vpop.f32.mrb[0].mxu0
      %v1600 = vadd.f32 0.0, %v1599
      %v1601 = vpop.f32.mrb[0].mxu0
      %v1602 = vpop.f32.mrb[0].mxu0
      %v1603 = vadd.f32 0.0, %v1602
      %v1604 = vpop.f32.mrb[0].mxu0
      %1605 = vmatprep.mubr.bf16.mxu0 0
      %1606 = vmatmul.mubr.bf16.gmra.mrb[0].mxu0 %v1462
      %v1607 = vpop.f32.mrb[0].mxu0
      %v1608 = vadd.f32 0.0, %v1607
      %v1609 = vpop.f32.mrb[0].mxu0
      %v1610 = vpop.f32.mrb[0].mxu0
      %v1611 = vadd.f32 0.0, %v1610
      %v1612 = vpop.f32.mrb[0].mxu0
      %1613 = vmatprep.mubr.bf16.mxu0 0
      %1614 = vmatmul.mubr.bf16.gmra.mrb[0].mxu0 %v1465
      %v1615 = vpop.f32.mrb[0].mxu0
      %v1616 = vadd.f32 0.0, %v1615
      %v1617 = vpop.f32.mrb[0].mxu0
      %v1618 = vpop.f32.mrb[0].mxu0
      %v1619 = vadd.f32 0.0, %v1618
      %v1620 = vpop.f32.mrb[0].mxu0
      %1621 = vmatprep.mubr.bf16.mxu0 0
      %1622 = vmatmul.mubr.bf16.gmra.mrb[0].mxu0 %v1468
      %v1623 = vpop.f32.mrb[0].mxu0
      %v1624 = vadd.f32 0.0, %v1623
      %v1625 = vpop.f32.mrb[0].mxu0
      %v1626 = vpop.f32.mrb[0].mxu0
      %v1627 = vadd.f32 0.0, %v1626
      %v1628 = vpop.f32.mrb[0].mxu0
      %1629 = vmatprep.mubr.bf16.mxu0 0
      %1630 = vmatmul.mubr.bf16.gmra.mrb[0].mxu0 %v1471
      %v1631 = vpop.f32.mrb[0].mxu0
      %v1632 = vadd.f32 0.0, %v1631
      %v1633 = vpop.f32.mrb[0].mxu0
      %v1634 = vpop.f32.mrb[0].mxu0
      %v1635 = vadd.f32 0.0, %v1634
      %v1636 = vpop.f32.mrb[0].mxu0
      %1637 = vdwg.mxu0
      %v1640 = vunpack.c.l.b16 %v1414
      %v1641 = vunpack.c.l.b16 %v1415
      %v1642 = vpack.c.b16 %v1641, %v1640
      %v1644 = vsel %vm798, %v1398, 0
      %v1647 = vsel %vm1473, %v1642, 0
      %1649 = vmatprep.subr.bf16.mxu0 0
      %1650 = vmatpush1.bf16.msra.mxu0 %v1647
      %1651 = vmatprep.subr.bf16.mxu0 0
      %1652 = vmatpush1.bf16.msra.mxu0 0
      %1653 = vmatprep.subr.bf16.mxu0 0
      %1654 = vmatpush1.bf16.msra.mxu0 0
      %1655 = vmatprep.subr.bf16.mxu0 0
      %1656 = vmatpush1.bf16.msra.mxu0 0
      %1657 = vmatprep.subr.bf16.mxu0 0
      %1658 = vmatpush1.bf16.msra.mxu0 0
      %1659 = vmatprep.subr.bf16.mxu0 0
      %1660 = vmatpush1.bf16.msra.mxu0 0
      %1661 = vmatprep.subr.bf16.mxu0 0
      %1662 = vmatpush1.bf16.msra.mxu0 0
      %1663 = vmatprep.subr.bf16.mxu0 0
      %1664 = vmatpush1.bf16.msra.mxu0 0
      %1665 = vmatprep.subr.bf16.mxu0 0
      %1666 = vmatpush1.bf16.msra.mxu0 0
      %1667 = vmatprep.subr.bf16.mxu0 0
      %1668 = vmatpush1.bf16.msra.mxu0 0
      %1669 = vmatprep.subr.bf16.mxu0 0
      %1670 = vmatpush1.bf16.msra.mxu0 0
      %1671 = vmatprep.subr.bf16.mxu0 0
      %1672 = vmatpush1.bf16.msra.mxu0 0
      %1673 = vmatprep.subr.bf16.mxu0 0
      %1674 = vmatpush1.bf16.msra.mxu0 0
      %1675 = vmatprep.subr.bf16.mxu0 0
      %1676 = vmatpush1.bf16.msra.mxu0 0
      %1677 = vmatprep.subr.bf16.mxu0 0
      %1678 = vmatpush1.bf16.msra.mxu0 0
      %1679 = vmatprep.subr.bf16.mxu0 0
      %1680 = vmatpush1.bf16.msra.mxu0 0
      %1681 = vmatprep.mubr.bf16.mxu0 0
      %1682 = vmatmul.mubr.bf16.gmra.mrb[0].mxu0 %v1644
      %v1683 = vpop.f32.mrb[0].mxu0
      %v1684 = vadd.f32 %v1512, %v1683
      %v1685 = vpop.f32.mrb[0].mxu0
      %v1686 = vpop.f32.mrb[0].mxu0
      %v1687 = vadd.f32 %v1515, %v1686
      %v1688 = vpop.f32.mrb[0].mxu0
      %1689 = vmatprep.mubr.bf16.mxu0 0
      %1690 = vmatmul.mubr.bf16.gmra.mrb[0].mxu0 %v1426
      %v1691 = vpop.f32.mrb[0].mxu0
      %v1692 = vadd.f32 %v1520, %v1691
      %v1693 = vpop.f32.mrb[0].mxu0
      %v1694 = vpop.f32.mrb[0].mxu0
      %v1695 = vadd.f32 %v1523, %v1694
      %v1696 = vpop.f32.mrb[0].mxu0
      %1697 = vmatprep.mubr.bf16.mxu0 0
      %1698 = vmatmul.mubr.bf16.gmra.mrb[0].mxu0 %v1429
      %v1699 = vpop.f32.mrb[0].mxu0
      %v1700 = vadd.f32 %v1528, %v1699
      %v1701 = vpop.f32.mrb[0].mxu0
      %v1702 = vpop.f32.mrb[0].mxu0
      %v1703 = vadd.f32 %v1531, %v1702
      %v1704 = vpop.f32.mrb[0].mxu0
      %1705 = vmatprep.mubr.bf16.mxu0 0
      %1706 = vmatmul.mubr.bf16.gmra.mrb[0].mxu0 %v1432
      %v1707 = vpop.f32.mrb[0].mxu0
      %v1708 = vadd.f32 %v1536, %v1707
      %v1709 = vpop.f32.mrb[0].mxu0
      %v1710 = vpop.f32.mrb[0].mxu0
      %v1711 = vadd.f32 %v1539, %v1710
      %v1712 = vpop.f32.mrb[0].mxu0
      %1713 = vmatprep.mubr.bf16.mxu0 0
      %1714 = vmatmul.mubr.bf16.gmra.mrb[0].mxu0 %v1435
      %v1715 = vpop.f32.mrb[0].mxu0
      %v1716 = vadd.f32 %v1544, %v1715
      %v1717 = vpop.f32.mrb[0].mxu0
      %v1718 = vpop.f32.mrb[0].mxu0
      %v1719 = vadd.f32 %v1547, %v1718
      %v1720 = vpop.f32.mrb[0].mxu0
      %1721 = vmatprep.mubr.bf16.mxu0 0
      %1722 = vmatmul.mubr.bf16.gmra.mrb[0].mxu0 %v1438
      %v1723 = vpop.f32.mrb[0].mxu0
      %v1724 = vadd.f32 %v1552, %v1723
      %v1725 = vpop.f32.mrb[0].mxu0
      %v1726 = vpop.f32.mrb[0].mxu0
      %v1727 = vadd.f32 %v1555, %v1726
      %v1728 = vpop.f32.mrb[0].mxu0
      %1729 = vmatprep.mubr.bf16.mxu0 0
      %1730 = vmatmul.mubr.bf16.gmra.mrb[0].mxu0 %v1441
      %v1731 = vpop.f32.mrb[0].mxu0
      %v1732 = vadd.f32 %v1560, %v1731
      %v1733 = vpop.f32.mrb[0].mxu0
      %v1734 = vpop.f32.mrb[0].mxu0
      %v1735 = vadd.f32 %v1563, %v1734
      %v1736 = vpop.f32.mrb[0].mxu0
      %1737 = vmatprep.mubr.bf16.mxu0 0
      %1738 = vmatmul.mubr.bf16.gmra.mrb[0].mxu0 %v1444
      %v1739 = vpop.f32.mrb[0].mxu0
      %v1740 = vadd.f32 %v1568, %v1739
      %v1741 = vpop.f32.mrb[0].mxu0
      %v1742 = vpop.f32.mrb[0].mxu0
      %v1743 = vadd.f32 %v1571, %v1742
      %v1744 = vpop.f32.mrb[0].mxu0
      %1745 = vmatprep.mubr.bf16.mxu0 0
      %1746 = vmatmul.mubr.bf16.gmra.mrb[0].mxu0 %v1447
      %v1747 = vpop.f32.mrb[0].mxu0
      %v1748 = vadd.f32 %v1576, %v1747
      %v1749 = vpop.f32.mrb[0].mxu0
      %v1750 = vpop.f32.mrb[0].mxu0
      %v1751 = vadd.f32 %v1579, %v1750
      %v1752 = vpop.f32.mrb[0].mxu0
      %1753 = vmatprep.mubr.bf16.mxu0 0
      %1754 = vmatmul.mubr.bf16.gmra.mrb[0].mxu0 %v1450
      %v1755 = vpop.f32.mrb[0].mxu0
      %v1756 = vadd.f32 %v1584, %v1755
      %v1757 = vpop.f32.mrb[0].mxu0
      %v1758 = vpop.f32.mrb[0].mxu0
      %v1759 = vadd.f32 %v1587, %v1758
      %v1760 = vpop.f32.mrb[0].mxu0
      %1761 = vmatprep.mubr.bf16.mxu0 0
      %1762 = vmatmul.mubr.bf16.gmra.mrb[0].mxu0 %v1453
      %v1763 = vpop.f32.mrb[0].mxu0
      %v1764 = vadd.f32 %v1592, %v1763
      %v1765 = vpop.f32.mrb[0].mxu0
      %v1766 = vpop.f32.mrb[0].mxu0
      %v1767 = vadd.f32 %v1595, %v1766
      %v1768 = vpop.f32.mrb[0].mxu0
      %1769 = vmatprep.mubr.bf16.mxu0 0
      %1770 = vmatmul.mubr.bf16.gmra.mrb[0].mxu0 %v1456
      %v1771 = vpop.f32.mrb[0].mxu0
      %v1772 = vadd.f32 %v1600, %v1771
      %v1773 = vpop.f32.mrb[0].mxu0
      %v1774 = vpop.f32.mrb[0].mxu0
      %v1775 = vadd.f32 %v1603, %v1774
      %v1776 = vpop.f32.mrb[0].mxu0
      %1777 = vmatprep.mubr.bf16.mxu0 0
      %1778 = vmatmul.mubr.bf16.gmra.mrb[0].mxu0 %v1459
      %v1779 = vpop.f32.mrb[0].mxu0
      %v1780 = vadd.f32 %v1608, %v1779
      %v1781 = vpop.f32.mrb[0].mxu0
      %v1782 = vpop.f32.mrb[0].mxu0
      %v1783 = vadd.f32 %v1611, %v1782
      %v1784 = vpop.f32.mrb[0].mxu0
      %1785 = vmatprep.mubr.bf16.mxu0 0
      %1786 = vmatmul.mubr.bf16.gmra.mrb[0].mxu0 %v1462
      %v1787 = vpop.f32.mrb[0].mxu0
      %v1788 = vadd.f32 %v1616, %v1787
      %v1789 = vpop.f32.mrb[0].mxu0
      %v1790 = vpop.f32.mrb[0].mxu0
      %v1791 = vadd.f32 %v1619, %v1790
      %v1792 = vpop.f32.mrb[0].mxu0
      %1793 = vmatprep.mubr.bf16.mxu0 0
      %1794 = vmatmul.mubr.bf16.gmra.mrb[0].mxu0 %v1465
      %v1795 = vpop.f32.mrb[0].mxu0
      %v1796 = vadd.f32 %v1624, %v1795
      %v1797 = vpop.f32.mrb[0].mxu0
      %v1798 = vpop.f32.mrb[0].mxu0
      %v1799 = vadd.f32 %v1627, %v1798
      %v1800 = vpop.f32.mrb[0].mxu0
      %1801 = vmatprep.mubr.bf16.mxu0 0
      %1802 = vmatmul.mubr.bf16.gmra.mrb[0].mxu0 %v1468
      %v1803 = vpop.f32.mrb[0].mxu0
      %v1804 = vadd.f32 %v1632, %v1803
      %v1805 = vpop.f32.mrb[0].mxu0
      %v1806 = vpop.f32.mrb[0].mxu0
      %v1807 = vadd.f32 %v1635, %v1806
      %v1808 = vpop.f32.mrb[0].mxu0
      %1809 = vdwg.mxu0
      %v1810 = vld [vmem:[#allocation2 + $0x10] sm:$0xff]
      %v1811 = vld [vmem:[#allocation2 + $0x18] sm:$0xff]
      %v1812 = vld [vmem:[#allocation2 + $0x20] sm:$0xff]
      %v1813 = vld [vmem:[#allocation2 + $0x28] sm:$0xff]
      %v1814 = vld [vmem:[#allocation2 + $0x30] sm:$0xff]
      %v1815 = vld [vmem:[#allocation2 + $0x38] sm:$0xff]
      %v1816 = vld [vmem:[#allocation2 + $0x40] sm:$0xff]
      %v1817 = vld [vmem:[#allocation2 + $0x48] sm:$0xff]
      %v1818 = vld [vmem:[#allocation2 + $0x50] sm:$0xff]
      %v1819 = vld [vmem:[#allocation2 + $0x58] sm:$0xff]
      %v1820 = vld [vmem:[#allocation2 + $0x60] sm:$0xff]
      %v1821 = vld [vmem:[#allocation2 + $0x68] sm:$0xff]
      %v1822 = vld [vmem:[#allocation2 + $0x70] sm:$0xff]
      %v1823 = vld [vmem:[#allocation2 + $0x78] sm:$0xff]
      %v1824 = vld [vmem:[#allocation2 + $0x80] sm:$0xff]
      %v1825 = vld [vmem:[#allocation2 + $0x88] sm:$0xff]
      %s1826 = scalar_lea.vmem %s1, 16
      %v1827 = vld [vmem:[%s1826] sm:$0xf]
      %v1828 = vld [vmem:[%s1826 + $0x4] sm:$0x3]
      %v1831 = vunpack.c.l.b16 %v1827
      %v1832 = vunpack.c.l.b16 %v1828
      %v1833 = vpack.c.b16 %v1832, %v1831
      %v1835 = vsel %vm798, %v1810, 0
      %v1838 = vsel %vm798, %v1811, 0
      %v1841 = vsel %vm798, %v1812, 0
      %v1844 = vsel %vm798, %v1813, 0
      %v1847 = vsel %vm798, %v1814, 0
      %v1850 = vsel %vm798, %v1815, 0
      %v1853 = vsel %vm798, %v1816, 0
      %v1856 = vsel %vm798, %v1817, 0
      %v1859 = vsel %vm798, %v1818, 0
      %v1862 = vsel %vm798, %v1819, 0
      %v1865 = vsel %vm798, %v1820, 0
      %v1868 = vsel %vm798, %v1821, 0
      %v1871 = vsel %vm798, %v1822, 0
      %v1874 = vsel %vm798, %v1823, 0
      %v1877 = vsel %vm798, %v1824, 0
      %v1880 = vsel %vm798, %v1825, 0
      %v1883 = vsel %vm1473, %v1833, 0
      %1885 = vmatprep.subr.bf16.mxu0 0
      %1886 = vmatpush1.bf16.msra.mxu0 %v1883
      %1887 = vmatprep.subr.bf16.mxu0 0
      %1888 = vmatpush1.bf16.msra.mxu0 0
      %1889 = vmatprep.subr.bf16.mxu0 0
      %1890 = vmatpush1.bf16.msra.mxu0 0
      %1891 = vmatprep.subr.bf16.mxu0 0
      %1892 = vmatpush1.bf16.msra.mxu0 0
      %1893 = vmatprep.subr.bf16.mxu0 0
      %1894 = vmatpush1.bf16.msra.mxu0 0
      %1895 = vmatprep.subr.bf16.mxu0 0
      %1896 = vmatpush1.bf16.msra.mxu0 0
      %1897 = vmatprep.subr.bf16.mxu0 0
      %1898 = vmatpush1.bf16.msra.mxu0 0
      %1899 = vmatprep.subr.bf16.mxu0 0
      %1900 = vmatpush1.bf16.msra.mxu0 0
      %1901 = vmatprep.subr.bf16.mxu0 0
      %1902 = vmatpush1.bf16.msra.mxu0 0
      %1903 = vmatprep.subr.bf16.mxu0 0
      %1904 = vmatpush1.bf16.msra.mxu0 0
      %1905 = vmatprep.subr.bf16.mxu0 0
      %1906 = vmatpush1.bf16.msra.mxu0 0
      %1907 = vmatprep.subr.bf16.mxu0 0
      %1908 = vmatpush1.bf16.msra.mxu0 0
      %1909 = vmatprep.subr.bf16.mxu0 0
      %1910 = vmatpush1.bf16.msra.mxu0 0
      %1911 = vmatprep.subr.bf16.mxu0 0
      %1912 = vmatpush1.bf16.msra.mxu0 0
      %1913 = vmatprep.subr.bf16.mxu0 0
      %1914 = vmatpush1.bf16.msra.mxu0 0
      %1915 = vmatprep.subr.bf16.mxu0 0
      %1916 = vmatpush1.bf16.msra.mxu0 0
      %1917 = vmatprep.mubr.bf16.mxu0 0
      %1918 = vmatmul.mubr.bf16.gmra.mrb[0].mxu0 %v1835
      %v1919 = vpop.f32.mrb[0].mxu0
      %v1920 = vadd.f32 0.0, %v1919
      %v1921 = vpop.f32.mrb[0].mxu0
      %v1922 = vpop.f32.mrb[0].mxu0
      %v1923 = vadd.f32 0.0, %v1922
      %v1924 = vpop.f32.mrb[0].mxu0
      %1925 = vmatprep.mubr.bf16.mxu0 0
      %1926 = vmatmul.mubr.bf16.gmra.mrb[0].mxu0 %v1838
      %v1927 = vpop.f32.mrb[0].mxu0
      %v1928 = vadd.f32 0.0, %v1927
      %v1929 = vpop.f32.mrb[0].mxu0
      %v1930 = vpop.f32.mrb[0].mxu0
      %v1931 = vadd.f32 0.0, %v1930
      %v1932 = vpop.f32.mrb[0].mxu0
      %1933 = vmatprep.mubr.bf16.mxu0 0
      %1934 = vmatmul.mubr.bf16.gmra.mrb[0].mxu0 %v1841
      %v1935 = vpop.f32.mrb[0].mxu0
      %v1936 = vadd.f32 0.0, %v1935
      %v1937 = vpop.f32.mrb[0].mxu0
      %v1938 = vpop.f32.mrb[0].mxu0
      %v1939 = vadd.f32 0.0, %v1938
      %v1940 = vpop.f32.mrb[0].mxu0
      %1941 = vmatprep.mubr.bf16.mxu0 0
      %1942 = vmatmul.mubr.bf16.gmra.mrb[0].mxu0 %v1844
      %v1943 = vpop.f32.mrb[0].mxu0
      %v1944 = vadd.f32 0.0, %v1943
      %v1945 = vpop.f32.mrb[0].mxu0
      %v1946 = vpop.f32.mrb[0].mxu0
      %v1947 = vadd.f32 0.0, %v1946
      %v1948 = vpop.f32.mrb[0].mxu0
      %1949 = vmatprep.mubr.bf16.mxu0 0
      %1950 = vmatmul.mubr.bf16.gmra.mrb[0].mxu0 %v1847
      %v1951 = vpop.f32.mrb[0].mxu0
      %v1952 = vadd.f32 0.0, %v1951
      %v1953 = vpop.f32.mrb[0].mxu0
      %v1954 = vpop.f32.mrb[0].mxu0
      %v1955 = vadd.f32 0.0, %v1954
      %v1956 = vpop.f32.mrb[0].mxu0
      %1957 = vmatprep.mubr.bf16.mxu0 0
      %1958 = vmatmul.mubr.bf16.gmra.mrb[0].mxu0 %v1850
      %v1959 = vpop.f32.mrb[0].mxu0
      %v1960 = vadd.f32 0.0, %v1959
      %v1961 = vpop.f32.mrb[0].mxu0
      %v1962 = vpop.f32.mrb[0].mxu0
      %v1963 = vadd.f32 0.0, %v1962
      %v1964 = vpop.f32.mrb[0].mxu0
      %1965 = vmatprep.mubr.bf16.mxu0 0
      %1966 = vmatmul.mubr.bf16.gmra.mrb[0].mxu0 %v1853
      %v1967 = vpop.f32.mrb[0].mxu0
      %v1968 = vadd.f32 0.0, %v1967
      %v1969 = vpop.f32.mrb[0].mxu0
      %v1970 = vpop.f32.mrb[0].mxu0
      %v1971 = vadd.f32 0.0, %v1970
      %v1972 = vpop.f32.mrb[0].mxu0
      %1973 = vmatprep.mubr.bf16.mxu0 0
      %1974 = vmatmul.mubr.bf16.gmra.mrb[0].mxu0 %v1856
      %v1975 = vpop.f32.mrb[0].mxu0
      %v1976 = vadd.f32 0.0, %v1975
      %v1977 = vpop.f32.mrb[0].mxu0
      %v1978 = vpop.f32.mrb[0].mxu0
      %v1979 = vadd.f32 0.0, %v1978
      %v1980 = vpop.f32.mrb[0].mxu0
      %1981 = vmatprep.mubr.bf16.mxu0 0
      %1982 = vmatmul.mubr.bf16.gmra.mrb[0].mxu0 %v1859
      %v1983 = vpop.f32.mrb[0].mxu0
      %v1984 = vadd.f32 0.0, %v1983
      %v1985 = vpop.f32.mrb[0].mxu0
      %v1986 = vpop.f32.mrb[0].mxu0
      %v1987 = vadd.f32 0.0, %v1986
      %v1988 = vpop.f32.mrb[0].mxu0
      %1989 = vmatprep.mubr.bf16.mxu0 0
      %1990 = vmatmul.mubr.bf16.gmra.mrb[0].mxu0 %v1862
      %v1991 = vpop.f32.mrb[0].mxu0
      %v1992 = vadd.f32 0.0, %v1991
      %v1993 = vpop.f32.mrb[0].mxu0
      %v1994 = vpop.f32.mrb[0].mxu0
      %v1995 = vadd.f32 0.0, %v1994
      %v1996 = vpop.f32.mrb[0].mxu0
      %1997 = vmatprep.mubr.bf16.mxu0 0
      %1998 = vmatmul.mubr.bf16.gmra.mrb[0].mxu0 %v1865
      %v1999 = vpop.f32.mrb[0].mxu0
      %v2000 = vadd.f32 0.0, %v1999
      %v2001 = vpop.f32.mrb[0].mxu0
      %v2002 = vpop.f32.mrb[0].mxu0
      %v2003 = vadd.f32 0.0, %v2002
      %v2004 = vpop.f32.mrb[0].mxu0
      %2005 = vmatprep.mubr.bf16.mxu0 0
      %2006 = vmatmul.mubr.bf16.gmra.mrb[0].mxu0 %v1868
      %v2007 = vpop.f32.mrb[0].mxu0
      %v2008 = vadd.f32 0.0, %v2007
      %v2009 = vpop.f32.mrb[0].mxu0
      %v2010 = vpop.f32.mrb[0].mxu0
      %v2011 = vadd.f32 0.0, %v2010
      %v2012 = vpop.f32.mrb[0].mxu0
      %2013 = vmatprep.mubr.bf16.mxu0 0
      %2014 = vmatmul.mubr.bf16.gmra.mrb[0].mxu0 %v1871
      %v2015 = vpop.f32.mrb[0].mxu0
      %v2016 = vadd.f32 0.0, %v2015
      %v2017 = vpop.f32.mrb[0].mxu0
      %v2018 = vpop.f32.mrb[0].mxu0
      %v2019 = vadd.f32 0.0, %v2018
      %v2020 = vpop.f32.mrb[0].mxu0
      %2021 = vmatprep.mubr.bf16.mxu0 0
      %2022 = vmatmul.mubr.bf16.gmra.mrb[0].mxu0 %v1874
      %v2023 = vpop.f32.mrb[0].mxu0
      %v2024 = vadd.f32 0.0, %v2023
      %v2025 = vpop.f32.mrb[0].mxu0
      %v2026 = vpop.f32.mrb[0].mxu0
      %v2027 = vadd.f32 0.0, %v2026
      %v2028 = vpop.f32.mrb[0].mxu0
      %2029 = vmatprep.mubr.bf16.mxu0 0
      %2030 = vmatmul.mubr.bf16.gmra.mrb[0].mxu0 %v1877
      %v2031 = vpop.f32.mrb[0].mxu0
      %v2032 = vadd.f32 0.0, %v2031
      %v2033 = vpop.f32.mrb[0].mxu0
      %v2034 = vpop.f32.mrb[0].mxu0
      %v2035 = vadd.f32 0.0, %v2034
      %v2036 = vpop.f32.mrb[0].mxu0
      %2037 = vmatprep.mubr.bf16.mxu0 0
      %2038 = vmatmul.mubr.bf16.gmra.mrb[0].mxu0 %v1880
      %v2039 = vpop.f32.mrb[0].mxu0
      %v2040 = vadd.f32 0.0, %v2039
      %v2041 = vpop.f32.mrb[0].mxu0
      %v2042 = vpop.f32.mrb[0].mxu0
      %v2043 = vadd.f32 0.0, %v2042
      %v2044 = vpop.f32.mrb[0].mxu0
      %2045 = vdwg.mxu0
      %v2046 = vadd.f32 %v1684, %v1920
      %v2047 = vadd.f32 %v1687, %v1923
      %v2048 = vadd.f32 %v1692, %v1928
      %v2049 = vadd.f32 %v1695, %v1931
      %v2050 = vadd.f32 %v1700, %v1936
      %v2051 = vadd.f32 %v1703, %v1939
      %v2052 = vadd.f32 %v1708, %v1944
      %v2053 = vadd.f32 %v1711, %v1947
      %v2054 = vadd.f32 %v1716, %v1952
      %v2055 = vadd.f32 %v1719, %v1955
      %v2056 = vadd.f32 %v1724, %v1960
      %v2057 = vadd.f32 %v1727, %v1963
      %v2058 = vadd.f32 %v1732, %v1968
      %v2059 = vadd.f32 %v1735, %v1971
      %v2060 = vadd.f32 %v1740, %v1976
      %v2061 = vadd.f32 %v1743, %v1979
      %v2062 = vadd.f32 %v1748, %v1984
      %v2063 = vadd.f32 %v1751, %v1987
      %v2064 = vadd.f32 %v1756, %v1992
      %v2065 = vadd.f32 %v1759, %v1995
      %v2066 = vadd.f32 %v1764, %v2000
      %v2067 = vadd.f32 %v1767, %v2003
      %v2068 = vadd.f32 %v1772, %v2008
      %v2069 = vadd.f32 %v1775, %v2011
      %v2070 = vadd.f32 %v1780, %v2016
      %v2071 = vadd.f32 %v1783, %v2019
      %v2072 = vadd.f32 %v1788, %v2024
      %v2073 = vadd.f32 %v1791, %v2027
      %v2074 = vadd.f32 %v1796, %v2032
      %v2075 = vadd.f32 %v1799, %v2035
      %v2076 = vadd.f32 %v1804, %v2040
      %v2077 = vadd.f32 %v1807, %v2043
      %v2078 = vld [vmem:[%s2] sm:$0x1]
      %v2080 = vlaneseq
      %v2081 = vshrl.u32 %v2080, 7
      %v2082 = vsub.s32 0, %v2081
      %v2083 = vrot.slane %v2078, %v2082
      %v2085 = vadd.f32 %v2046, %v2083
      %v2086 = vadd.f32 %v2047, %v2083
      %v2087 = vadd.f32 %v2048, %v2083
      %v2088 = vadd.f32 %v2049, %v2083
      %v2089 = vadd.f32 %v2050, %v2083
      %v2090 = vadd.f32 %v2051, %v2083
      %v2091 = vadd.f32 %v2052, %v2083
      %v2092 = vadd.f32 %v2053, %v2083
      %v2093 = vadd.f32 %v2054, %v2083
      %v2094 = vadd.f32 %v2055, %v2083
      %v2095 = vadd.f32 %v2056, %v2083
      %v2096 = vadd.f32 %v2057, %v2083
      %v2097 = vadd.f32 %v2058, %v2083
      %v2098 = vadd.f32 %v2059, %v2083
      %v2099 = vadd.f32 %v2060, %v2083
      %v2100 = vadd.f32 %v2061, %v2083
      %v2101 = vadd.f32 %v2062, %v2083
      %v2102 = vadd.f32 %v2063, %v2083
      %v2103 = vadd.f32 %v2064, %v2083
      %v2104 = vadd.f32 %v2065, %v2083
      %v2105 = vadd.f32 %v2066, %v2083
      %v2106 = vadd.f32 %v2067, %v2083
      %v2107 = vadd.f32 %v2068, %v2083
      %v2108 = vadd.f32 %v2069, %v2083
      %v2109 = vadd.f32 %v2070, %v2083
      %v2110 = vadd.f32 %v2071, %v2083
      %v2111 = vadd.f32 %v2072, %v2083
      %v2112 = vadd.f32 %v2073, %v2083
      %v2113 = vadd.f32 %v2074, %v2083
      %v2114 = vadd.f32 %v2075, %v2083
      %v2115 = vadd.f32 %v2076, %v2083
      %v2116 = vadd.f32 %v2077, %v2083
      %v2117 = vxor.u32 %v2085, 2147483648
      %v2118 = vxor.u32 %v2086, 2147483648
      %v2119 = vxor.u32 %v2087, 2147483648
      %v2120 = vxor.u32 %v2088, 2147483648
      %v2121 = vxor.u32 %v2089, 2147483648
      %v2122 = vxor.u32 %v2090, 2147483648
      %v2123 = vxor.u32 %v2091, 2147483648
      %v2124 = vxor.u32 %v2092, 2147483648
      %v2125 = vxor.u32 %v2093, 2147483648
      %v2126 = vxor.u32 %v2094, 2147483648
      %v2127 = vxor.u32 %v2095, 2147483648
      %v2128 = vxor.u32 %v2096, 2147483648
      %v2129 = vxor.u32 %v2097, 2147483648
      %v2130 = vxor.u32 %v2098, 2147483648
      %v2131 = vxor.u32 %v2099, 2147483648
      %v2132 = vxor.u32 %v2100, 2147483648
      %v2133 = vxor.u32 %v2101, 2147483648
      %v2134 = vxor.u32 %v2102, 2147483648
      %v2135 = vxor.u32 %v2103, 2147483648
      %v2136 = vxor.u32 %v2104, 2147483648
      %v2137 = vxor.u32 %v2105, 2147483648
      %v2138 = vxor.u32 %v2106, 2147483648
      %v2139 = vxor.u32 %v2107, 2147483648
      %v2140 = vxor.u32 %v2108, 2147483648
      %v2141 = vxor.u32 %v2109, 2147483648
      %v2142 = vxor.u32 %v2110, 2147483648
      %v2143 = vxor.u32 %v2111, 2147483648
      %v2144 = vxor.u32 %v2112, 2147483648
      %v2145 = vxor.u32 %v2113, 2147483648
      %v2146 = vxor.u32 %v2114, 2147483648
      %v2147 = vxor.u32 %v2115, 2147483648
      %v2148 = vxor.u32 %v2116, 2147483648
      %v2149 = vmul.f32 %v2117, 1.442695
      %v2150 = vpow.pop %v2149
      %v2151 = vmul.f32 %v2118, 1.442695
      %v2152 = vpow.pop %v2151
      %v2153 = vmul.f32 %v2119, 1.442695
      %v2154 = vpow.pop %v2153
      %v2155 = vmul.f32 %v2120, 1.442695
      %v2156 = vpow.pop %v2155
      %v2157 = vmul.f32 %v2121, 1.442695
      %v2158 = vpow.pop %v2157
      %v2159 = vmul.f32 %v2122, 1.442695
      %v2160 = vpow.pop %v2159
      %v2161 = vmul.f32 %v2123, 1.442695
      %v2162 = vpow.pop %v2161
      %v2163 = vmul.f32 %v2124, 1.442695
      %v2164 = vpow.pop %v2163
      %v2165 = vmul.f32 %v2125, 1.442695
      %v2166 = vpow.pop %v2165
      %v2167 = vmul.f32 %v2126, 1.442695
      %v2168 = vpow.pop %v2167
      %v2169 = vmul.f32 %v2127, 1.442695
      %v2170 = vpow.pop %v2169
      %v2171 = vmul.f32 %v2128, 1.442695
      %v2172 = vpow.pop %v2171
      %v2173 = vmul.f32 %v2129, 1.442695
      %v2174 = vpow.pop %v2173
      %v2175 = vmul.f32 %v2130, 1.442695
      %v2176 = vpow.pop %v2175
      %v2177 = vmul.f32 %v2131, 1.442695
      %v2178 = vpow.pop %v2177
      %v2179 = vmul.f32 %v2132, 1.442695
      %v2180 = vpow.pop %v2179
      %v2181 = vmul.f32 %v2133, 1.442695
      %v2182 = vpow.pop %v2181
      %v2183 = vmul.f32 %v2134, 1.442695
      %v2184 = vpow.pop %v2183
      %v2185 = vmul.f32 %v2135, 1.442695
      %v2186 = vpow.pop %v2185
      %v2187 = vmul.f32 %v2136, 1.442695
      %v2188 = vpow.pop %v2187
      %v2189 = vmul.f32 %v2137, 1.442695
      %v2190 = vpow.pop %v2189
      %v2191 = vmul.f32 %v2138, 1.442695
      %v2192 = vpow.pop %v2191
      %v2193 = vmul.f32 %v2139, 1.442695
      %v2194 = vpow.pop %v2193
      %v2195 = vmul.f32 %v2140, 1.442695
      %v2196 = vpow.pop %v2195
      %v2197 = vmul.f32 %v2141, 1.442695
      %v2198 = vpow.pop %v2197
      %v2199 = vmul.f32 %v2142, 1.442695
      %v2200 = vpow.pop %v2199
      %v2201 = vmul.f32 %v2143, 1.442695
      %v2202 = vpow.pop %v2201
      %v2203 = vmul.f32 %v2144, 1.442695
      %v2204 = vpow.pop %v2203
      %v2205 = vmul.f32 %v2145, 1.442695
      %v2206 = vpow.pop %v2205
      %v2207 = vmul.f32 %v2146, 1.442695
      %v2208 = vpow.pop %v2207
      %v2209 = vmul.f32 %v2147, 1.442695
      %v2210 = vpow.pop %v2209
      %v2211 = vmul.f32 %v2148, 1.442695
      %v2212 = vpow.pop %v2211
      %v2213 = vadd.f32 %v2150, 1.0
      %v2214 = vadd.f32 %v2152, 1.0
      %v2215 = vadd.f32 %v2154, 1.0
      %v2216 = vadd.f32 %v2156, 1.0
      %v2217 = vadd.f32 %v2158, 1.0
      %v2218 = vadd.f32 %v2160, 1.0
      %v2219 = vadd.f32 %v2162, 1.0
      %v2220 = vadd.f32 %v2164, 1.0
      %v2221 = vadd.f32 %v2166, 1.0
      %v2222 = vadd.f32 %v2168, 1.0
      %v2223 = vadd.f32 %v2170, 1.0
      %v2224 = vadd.f32 %v2172, 1.0
      %v2225 = vadd.f32 %v2174, 1.0
      %v2226 = vadd.f32 %v2176, 1.0
      %v2227 = vadd.f32 %v2178, 1.0
      %v2228 = vadd.f32 %v2180, 1.0
      %v2229 = vadd.f32 %v2182, 1.0
      %v2230 = vadd.f32 %v2184, 1.0
      %v2231 = vadd.f32 %v2186, 1.0
      %v2232 = vadd.f32 %v2188, 1.0
      %v2233 = vadd.f32 %v2190, 1.0
      %v2234 = vadd.f32 %v2192, 1.0
      %v2235 = vadd.f32 %v2194, 1.0
      %v2236 = vadd.f32 %v2196, 1.0
      %v2237 = vadd.f32 %v2198, 1.0
      %v2238 = vadd.f32 %v2200, 1.0
      %v2239 = vadd.f32 %v2202, 1.0
      %v2240 = vadd.f32 %v2204, 1.0
      %v2241 = vadd.f32 %v2206, 1.0
      %v2242 = vadd.f32 %v2208, 1.0
      %v2243 = vadd.f32 %v2210, 1.0
      %v2244 = vadd.f32 %v2212, 1.0
      %v2245 = vrcp.pop %v2213
      %v2246 = vmul.f32 1.0, %v2245
      %v2247 = vrcp.pop %v2214
      %v2248 = vmul.f32 1.0, %v2247
      %v2249 = vrcp.pop %v2215
      %v2250 = vmul.f32 1.0, %v2249
      %v2251 = vrcp.pop %v2216
      %v2252 = vmul.f32 1.0, %v2251
      %v2253 = vrcp.pop %v2217
      %v2254 = vmul.f32 1.0, %v2253
      %v2255 = vrcp.pop %v2218
      %v2256 = vmul.f32 1.0, %v2255
      %v2257 = vrcp.pop %v2219
      %v2258 = vmul.f32 1.0, %v2257
      %v2259 = vrcp.pop %v2220
      %v2260 = vmul.f32 1.0, %v2259
      %v2261 = vrcp.pop %v2221
      %v2262 = vmul.f32 1.0, %v2261
      %v2263 = vrcp.pop %v2222
      %v2264 = vmul.f32 1.0, %v2263
      %v2265 = vrcp.pop %v2223
      %v2266 = vmul.f32 1.0, %v2265
      %v2267 = vrcp.pop %v2224
      %v2268 = vmul.f32 1.0, %v2267
      %v2269 = vrcp.pop %v2225
      %v2270 = vmul.f32 1.0, %v2269
      %v2271 = vrcp.pop %v2226
      %v2272 = vmul.f32 1.0, %v2271
      %v2273 = vrcp.pop %v2227
      %v2274 = vmul.f32 1.0, %v2273
      %v2275 = vrcp.pop %v2228
      %v2276 = vmul.f32 1.0, %v2275
      %v2277 = vrcp.pop %v2229
      %v2278 = vmul.f32 1.0, %v2277
      %v2279 = vrcp.pop %v2230
      %v2280 = vmul.f32 1.0, %v2279
      %v2281 = vrcp.pop %v2231
      %v2282 = vmul.f32 1.0, %v2281
      %v2283 = vrcp.pop %v2232
      %v2284 = vmul.f32 1.0, %v2283
      %v2285 = vrcp.pop %v2233
      %v2286 = vmul.f32 1.0, %v2285
      %v2287 = vrcp.pop %v2234
      %v2288 = vmul.f32 1.0, %v2287
      %v2289 = vrcp.pop %v2235
      %v2290 = vmul.f32 1.0, %v2289
      %v2291 = vrcp.pop %v2236
      %v2292 = vmul.f32 1.0, %v2291
      %v2293 = vrcp.pop %v2237
      %v2294 = vmul.f32 1.0, %v2293
      %v2295 = vrcp.pop %v2238
      %v2296 = vmul.f32 1.0, %v2295
      %v2297 = vrcp.pop %v2239
      %v2298 = vmul.f32 1.0, %v2297
      %v2299 = vrcp.pop %v2240
      %v2300 = vmul.f32 1.0, %v2299
      %v2301 = vrcp.pop %v2241
      %v2302 = vmul.f32 1.0, %v2301
      %v2303 = vrcp.pop %v2242
      %v2304 = vmul.f32 1.0, %v2303
      %v2305 = vrcp.pop %v2243
      %v2306 = vmul.f32 1.0, %v2305
      %v2307 = vrcp.pop %v2244
      %v2308 = vmul.f32 1.0, %v2307
      %v2309 = vmul.f32 %v2085, %v2246
      %v2310 = vmul.f32 %v2086, %v2248
      %v2311 = vmul.f32 %v2087, %v2250
      %v2312 = vmul.f32 %v2088, %v2252
      %v2313 = vmul.f32 %v2089, %v2254
      %v2314 = vmul.f32 %v2090, %v2256
      %v2315 = vmul.f32 %v2091, %v2258
      %v2316 = vmul.f32 %v2092, %v2260
      %v2317 = vmul.f32 %v2093, %v2262
      %v2318 = vmul.f32 %v2094, %v2264
      %v2319 = vmul.f32 %v2095, %v2266
      %v2320 = vmul.f32 %v2096, %v2268
      %v2321 = vmul.f32 %v2097, %v2270
      %v2322 = vmul.f32 %v2098, %v2272
      %v2323 = vmul.f32 %v2099, %v2274
      %v2324 = vmul.f32 %v2100, %v2276
      %v2325 = vmul.f32 %v2101, %v2278
      %v2326 = vmul.f32 %v2102, %v2280
      %v2327 = vmul.f32 %v2103, %v2282
      %v2328 = vmul.f32 %v2104, %v2284
      %v2329 = vmul.f32 %v2105, %v2286
      %v2330 = vmul.f32 %v2106, %v2288
      %v2331 = vmul.f32 %v2107, %v2290
      %v2332 = vmul.f32 %v2108, %v2292
      %v2333 = vmul.f32 %v2109, %v2294
      %v2334 = vmul.f32 %v2110, %v2296
      %v2335 = vmul.f32 %v2111, %v2298
      %v2336 = vmul.f32 %v2112, %v2300
      %v2337 = vmul.f32 %v2113, %v2302
      %v2338 = vmul.f32 %v2114, %v2304
      %v2339 = vmul.f32 %v2115, %v2306
      %v2340 = vmul.f32 %v2116, %v2308
      %v2341 = vpack.c.bf16 %v2310, %v2309
      %v2342 = vpack.c.bf16 %v2312, %v2311
      %v2343 = vpack.c.bf16 %v2314, %v2313
      %v2344 = vpack.c.bf16 %v2316, %v2315
      %v2345 = vpack.c.bf16 %v2318, %v2317
      %v2346 = vpack.c.bf16 %v2320, %v2319
      %v2347 = vpack.c.bf16 %v2322, %v2321
      %v2348 = vpack.c.bf16 %v2324, %v2323
      %v2349 = vpack.c.bf16 %v2326, %v2325
      %v2350 = vpack.c.bf16 %v2328, %v2327
      %v2351 = vpack.c.bf16 %v2330, %v2329
      %v2352 = vpack.c.bf16 %v2332, %v2331
      %v2353 = vpack.c.bf16 %v2334, %v2333
      %v2354 = vpack.c.bf16 %v2336, %v2335
      %v2355 = vpack.c.bf16 %v2338, %v2337
      %v2356 = vpack.c.bf16 %v2340, %v2339
      %vm2357 = vcmask 195584
      %2358 = vst.msk [vmem:[#allocation3] sm:$0xff] %vm2357, 0
      %2359 = vst.msk [vmem:[#allocation3 + $0x88] sm:$0xff] %vm2357, 0
      %v2360 = vrot.slane %v2309, 7
      %v2361 = vrot.slane %v2310, 7
      %v2362 = vrot.slane %v2311, 7
      %v2363 = vrot.slane %v2312, 7
      %v2364 = vrot.slane %v2313, 7
      %v2365 = vrot.slane %v2314, 7
      %v2366 = vrot.slane %v2315, 7
      %v2367 = vrot.slane %v2316, 7
      %v2368 = vrot.slane %v2317, 7
      %v2369 = vrot.slane %v2318, 7
      %v2370 = vrot.slane %v2319, 7
      %v2371 = vrot.slane %v2320, 7
      %v2372 = vrot.slane %v2321, 7
      %v2373 = vrot.slane %v2322, 7
      %v2374 = vrot.slane %v2323, 7
      %v2375 = vrot.slane %v2324, 7
      %v2376 = vrot.slane %v2325, 7
      %v2377 = vrot.slane %v2326, 7
      %v2378 = vrot.slane %v2327, 7
      %v2379 = vrot.slane %v2328, 7
      %v2380 = vrot.slane %v2329, 7
      %v2381 = vrot.slane %v2330, 7
      %v2382 = vrot.slane %v2331, 7
      %v2383 = vrot.slane %v2332, 7
      %v2384 = vrot.slane %v2333, 7
      %v2385 = vrot.slane %v2334, 7
      %v2386 = vrot.slane %v2335, 7
      %v2387 = vrot.slane %v2336, 7
      %v2388 = vrot.slane %v2337, 7
      %v2389 = vrot.slane %v2338, 7
      %v2390 = vrot.slane %v2339, 7
      %v2391 = vrot.slane %v2340, 7
      %v2392 = vsel %vm833, %v2390, %v2391
      %v2393 = vsel %vm833, %v2389, %v2390
      %v2394 = vsel %vm833, %v2388, %v2389
      %v2395 = vsel %vm833, %v2387, %v2388
      %v2396 = vsel %vm833, %v2386, %v2387
      %v2397 = vsel %vm833, %v2385, %v2386
      %v2398 = vsel %vm833, %v2384, %v2385
      %v2399 = vsel %vm833, %v2383, %v2384
      %v2400 = vsel %vm833, %v2382, %v2383
      %v2401 = vsel %vm833, %v2381, %v2382
      %v2402 = vsel %vm833, %v2380, %v2381
      %v2403 = vsel %vm833, %v2379, %v2380
      %v2404 = vsel %vm833, %v2378, %v2379
      %v2405 = vsel %vm833, %v2377, %v2378
      %v2406 = vsel %vm833, %v2376, %v2377
      %v2407 = vsel %vm833, %v2375, %v2376
      %v2408 = vsel %vm833, %v2374, %v2375
      %v2409 = vsel %vm833, %v2373, %v2374
      %v2410 = vsel %vm833, %v2372, %v2373
      %v2411 = vsel %vm833, %v2371, %v2372
      %v2412 = vsel %vm833, %v2370, %v2371
      %v2413 = vsel %vm833, %v2369, %v2370
      %v2414 = vsel %vm833, %v2368, %v2369
      %v2415 = vsel %vm833, %v2367, %v2368
      %v2416 = vsel %vm833, %v2366, %v2367
      %v2417 = vsel %vm833, %v2365, %v2366
      %v2418 = vsel %vm833, %v2364, %v2365
      %v2419 = vsel %vm833, %v2363, %v2364
      %v2420 = vsel %vm833, %v2362, %v2363
      %v2421 = vsel %vm833, %v2361, %v2362
      %v2422 = vsel %vm833, %v2360, %v2361
      %v2423 = vsel %vm833, %v2391, %v2360
      %v2424 = vsel %vm898, 0.0, %v2423
      %v2425 = vsel %vm899, 0.0, %v2422
      %v2426 = vsel %vm900, 0.0, %v2421
      %v2427 = vsel %vm901, 0.0, %v2420
      %v2428 = vsel %vm902, 0.0, %v2419
      %v2429 = vsel %vm903, 0.0, %v2418
      %v2430 = vsel %vm904, 0.0, %v2417
      %v2431 = vsel %vm905, 0.0, %v2416
      %v2432 = vsel %vm906, 0.0, %v2415
      %v2433 = vsel %vm907, 0.0, %v2414
      %v2434 = vsel %vm908, 0.0, %v2413
      %v2435 = vsel %vm909, 0.0, %v2412
      %v2436 = vsel %vm910, 0.0, %v2411
      %v2437 = vsel %vm911, 0.0, %v2410
      %v2438 = vsel %vm912, 0.0, %v2409
      %v2439 = vsel %vm913, 0.0, %v2408
      %v2440 = vsel %vm914, 0.0, %v2407
      %v2441 = vsel %vm915, 0.0, %v2406
      %v2442 = vsel %vm916, 0.0, %v2405
      %v2443 = vsel %vm917, 0.0, %v2404
      %v2444 = vsel %vm918, 0.0, %v2403
      %v2445 = vsel %vm919, 0.0, %v2402
      %v2446 = vsel %vm920, 0.0, %v2401
      %v2447 = vsel %vm921, 0.0, %v2400
      %v2448 = vsel %vm922, 0.0, %v2399
      %v2449 = vsel %vm923, 0.0, %v2398
      %v2450 = vsel %vm924, 0.0, %v2397
      %v2451 = vsel %vm925, 0.0, %v2396
      %v2452 = vsel %vm926, 0.0, %v2395
      %v2453 = vsel %vm927, 0.0, %v2394
      %v2454 = vsel %vm928, 0.0, %v2393
      %v2455 = vsel %vm929, 0.0, %v2392
      %v2456 = vrot.slane %v2309, 1
      %v2457 = vrot.slane %v2310, 1
      %v2458 = vrot.slane %v2311, 1
      %v2459 = vrot.slane %v2312, 1
      %v2460 = vrot.slane %v2313, 1
      %v2461 = vrot.slane %v2314, 1
      %v2462 = vrot.slane %v2315, 1
      %v2463 = vrot.slane %v2316, 1
      %v2464 = vrot.slane %v2317, 1
      %v2465 = vrot.slane %v2318, 1
      %v2466 = vrot.slane %v2319, 1
      %v2467 = vrot.slane %v2320, 1
      %v2468 = vrot.slane %v2321, 1
      %v2469 = vrot.slane %v2322, 1
      %v2470 = vrot.slane %v2323, 1
      %v2471 = vrot.slane %v2324, 1
      %v2472 = vrot.slane %v2325, 1
      %v2473 = vrot.slane %v2326, 1
      %v2474 = vrot.slane %v2327, 1
      %v2475 = vrot.slane %v2328, 1
      %v2476 = vrot.slane %v2329, 1
      %v2477 = vrot.slane %v2330, 1
      %v2478 = vrot.slane %v2331, 1
      %v2479 = vrot.slane %v2332, 1
      %v2480 = vrot.slane %v2333, 1
      %v2481 = vrot.slane %v2334, 1
      %v2482 = vrot.slane %v2335, 1
      %v2483 = vrot.slane %v2336, 1
      %v2484 = vrot.slane %v2337, 1
      %v2485 = vrot.slane %v2338, 1
      %v2486 = vrot.slane %v2339, 1
      %v2487 = vrot.slane %v2340, 1
      %v2488 = vsel %vm994, %v2486, %v2487
      %v2489 = vsel %vm994, %v2485, %v2486
      %v2490 = vsel %vm994, %v2484, %v2485
      %v2491 = vsel %vm994, %v2483, %v2484
      %v2492 = vsel %vm994, %v2482, %v2483
      %v2493 = vsel %vm994, %v2481, %v2482
      %v2494 = vsel %vm994, %v2480, %v2481
      %v2495 = vsel %vm994, %v2479, %v2480
      %v2496 = vsel %vm994, %v2478, %v2479
      %v2497 = vsel %vm994, %v2477, %v2478
      %v2498 = vsel %vm994, %v2476, %v2477
      %v2499 = vsel %vm994, %v2475, %v2476
      %v2500 = vsel %vm994, %v2474, %v2475
      %v2501 = vsel %vm994, %v2473, %v2474
      %v2502 = vsel %vm994, %v2472, %v2473
      %v2503 = vsel %vm994, %v2471, %v2472
      %v2504 = vsel %vm994, %v2470, %v2471
      %v2505 = vsel %vm994, %v2469, %v2470
      %v2506 = vsel %vm994, %v2468, %v2469
      %v2507 = vsel %vm994, %v2467, %v2468
      %v2508 = vsel %vm994, %v2466, %v2467
      %v2509 = vsel %vm994, %v2465, %v2466
      %v2510 = vsel %vm994, %v2464, %v2465
      %v2511 = vsel %vm994, %v2463, %v2464
      %v2512 = vsel %vm994, %v2462, %v2463
      %v2513 = vsel %vm994, %v2461, %v2462
      %v2514 = vsel %vm994, %v2460, %v2461
      %v2515 = vsel %vm994, %v2459, %v2460
      %v2516 = vsel %vm994, %v2458, %v2459
      %v2517 = vsel %vm994, %v2457, %v2458
      %v2518 = vsel %vm994, %v2456, %v2457
      %v2519 = vsel %vm994, %v2487, %v2456
      %v2520 = vsel %vm1059, 0.0, %v2518
      %v2521 = vsel %vm1060, 0.0, %v2517
      %v2522 = vsel %vm1061, 0.0, %v2516
      %v2523 = vsel %vm1062, 0.0, %v2515
      %v2524 = vsel %vm1063, 0.0, %v2514
      %v2525 = vsel %vm1064, 0.0, %v2513
      %v2526 = vsel %vm1065, 0.0, %v2512
      %v2527 = vsel %vm1066, 0.0, %v2511
      %v2528 = vsel %vm1067, 0.0, %v2510
      %v2529 = vsel %vm1068, 0.0, %v2509
      %v2530 = vsel %vm1069, 0.0, %v2508
      %v2531 = vsel %vm1070, 0.0, %v2507
      %v2532 = vsel %vm1071, 0.0, %v2506
      %v2533 = vsel %vm1072, 0.0, %v2505
      %v2534 = vsel %vm1073, 0.0, %v2504
      %v2535 = vsel %vm1074, 0.0, %v2503
      %v2536 = vsel %vm1075, 0.0, %v2502
      %v2537 = vsel %vm1076, 0.0, %v2501
      %v2538 = vsel %vm1077, 0.0, %v2500
      %v2539 = vsel %vm1078, 0.0, %v2499
      %v2540 = vsel %vm1079, 0.0, %v2498
      %v2541 = vsel %vm1080, 0.0, %v2497
      %v2542 = vsel %vm1081, 0.0, %v2496
      %v2543 = vsel %vm1082, 0.0, %v2495
      %v2544 = vsel %vm1083, 0.0, %v2494
      %v2545 = vsel %vm1084, 0.0, %v2493
      %v2546 = vsel %vm1085, 0.0, %v2492
      %v2547 = vsel %vm1086, 0.0, %v2491
      %v2548 = vsel %vm1087, 0.0, %v2490
      %v2549 = vsel %vm1088, 0.0, %v2489
      %v2550 = vsel %vm1089, 0.0, %v2488
      %v2551 = vsel %vm1090, 0.0, %v2519
      %v2552 = vpack.c.bf16 %v2425, %v2424
      %v2553 = vpack.c.bf16 %v2427, %v2426
      %v2554 = vpack.c.bf16 %v2429, %v2428
      %v2555 = vpack.c.bf16 %v2431, %v2430
      %v2556 = vpack.c.bf16 %v2433, %v2432
      %v2557 = vpack.c.bf16 %v2435, %v2434
      %v2558 = vpack.c.bf16 %v2437, %v2436
      %v2559 = vpack.c.bf16 %v2439, %v2438
      %v2560 = vpack.c.bf16 %v2441, %v2440
      %v2561 = vpack.c.bf16 %v2443, %v2442
      %v2562 = vpack.c.bf16 %v2445, %v2444
      %v2563 = vpack.c.bf16 %v2447, %v2446
      %v2564 = vpack.c.bf16 %v2449, %v2448
      %v2565 = vpack.c.bf16 %v2451, %v2450
      %v2566 = vpack.c.bf16 %v2453, %v2452
      %v2567 = vpack.c.bf16 %v2455, %v2454
      %vm2568 = vcmask 64512
      %2569 = vst.msk [vmem:[#allocation3 + $0x8] sm:$0xff] %vm2568, %v2552
      %2570 = vst.msk [vmem:[#allocation3 + $0x10] sm:$0xff] %vm2568, %v2553
      %2571 = vst.msk [vmem:[#allocation3 + $0x18] sm:$0xff] %vm2568, %v2554
      %2572 = vst.msk [vmem:[#allocation3 + $0x20] sm:$0xff] %vm2568, %v2555
      %2573 = vst.msk [vmem:[#allocation3 + $0x28] sm:$0xff] %vm2568, %v2556
      %2574 = vst.msk [vmem:[#allocation3 + $0x30] sm:$0xff] %vm2568, %v2557
      %2575 = vst.msk [vmem:[#allocation3 + $0x38] sm:$0xff] %vm2568, %v2558
      %2576 = vst.msk [vmem:[#allocation3 + $0x40] sm:$0xff] %vm2568, %v2559
      %2577 = vst.msk [vmem:[#allocation3 + $0x48] sm:$0xff] %vm2568, %v2560
      %2578 = vst.msk [vmem:[#allocation3 + $0x50] sm:$0xff] %vm2568, %v2561
      %2579 = vst.msk [vmem:[#allocation3 + $0x58] sm:$0xff] %vm2568, %v2562
      %2580 = vst.msk [vmem:[#allocation3 + $0x60] sm:$0xff] %vm2568, %v2563
      %2581 = vst.msk [vmem:[#allocation3 + $0x68] sm:$0xff] %vm2568, %v2564
      %2582 = vst.msk [vmem:[#allocation3 + $0x70] sm:$0xff] %vm2568, %v2565
      %2583 = vst.msk [vmem:[#allocation3 + $0x78] sm:$0xff] %vm2568, %v2566
      %2584 = vst.msk [vmem:[#allocation3 + $0x80] sm:$0xff] %vm2568, %v2567
      %2601 = vrot.lane.b32.xlu0 %v2341, 8
      %v2602 = vpop.permute.xlu0 %2601
      %2603 = vrot.lane.b32.xlu0 %v2342, 8
      %v2604 = vpop.permute.xlu0 %2603
      %2605 = vrot.lane.b32.xlu0 %v2343, 8
      %v2606 = vpop.permute.xlu0 %2605
      %2607 = vrot.lane.b32.xlu0 %v2344, 8
      %v2608 = vpop.permute.xlu0 %2607
      %2609 = vrot.lane.b32.xlu0 %v2345, 8
      %v2610 = vpop.permute.xlu0 %2609
      %2611 = vrot.lane.b32.xlu0 %v2346, 8
      %v2612 = vpop.permute.xlu0 %2611
      %2613 = vrot.lane.b32.xlu0 %v2347, 8
      %v2614 = vpop.permute.xlu0 %2613
      %2615 = vrot.lane.b32.xlu0 %v2348, 8
      %v2616 = vpop.permute.xlu0 %2615
      %2617 = vrot.lane.b32.xlu0 %v2349, 8
      %v2618 = vpop.permute.xlu0 %2617
      %2619 = vrot.lane.b32.xlu0 %v2350, 8
      %v2620 = vpop.permute.xlu0 %2619
      %2621 = vrot.lane.b32.xlu0 %v2351, 8
      %v2622 = vpop.permute.xlu0 %2621
      %2623 = vrot.lane.b32.xlu0 %v2352, 8
      %v2624 = vpop.permute.xlu0 %2623
      %2625 = vrot.lane.b32.xlu0 %v2353, 8
      %v2626 = vpop.permute.xlu0 %2625
      %2627 = vrot.lane.b32.xlu0 %v2354, 8
      %v2628 = vpop.permute.xlu0 %2627
      %2629 = vrot.lane.b32.xlu0 %v2355, 8
      %v2630 = vpop.permute.xlu0 %2629
      %2631 = vrot.lane.b32.xlu0 %v2356, 8
      %v2632 = vpop.permute.xlu0 %2631
      %vm2649 = vcmask 130112
      %2650 = vst.msk [vmem:[#allocation3 + $0x8] sm:$0xff] %vm2649, %v2602
      %2651 = vst.msk [vmem:[#allocation3 + $0x10] sm:$0xff] %vm2649, %v2604
      %2652 = vst.msk [vmem:[#allocation3 + $0x18] sm:$0xff] %vm2649, %v2606
      %2653 = vst.msk [vmem:[#allocation3 + $0x20] sm:$0xff] %vm2649, %v2608
      %2654 = vst.msk [vmem:[#allocation3 + $0x28] sm:$0xff] %vm2649, %v2610
      %2655 = vst.msk [vmem:[#allocation3 + $0x30] sm:$0xff] %vm2649, %v2612
      %2656 = vst.msk [vmem:[#allocation3 + $0x38] sm:$0xff] %vm2649, %v2614
      %2657 = vst.msk [vmem:[#allocation3 + $0x40] sm:$0xff] %vm2649, %v2616
      %2658 = vst.msk [vmem:[#allocation3 + $0x48] sm:$0xff] %vm2649, %v2618
      %2659 = vst.msk [vmem:[#allocation3 + $0x50] sm:$0xff] %vm2649, %v2620
      %2660 = vst.msk [vmem:[#allocation3 + $0x58] sm:$0xff] %vm2649, %v2622
      %2661 = vst.msk [vmem:[#allocation3 + $0x60] sm:$0xff] %vm2649, %v2624
      %2662 = vst.msk [vmem:[#allocation3 + $0x68] sm:$0xff] %vm2649, %v2626
      %2663 = vst.msk [vmem:[#allocation3 + $0x70] sm:$0xff] %vm2649, %v2628
      %2664 = vst.msk [vmem:[#allocation3 + $0x78] sm:$0xff] %vm2649, %v2630
      %2665 = vst.msk [vmem:[#allocation3 + $0x80] sm:$0xff] %vm2649, %v2632
      %v2666 = vpack.c.bf16 %v2521, %v2520
      %v2667 = vpack.c.bf16 %v2523, %v2522
      %v2668 = vpack.c.bf16 %v2525, %v2524
      %v2669 = vpack.c.bf16 %v2527, %v2526
      %v2670 = vpack.c.bf16 %v2529, %v2528
      %v2671 = vpack.c.bf16 %v2531, %v2530
      %v2672 = vpack.c.bf16 %v2533, %v2532
      %v2673 = vpack.c.bf16 %v2535, %v2534
      %v2674 = vpack.c.bf16 %v2537, %v2536
      %v2675 = vpack.c.bf16 %v2539, %v2538
      %v2676 = vpack.c.bf16 %v2541, %v2540
      %v2677 = vpack.c.bf16 %v2543, %v2542
      %v2678 = vpack.c.bf16 %v2545, %v2544
      %v2679 = vpack.c.bf16 %v2547, %v2546
      %v2680 = vpack.c.bf16 %v2549, %v2548
      %v2681 = vpack.c.bf16 %v2551, %v2550
      %2698 = vrot.lane.b32.xlu0 %v2666, 16
      %v2699 = vpop.permute.xlu0 %2698
      %2700 = vrot.lane.b32.xlu0 %v2667, 16
      %v2701 = vpop.permute.xlu0 %2700
      %2702 = vrot.lane.b32.xlu0 %v2668, 16
      %v2703 = vpop.permute.xlu0 %2702
      %2704 = vrot.lane.b32.xlu0 %v2669, 16
      %v2705 = vpop.permute.xlu0 %2704
      %2706 = vrot.lane.b32.xlu0 %v2670, 16
      %v2707 = vpop.permute.xlu0 %2706
      %2708 = vrot.lane.b32.xlu0 %v2671, 16
      %v2709 = vpop.permute.xlu0 %2708
      %2710 = vrot.lane.b32.xlu0 %v2672, 16
      %v2711 = vpop.permute.xlu0 %2710
      %2712 = vrot.lane.b32.xlu0 %v2673, 16
      %v2713 = vpop.permute.xlu0 %2712
      %2714 = vrot.lane.b32.xlu0 %v2674, 16
      %v2715 = vpop.permute.xlu0 %2714
      %2716 = vrot.lane.b32.xlu0 %v2675, 16
      %v2717 = vpop.permute.xlu0 %2716
      %2718 = vrot.lane.b32.xlu0 %v2676, 16
      %v2719 = vpop.permute.xlu0 %2718
      %2720 = vrot.lane.b32.xlu0 %v2677, 16
      %v2721 = vpop.permute.xlu0 %2720
      %2722 = vrot.lane.b32.xlu0 %v2678, 16
      %v2723 = vpop.permute.xlu0 %2722
      %2724 = vrot.lane.b32.xlu0 %v2679, 16
      %v2725 = vpop.permute.xlu0 %2724
      %2726 = vrot.lane.b32.xlu0 %v2680, 16
      %v2727 = vpop.permute.xlu0 %2726
      %2728 = vrot.lane.b32.xlu0 %v2681, 16
      %v2729 = vpop.permute.xlu0 %2728
      %vm2746 = vcmask 195712
      %2747 = vst.msk [vmem:[#allocation3 + $0x8] sm:$0xff] %vm2746, %v2699
      %2748 = vst.msk [vmem:[#allocation3 + $0x10] sm:$0xff] %vm2746, %v2701
      %2749 = vst.msk [vmem:[#allocation3 + $0x18] sm:$0xff] %vm2746, %v2703
      %2750 = vst.msk [vmem:[#allocation3 + $0x20] sm:$0xff] %vm2746, %v2705
      %2751 = vst.msk [vmem:[#allocation3 + $0x28] sm:$0xff] %vm2746, %v2707
      %2752 = vst.msk [vmem:[#allocation3 + $0x30] sm:$0xff] %vm2746, %v2709
      %2753 = vst.msk [vmem:[#allocation3 + $0x38] sm:$0xff] %vm2746, %v2711
      %2754 = vst.msk [vmem:[#allocation3 + $0x40] sm:$0xff] %vm2746, %v2713
      %2755 = vst.msk [vmem:[#allocation3 + $0x48] sm:$0xff] %vm2746, %v2715
      %2756 = vst.msk [vmem:[#allocation3 + $0x50] sm:$0xff] %vm2746, %v2717
      %2757 = vst.msk [vmem:[#allocation3 + $0x58] sm:$0xff] %vm2746, %v2719
      %2758 = vst.msk [vmem:[#allocation3 + $0x60] sm:$0xff] %vm2746, %v2721
      %2759 = vst.msk [vmem:[#allocation3 + $0x68] sm:$0xff] %vm2746, %v2723
      %2760 = vst.msk [vmem:[#allocation3 + $0x70] sm:$0xff] %vm2746, %v2725
      %2761 = vst.msk [vmem:[#allocation3 + $0x78] sm:$0xff] %vm2746, %v2727
      %2762 = vst.msk [vmem:[#allocation3 + $0x80] sm:$0xff] %vm2746, %v2729
      %v2763 = vld [vmem:[#allocation3] sm:$0xff]
      %v2764 = vld [vmem:[#allocation3 + $0x8] sm:$0xff]
      %v2765 = vld [vmem:[#allocation3 + $0x10] sm:$0xff]
      %v2766 = vld [vmem:[#allocation3 + $0x18] sm:$0xff]
      %v2767 = vld [vmem:[#allocation3 + $0x20] sm:$0xff]
      %v2768 = vld [vmem:[#allocation3 + $0x28] sm:$0xff]
      %v2769 = vld [vmem:[#allocation3 + $0x30] sm:$0xff]
      %v2770 = vld [vmem:[#allocation3 + $0x38] sm:$0xff]
      %v2771 = vld [vmem:[#allocation3 + $0x40] sm:$0xff]
      %v2772 = vld [vmem:[#allocation3 + $0x48] sm:$0xff]
      %v2773 = vld [vmem:[#allocation3 + $0x50] sm:$0xff]
      %v2774 = vld [vmem:[#allocation3 + $0x58] sm:$0xff]
      %v2775 = vld [vmem:[#allocation3 + $0x60] sm:$0xff]
      %v2776 = vld [vmem:[#allocation3 + $0x68] sm:$0xff]
      %v2777 = vld [vmem:[#allocation3 + $0x70] sm:$0xff]
      %v2778 = vld [vmem:[#allocation3 + $0x78] sm:$0xff]
      %v2779 = vld [vmem:[%s3] sm:$0xf]
      %v2780 = vld [vmem:[%s3 + $0x4] sm:$0xf]
      %v2781 = vld [vmem:[%s3 + $0x8] sm:$0xf]
      %v2782 = vld [vmem:[#allocation3 + $0x80] sm:$0xff]
      %s2783 = scalar_lea.vmem %s3, 12
      %v2784 = vld [vmem:[%s2783] sm:$0xf]
      %v2785 = vld [vmem:[%s2783 + $0x4] sm:$0xf]
      %v2786 = vld [vmem:[%s2783 + $0x8] sm:$0xf]
      %v2790 = vunpack.c.l.b16 %v2784
      %v2791 = vunpack.c.l.b16 %v2785
      %v2792 = vunpack.c.l.b16 %v2786
      %v2793 = vpack.c.b16 %v2791, %v2790
      %v2794 = vpack.c.b16 %v2792, %v2792
      %v2797 = vsel %vm2357, %v2764, 0
      %v2800 = vsel %vm2357, %v2765, 0
      %v2803 = vsel %vm2357, %v2766, 0
      %v2806 = vsel %vm2357, %v2767, 0
      %v2809 = vsel %vm2357, %v2768, 0
      %v2812 = vsel %vm2357, %v2769, 0
      %v2815 = vsel %vm2357, %v2770, 0
      %v2818 = vsel %vm2357, %v2771, 0
      %v2821 = vsel %vm2357, %v2772, 0
      %v2824 = vsel %vm2357, %v2773, 0
      %v2827 = vsel %vm2357, %v2774, 0
      %v2830 = vsel %vm2357, %v2775, 0
      %v2833 = vsel %vm2357, %v2776, 0
      %v2836 = vsel %vm2357, %v2777, 0
      %v2839 = vsel %vm2357, %v2778, 0
      %v2842 = vsel %vm2357, %v2782, 0
      %vm2844 = vcmask 1043456
      %v2846 = vsel %vm2844, %v2794, 0
      %2848 = vmatprep.subr.bf16.mxu0 0
      %2849 = vmatpush1.bf16.msra.mxu0 %v2793
      %2850 = vmatprep.subr.bf16.mxu0 0
      %2851 = vmatpush1.bf16.msra.mxu0 %v2846
      %2852 = vmatprep.subr.bf16.mxu0 0
      %2853 = vmatpush1.bf16.msra.mxu0 0
      %2854 = vmatprep.subr.bf16.mxu0 0
      %2855 = vmatpush1.bf16.msra.mxu0 0
      %2856 = vmatprep.subr.bf16.mxu0 0
      %2857 = vmatpush1.bf16.msra.mxu0 0
      %2858 = vmatprep.subr.bf16.mxu0 0
      %2859 = vmatpush1.bf16.msra.mxu0 0
      %2860 = vmatprep.subr.bf16.mxu0 0
      %2861 = vmatpush1.bf16.msra.mxu0 0
      %2862 = vmatprep.subr.bf16.mxu0 0
      %2863 = vmatpush1.bf16.msra.mxu0 0
      %2864 = vmatprep.subr.bf16.mxu0 0
      %2865 = vmatpush1.bf16.msra.mxu0 0
      %2866 = vmatprep.subr.bf16.mxu0 0
      %2867 = vmatpush1.bf16.msra.mxu0 0
      %2868 = vmatprep.subr.bf16.mxu0 0
      %2869 = vmatpush1.bf16.msra.mxu0 0
      %2870 = vmatprep.subr.bf16.mxu0 0
      %2871 = vmatpush1.bf16.msra.mxu0 0
      %2872 = vmatprep.subr.bf16.mxu0 0
      %2873 = vmatpush1.bf16.msra.mxu0 0
      %2874 = vmatprep.subr.bf16.mxu0 0
      %2875 = vmatpush1.bf16.msra.mxu0 0
      %2876 = vmatprep.subr.bf16.mxu0 0
      %2877 = vmatpush1.bf16.msra.mxu0 0
      %2878 = vmatprep.subr.bf16.mxu0 0
      %2879 = vmatpush1.bf16.msra.mxu0 0
      %2880 = vmatprep.mubr.bf16.mxu0 0
      %2881 = vmatmul.mubr.bf16.gmra.mrb[0].mxu0 %v2797
      %v2882 = vpop.f32.mrb[0].mxu0
      %v2883 = vadd.f32 0.0, %v2882
      %v2884 = vpop.f32.mrb[0].mxu0
      %v2885 = vpop.f32.mrb[0].mxu0
      %v2886 = vadd.f32 0.0, %v2885
      %v2887 = vpop.f32.mrb[0].mxu0
      %2888 = vmatprep.mubr.bf16.mxu0 0
      %2889 = vmatmul.mubr.bf16.gmra.mrb[0].mxu0 %v2800
      %v2890 = vpop.f32.mrb[0].mxu0
      %v2891 = vadd.f32 0.0, %v2890
      %v2892 = vpop.f32.mrb[0].mxu0
      %v2893 = vpop.f32.mrb[0].mxu0
      %v2894 = vadd.f32 0.0, %v2893
      %v2895 = vpop.f32.mrb[0].mxu0
      %2896 = vmatprep.mubr.bf16.mxu0 0
      %2897 = vmatmul.mubr.bf16.gmra.mrb[0].mxu0 %v2803
      %v2898 = vpop.f32.mrb[0].mxu0
      %v2899 = vadd.f32 0.0, %v2898
      %v2900 = vpop.f32.mrb[0].mxu0
      %v2901 = vpop.f32.mrb[0].mxu0
      %v2902 = vadd.f32 0.0, %v2901
      %v2903 = vpop.f32.mrb[0].mxu0
      %2904 = vmatprep.mubr.bf16.mxu0 0
      %2905 = vmatmul.mubr.bf16.gmra.mrb[0].mxu0 %v2806
      %v2906 = vpop.f32.mrb[0].mxu0
      %v2907 = vadd.f32 0.0, %v2906
      %v2908 = vpop.f32.mrb[0].mxu0
      %v2909 = vpop.f32.mrb[0].mxu0
      %v2910 = vadd.f32 0.0, %v2909
      %v2911 = vpop.f32.mrb[0].mxu0
      %2912 = vmatprep.mubr.bf16.mxu0 0
      %2913 = vmatmul.mubr.bf16.gmra.mrb[0].mxu0 %v2809
      %v2914 = vpop.f32.mrb[0].mxu0
      %v2915 = vadd.f32 0.0, %v2914
      %v2916 = vpop.f32.mrb[0].mxu0
      %v2917 = vpop.f32.mrb[0].mxu0
      %v2918 = vadd.f32 0.0, %v2917
      %v2919 = vpop.f32.mrb[0].mxu0
      %2920 = vmatprep.mubr.bf16.mxu0 0
      %2921 = vmatmul.mubr.bf16.gmra.mrb[0].mxu0 %v2812
      %v2922 = vpop.f32.mrb[0].mxu0
      %v2923 = vadd.f32 0.0, %v2922
      %v2924 = vpop.f32.mrb[0].mxu0
      %v2925 = vpop.f32.mrb[0].mxu0
      %v2926 = vadd.f32 0.0, %v2925
      %v2927 = vpop.f32.mrb[0].mxu0
      %2928 = vmatprep.mubr.bf16.mxu0 0
      %2929 = vmatmul.mubr.bf16.gmra.mrb[0].mxu0 %v2815
      %v2930 = vpop.f32.mrb[0].mxu0
      %v2931 = vadd.f32 0.0, %v2930
      %v2932 = vpop.f32.mrb[0].mxu0
      %v2933 = vpop.f32.mrb[0].mxu0
      %v2934 = vadd.f32 0.0, %v2933
      %v2935 = vpop.f32.mrb[0].mxu0
      %2936 = vmatprep.mubr.bf16.mxu0 0
      %2937 = vmatmul.mubr.bf16.gmra.mrb[0].mxu0 %v2818
      %v2938 = vpop.f32.mrb[0].mxu0
      %v2939 = vadd.f32 0.0, %v2938
      %v2940 = vpop.f32.mrb[0].mxu0
      %v2941 = vpop.f32.mrb[0].mxu0
      %v2942 = vadd.f32 0.0, %v2941
      %v2943 = vpop.f32.mrb[0].mxu0
      %2944 = vmatprep.mubr.bf16.mxu0 0
      %2945 = vmatmul.mubr.bf16.gmra.mrb[0].mxu0 %v2821
      %v2946 = vpop.f32.mrb[0].mxu0
      %v2947 = vadd.f32 0.0, %v2946
      %v2948 = vpop.f32.mrb[0].mxu0
      %v2949 = vpop.f32.mrb[0].mxu0
      %v2950 = vadd.f32 0.0, %v2949
      %v2951 = vpop.f32.mrb[0].mxu0
      %2952 = vmatprep.mubr.bf16.mxu0 0
      %2953 = vmatmul.mubr.bf16.gmra.mrb[0].mxu0 %v2824
      %v2954 = vpop.f32.mrb[0].mxu0
      %v2955 = vadd.f32 0.0, %v2954
      %v2956 = vpop.f32.mrb[0].mxu0
      %v2957 = vpop.f32.mrb[0].mxu0
      %v2958 = vadd.f32 0.0, %v2957
      %v2959 = vpop.f32.mrb[0].mxu0
      %2960 = vmatprep.mubr.bf16.mxu0 0
      %2961 = vmatmul.mubr.bf16.gmra.mrb[0].mxu0 %v2827
      %v2962 = vpop.f32.mrb[0].mxu0
      %v2963 = vadd.f32 0.0, %v2962
      %v2964 = vpop.f32.mrb[0].mxu0
      %v2965 = vpop.f32.mrb[0].mxu0
      %v2966 = vadd.f32 0.0, %v2965
      %v2967 = vpop.f32.mrb[0].mxu0
      %2968 = vmatprep.mubr.bf16.mxu0 0
      %2969 = vmatmul.mubr.bf16.gmra.mrb[0].mxu0 %v2830
      %v2970 = vpop.f32.mrb[0].mxu0
      %v2971 = vadd.f32 0.0, %v2970
      %v2972 = vpop.f32.mrb[0].mxu0
      %v2973 = vpop.f32.mrb[0].mxu0
      %v2974 = vadd.f32 0.0, %v2973
      %v2975 = vpop.f32.mrb[0].mxu0
      %2976 = vmatprep.mubr.bf16.mxu0 0
      %2977 = vmatmul.mubr.bf16.gmra.mrb[0].mxu0 %v2833
      %v2978 = vpop.f32.mrb[0].mxu0
      %v2979 = vadd.f32 0.0, %v2978
      %v2980 = vpop.f32.mrb[0].mxu0
      %v2981 = vpop.f32.mrb[0].mxu0
      %v2982 = vadd.f32 0.0, %v2981
      %v2983 = vpop.f32.mrb[0].mxu0
      %2984 = vmatprep.mubr.bf16.mxu0 0
      %2985 = vmatmul.mubr.bf16.gmra.mrb[0].mxu0 %v2836
      %v2986 = vpop.f32.mrb[0].mxu0
      %v2987 = vadd.f32 0.0, %v2986
      %v2988 = vpop.f32.mrb[0].mxu0
      %v2989 = vpop.f32.mrb[0].mxu0
      %v2990 = vadd.f32 0.0, %v2989
      %v2991 = vpop.f32.mrb[0].mxu0
      %2992 = vmatprep.mubr.bf16.mxu0 0
      %2993 = vmatmul.mubr.bf16.gmra.mrb[0].mxu0 %v2839
      %v2994 = vpop.f32.mrb[0].mxu0
      %v2995 = vadd.f32 0.0, %v2994
      %v2996 = vpop.f32.mrb[0].mxu0
      %v2997 = vpop.f32.mrb[0].mxu0
      %v2998 = vadd.f32 0.0, %v2997
      %v2999 = vpop.f32.mrb[0].mxu0
      %3000 = vmatprep.mubr.bf16.mxu0 0
      %3001 = vmatmul.mubr.bf16.gmra.mrb[0].mxu0 %v2842
      %v3002 = vpop.f32.mrb[0].mxu0
      %v3003 = vadd.f32 0.0, %v3002
      %v3004 = vpop.f32.mrb[0].mxu0
      %v3005 = vpop.f32.mrb[0].mxu0
      %v3006 = vadd.f32 0.0, %v3005
      %v3007 = vpop.f32.mrb[0].mxu0
      %3008 = vdwg.mxu0
      %v3012 = vunpack.c.l.b16 %v2779
      %v3013 = vunpack.c.l.b16 %v2780
      %v3014 = vunpack.c.l.b16 %v2781
      %v3015 = vpack.c.b16 %v3013, %v3012
      %v3016 = vpack.c.b16 %v3014, %v3014
      %v3019 = vsel %vm2357, %v2763, 0
      %v3022 = vsel %vm2844, %v3016, 0
      %3024 = vmatprep.subr.bf16.mxu0 0
      %3025 = vmatpush1.bf16.msra.mxu0 %v3015
      %3026 = vmatprep.subr.bf16.mxu0 0
      %3027 = vmatpush1.bf16.msra.mxu0 %v3022
      %3028 = vmatprep.subr.bf16.mxu0 0
      %3029 = vmatpush1.bf16.msra.mxu0 0
      %3030 = vmatprep.subr.bf16.mxu0 0
      %3031 = vmatpush1.bf16.msra.mxu0 0
      %3032 = vmatprep.subr.bf16.mxu0 0
      %3033 = vmatpush1.bf16.msra.mxu0 0
      %3034 = vmatprep.subr.bf16.mxu0 0
      %3035 = vmatpush1.bf16.msra.mxu0 0
      %3036 = vmatprep.subr.bf16.mxu0 0
      %3037 = vmatpush1.bf16.msra.mxu0 0
      %3038 = vmatprep.subr.bf16.mxu0 0
      %3039 = vmatpush1.bf16.msra.mxu0 0
      %3040 = vmatprep.subr.bf16.mxu0 0
      %3041 = vmatpush1.bf16.msra.mxu0 0
      %3042 = vmatprep.subr.bf16.mxu0 0
      %3043 = vmatpush1.bf16.msra.mxu0 0
      %3044 = vmatprep.subr.bf16.mxu0 0
      %3045 = vmatpush1.bf16.msra.mxu0 0
      %3046 = vmatprep.subr.bf16.mxu0 0
      %3047 = vmatpush1.bf16.msra.mxu0 0
      %3048 = vmatprep.subr.bf16.mxu0 0
      %3049 = vmatpush1.bf16.msra.mxu0 0
      %3050 = vmatprep.subr.bf16.mxu0 0
      %3051 = vmatpush1.bf16.msra.mxu0 0
      %3052 = vmatprep.subr.bf16.mxu0 0
      %3053 = vmatpush1.bf16.msra.mxu0 0
      %3054 = vmatprep.subr.bf16.mxu0 0
      %3055 = vmatpush1.bf16.msra.mxu0 0
      %3056 = vmatprep.mubr.bf16.mxu0 0
      %3057 = vmatmul.mubr.bf16.gmra.mrb[0].mxu0 %v3019
      %v3058 = vpop.f32.mrb[0].mxu0
      %v3059 = vadd.f32 %v2883, %v3058
      %v3060 = vpop.f32.mrb[0].mxu0
      %v3061 = vpop.f32.mrb[0].mxu0
      %v3062 = vadd.f32 %v2886, %v3061
      %v3063 = vpop.f32.mrb[0].mxu0
      %3064 = vmatprep.mubr.bf16.mxu0 0
      %3065 = vmatmul.mubr.bf16.gmra.mrb[0].mxu0 %v2797
      %v3066 = vpop.f32.mrb[0].mxu0
      %v3067 = vadd.f32 %v2891, %v3066
      %v3068 = vpop.f32.mrb[0].mxu0
      %v3069 = vpop.f32.mrb[0].mxu0
      %v3070 = vadd.f32 %v2894, %v3069
      %v3071 = vpop.f32.mrb[0].mxu0
      %3072 = vmatprep.mubr.bf16.mxu0 0
      %3073 = vmatmul.mubr.bf16.gmra.mrb[0].mxu0 %v2800
      %v3074 = vpop.f32.mrb[0].mxu0
      %v3075 = vadd.f32 %v2899, %v3074
      %v3076 = vpop.f32.mrb[0].mxu0
      %v3077 = vpop.f32.mrb[0].mxu0
      %v3078 = vadd.f32 %v2902, %v3077
      %v3079 = vpop.f32.mrb[0].mxu0
      %3080 = vmatprep.mubr.bf16.mxu0 0
      %3081 = vmatmul.mubr.bf16.gmra.mrb[0].mxu0 %v2803
      %v3082 = vpop.f32.mrb[0].mxu0
      %v3083 = vadd.f32 %v2907, %v3082
      %v3084 = vpop.f32.mrb[0].mxu0
      %v3085 = vpop.f32.mrb[0].mxu0
      %v3086 = vadd.f32 %v2910, %v3085
      %v3087 = vpop.f32.mrb[0].mxu0
      %3088 = vmatprep.mubr.bf16.mxu0 0
      %3089 = vmatmul.mubr.bf16.gmra.mrb[0].mxu0 %v2806
      %v3090 = vpop.f32.mrb[0].mxu0
      %v3091 = vadd.f32 %v2915, %v3090
      %v3092 = vpop.f32.mrb[0].mxu0
      %v3093 = vpop.f32.mrb[0].mxu0
      %v3094 = vadd.f32 %v2918, %v3093
      %v3095 = vpop.f32.mrb[0].mxu0
      %3096 = vmatprep.mubr.bf16.mxu0 0
      %3097 = vmatmul.mubr.bf16.gmra.mrb[0].mxu0 %v2809
      %v3098 = vpop.f32.mrb[0].mxu0
      %v3099 = vadd.f32 %v2923, %v3098
      %v3100 = vpop.f32.mrb[0].mxu0
      %v3101 = vpop.f32.mrb[0].mxu0
      %v3102 = vadd.f32 %v2926, %v3101
      %v3103 = vpop.f32.mrb[0].mxu0
      %3104 = vmatprep.mubr.bf16.mxu0 0
      %3105 = vmatmul.mubr.bf16.gmra.mrb[0].mxu0 %v2812
      %v3106 = vpop.f32.mrb[0].mxu0
      %v3107 = vadd.f32 %v2931, %v3106
      %v3108 = vpop.f32.mrb[0].mxu0
      %v3109 = vpop.f32.mrb[0].mxu0
      %v3110 = vadd.f32 %v2934, %v3109
      %v3111 = vpop.f32.mrb[0].mxu0
      %3112 = vmatprep.mubr.bf16.mxu0 0
      %3113 = vmatmul.mubr.bf16.gmra.mrb[0].mxu0 %v2815
      %v3114 = vpop.f32.mrb[0].mxu0
      %v3115 = vadd.f32 %v2939, %v3114
      %v3116 = vpop.f32.mrb[0].mxu0
      %v3117 = vpop.f32.mrb[0].mxu0
      %v3118 = vadd.f32 %v2942, %v3117
      %v3119 = vpop.f32.mrb[0].mxu0
      %3120 = vmatprep.mubr.bf16.mxu0 0
      %3121 = vmatmul.mubr.bf16.gmra.mrb[0].mxu0 %v2818
      %v3122 = vpop.f32.mrb[0].mxu0
      %v3123 = vadd.f32 %v2947, %v3122
      %v3124 = vpop.f32.mrb[0].mxu0
      %v3125 = vpop.f32.mrb[0].mxu0
      %v3126 = vadd.f32 %v2950, %v3125
      %v3127 = vpop.f32.mrb[0].mxu0
      %3128 = vmatprep.mubr.bf16.mxu0 0
      %3129 = vmatmul.mubr.bf16.gmra.mrb[0].mxu0 %v2821
      %v3130 = vpop.f32.mrb[0].mxu0
      %v3131 = vadd.f32 %v2955, %v3130
      %v3132 = vpop.f32.mrb[0].mxu0
      %v3133 = vpop.f32.mrb[0].mxu0
      %v3134 = vadd.f32 %v2958, %v3133
      %v3135 = vpop.f32.mrb[0].mxu0
      %3136 = vmatprep.mubr.bf16.mxu0 0
      %3137 = vmatmul.mubr.bf16.gmra.mrb[0].mxu0 %v2824
      %v3138 = vpop.f32.mrb[0].mxu0
      %v3139 = vadd.f32 %v2963, %v3138
      %v3140 = vpop.f32.mrb[0].mxu0
      %v3141 = vpop.f32.mrb[0].mxu0
      %v3142 = vadd.f32 %v2966, %v3141
      %v3143 = vpop.f32.mrb[0].mxu0
      %3144 = vmatprep.mubr.bf16.mxu0 0
      %3145 = vmatmul.mubr.bf16.gmra.mrb[0].mxu0 %v2827
      %v3146 = vpop.f32.mrb[0].mxu0
      %v3147 = vadd.f32 %v2971, %v3146
      %v3148 = vpop.f32.mrb[0].mxu0
      %v3149 = vpop.f32.mrb[0].mxu0
      %v3150 = vadd.f32 %v2974, %v3149
      %v3151 = vpop.f32.mrb[0].mxu0
      %3152 = vmatprep.mubr.bf16.mxu0 0
      %3153 = vmatmul.mubr.bf16.gmra.mrb[0].mxu0 %v2830
      %v3154 = vpop.f32.mrb[0].mxu0
      %v3155 = vadd.f32 %v2979, %v3154
      %v3156 = vpop.f32.mrb[0].mxu0
      %v3157 = vpop.f32.mrb[0].mxu0
      %v3158 = vadd.f32 %v2982, %v3157
      %v3159 = vpop.f32.mrb[0].mxu0
      %3160 = vmatprep.mubr.bf16.mxu0 0
      %3161 = vmatmul.mubr.bf16.gmra.mrb[0].mxu0 %v2833
      %v3162 = vpop.f32.mrb[0].mxu0
      %v3163 = vadd.f32 %v2987, %v3162
      %v3164 = vpop.f32.mrb[0].mxu0
      %v3165 = vpop.f32.mrb[0].mxu0
      %v3166 = vadd.f32 %v2990, %v3165
      %v3167 = vpop.f32.mrb[0].mxu0
      %3168 = vmatprep.mubr.bf16.mxu0 0
      %3169 = vmatmul.mubr.bf16.gmra.mrb[0].mxu0 %v2836
      %v3170 = vpop.f32.mrb[0].mxu0
      %v3171 = vadd.f32 %v2995, %v3170
      %v3172 = vpop.f32.mrb[0].mxu0
      %v3173 = vpop.f32.mrb[0].mxu0
      %v3174 = vadd.f32 %v2998, %v3173
      %v3175 = vpop.f32.mrb[0].mxu0
      %3176 = vmatprep.mubr.bf16.mxu0 0
      %3177 = vmatmul.mubr.bf16.gmra.mrb[0].mxu0 %v2839
      %v3178 = vpop.f32.mrb[0].mxu0
      %v3179 = vadd.f32 %v3003, %v3178
      %v3180 = vpop.f32.mrb[0].mxu0
      %v3181 = vpop.f32.mrb[0].mxu0
      %v3182 = vadd.f32 %v3006, %v3181
      %v3183 = vpop.f32.mrb[0].mxu0
      %3184 = vdwg.mxu0
      %v3185 = vld [vmem:[#allocation3 + $0x10] sm:$0xff]
      %v3186 = vld [vmem:[#allocation3 + $0x18] sm:$0xff]
      %v3187 = vld [vmem:[#allocation3 + $0x20] sm:$0xff]
      %v3188 = vld [vmem:[#allocation3 + $0x28] sm:$0xff]
      %v3189 = vld [vmem:[#allocation3 + $0x30] sm:$0xff]
      %v3190 = vld [vmem:[#allocation3 + $0x38] sm:$0xff]
      %v3191 = vld [vmem:[#allocation3 + $0x40] sm:$0xff]
      %v3192 = vld [vmem:[#allocation3 + $0x48] sm:$0xff]
      %v3193 = vld [vmem:[#allocation3 + $0x50] sm:$0xff]
      %v3194 = vld [vmem:[#allocation3 + $0x58] sm:$0xff]
      %v3195 = vld [vmem:[#allocation3 + $0x60] sm:$0xff]
      %v3196 = vld [vmem:[#allocation3 + $0x68] sm:$0xff]
      %v3197 = vld [vmem:[#allocation3 + $0x70] sm:$0xff]
      %v3198 = vld [vmem:[#allocation3 + $0x78] sm:$0xff]
      %v3199 = vld [vmem:[#allocation3 + $0x80] sm:$0xff]
      %v3200 = vld [vmem:[#allocation3 + $0x88] sm:$0xff]
      %s3201 = scalar_lea.vmem %s3, 24
      %v3202 = vld [vmem:[%s3201] sm:$0xf]
      %v3203 = vld [vmem:[%s3201 + $0x4] sm:$0xf]
      %v3204 = vld [vmem:[%s3201 + $0x8] sm:$0xf]
      %v3208 = vunpack.c.l.b16 %v3202
      %v3209 = vunpack.c.l.b16 %v3203
      %v3210 = vunpack.c.l.b16 %v3204
      %v3211 = vpack.c.b16 %v3209, %v3208
      %v3212 = vpack.c.b16 %v3210, %v3210
      %v3215 = vsel %vm2357, %v3185, 0
      %v3218 = vsel %vm2357, %v3186, 0
      %v3221 = vsel %vm2357, %v3187, 0
      %v3224 = vsel %vm2357, %v3188, 0
      %v3227 = vsel %vm2357, %v3189, 0
      %v3230 = vsel %vm2357, %v3190, 0
      %v3233 = vsel %vm2357, %v3191, 0
      %v3236 = vsel %vm2357, %v3192, 0
      %v3239 = vsel %vm2357, %v3193, 0
      %v3242 = vsel %vm2357, %v3194, 0
      %v3245 = vsel %vm2357, %v3195, 0
      %v3248 = vsel %vm2357, %v3196, 0
      %v3251 = vsel %vm2357, %v3197, 0
      %v3254 = vsel %vm2357, %v3198, 0
      %v3257 = vsel %vm2357, %v3199, 0
      %v3260 = vsel %vm2357, %v3200, 0
      %v3263 = vsel %vm2844, %v3212, 0
      %3265 = vmatprep.subr.bf16.mxu0 0
      %3266 = vmatpush1.bf16.msra.mxu0 %v3211
      %3267 = vmatprep.subr.bf16.mxu0 0
      %3268 = vmatpush1.bf16.msra.mxu0 %v3263
      %3269 = vmatprep.subr.bf16.mxu0 0
      %3270 = vmatpush1.bf16.msra.mxu0 0
      %3271 = vmatprep.subr.bf16.mxu0 0
      %3272 = vmatpush1.bf16.msra.mxu0 0
      %3273 = vmatprep.subr.bf16.mxu0 0
      %3274 = vmatpush1.bf16.msra.mxu0 0
      %3275 = vmatprep.subr.bf16.mxu0 0
      %3276 = vmatpush1.bf16.msra.mxu0 0
      %3277 = vmatprep.subr.bf16.mxu0 0
      %3278 = vmatpush1.bf16.msra.mxu0 0
      %3279 = vmatprep.subr.bf16.mxu0 0
      %3280 = vmatpush1.bf16.msra.mxu0 0
      %3281 = vmatprep.subr.bf16.mxu0 0
      %3282 = vmatpush1.bf16.msra.mxu0 0
      %3283 = vmatprep.subr.bf16.mxu0 0
      %3284 = vmatpush1.bf16.msra.mxu0 0
      %3285 = vmatprep.subr.bf16.mxu0 0
      %3286 = vmatpush1.bf16.msra.mxu0 0
      %3287 = vmatprep.subr.bf16.mxu0 0
      %3288 = vmatpush1.bf16.msra.mxu0 0
      %3289 = vmatprep.subr.bf16.mxu0 0
      %3290 = vmatpush1.bf16.msra.mxu0 0
      %3291 = vmatprep.subr.bf16.mxu0 0
      %3292 = vmatpush1.bf16.msra.mxu0 0
      %3293 = vmatprep.subr.bf16.mxu0 0
      %3294 = vmatpush1.bf16.msra.mxu0 0
      %3295 = vmatprep.subr.bf16.mxu0 0
      %3296 = vmatpush1.bf16.msra.mxu0 0
      %3297 = vmatprep.mubr.bf16.mxu0 0
      %3298 = vmatmul.mubr.bf16.gmra.mrb[0].mxu0 %v3215
      %v3299 = vpop.f32.mrb[0].mxu0
      %v3300 = vadd.f32 0.0, %v3299
      %v3301 = vpop.f32.mrb[0].mxu0
      %v3302 = vpop.f32.mrb[0].mxu0
      %v3303 = vadd.f32 0.0, %v3302
      %v3304 = vpop.f32.mrb[0].mxu0
      %3305 = vmatprep.mubr.bf16.mxu0 0
      %3306 = vmatmul.mubr.bf16.gmra.mrb[0].mxu0 %v3218
      %v3307 = vpop.f32.mrb[0].mxu0
      %v3308 = vadd.f32 0.0, %v3307
      %v3309 = vpop.f32.mrb[0].mxu0
      %v3310 = vpop.f32.mrb[0].mxu0
      %v3311 = vadd.f32 0.0, %v3310
      %v3312 = vpop.f32.mrb[0].mxu0
      %3313 = vmatprep.mubr.bf16.mxu0 0
      %3314 = vmatmul.mubr.bf16.gmra.mrb[0].mxu0 %v3221
      %v3315 = vpop.f32.mrb[0].mxu0
      %v3316 = vadd.f32 0.0, %v3315
      %v3317 = vpop.f32.mrb[0].mxu0
      %v3318 = vpop.f32.mrb[0].mxu0
      %v3319 = vadd.f32 0.0, %v3318
      %v3320 = vpop.f32.mrb[0].mxu0
      %3321 = vmatprep.mubr.bf16.mxu0 0
      %3322 = vmatmul.mubr.bf16.gmra.mrb[0].mxu0 %v3224
      %v3323 = vpop.f32.mrb[0].mxu0
      %v3324 = vadd.f32 0.0, %v3323
      %v3325 = vpop.f32.mrb[0].mxu0
      %v3326 = vpop.f32.mrb[0].mxu0
      %v3327 = vadd.f32 0.0, %v3326
      %v3328 = vpop.f32.mrb[0].mxu0
      %3329 = vmatprep.mubr.bf16.mxu0 0
      %3330 = vmatmul.mubr.bf16.gmra.mrb[0].mxu0 %v3227
      %v3331 = vpop.f32.mrb[0].mxu0
      %v3332 = vadd.f32 0.0, %v3331
      %v3333 = vpop.f32.mrb[0].mxu0
      %v3334 = vpop.f32.mrb[0].mxu0
      %v3335 = vadd.f32 0.0, %v3334
      %v3336 = vpop.f32.mrb[0].mxu0
      %3337 = vmatprep.mubr.bf16.mxu0 0
      %3338 = vmatmul.mubr.bf16.gmra.mrb[0].mxu0 %v3230
      %v3339 = vpop.f32.mrb[0].mxu0
      %v3340 = vadd.f32 0.0, %v3339
      %v3341 = vpop.f32.mrb[0].mxu0
      %v3342 = vpop.f32.mrb[0].mxu0
      %v3343 = vadd.f32 0.0, %v3342
      %v3344 = vpop.f32.mrb[0].mxu0
      %3345 = vmatprep.mubr.bf16.mxu0 0
      %3346 = vmatmul.mubr.bf16.gmra.mrb[0].mxu0 %v3233
      %v3347 = vpop.f32.mrb[0].mxu0
      %v3348 = vadd.f32 0.0, %v3347
      %v3349 = vpop.f32.mrb[0].mxu0
      %v3350 = vpop.f32.mrb[0].mxu0
      %v3351 = vadd.f32 0.0, %v3350
      %v3352 = vpop.f32.mrb[0].mxu0
      %3353 = vmatprep.mubr.bf16.mxu0 0
      %3354 = vmatmul.mubr.bf16.gmra.mrb[0].mxu0 %v3236
      %v3355 = vpop.f32.mrb[0].mxu0
      %v3356 = vadd.f32 0.0, %v3355
      %v3357 = vpop.f32.mrb[0].mxu0
      %v3358 = vpop.f32.mrb[0].mxu0
      %v3359 = vadd.f32 0.0, %v3358
      %v3360 = vpop.f32.mrb[0].mxu0
      %3361 = vmatprep.mubr.bf16.mxu0 0
      %3362 = vmatmul.mubr.bf16.gmra.mrb[0].mxu0 %v3239
      %v3363 = vpop.f32.mrb[0].mxu0
      %v3364 = vadd.f32 0.0, %v3363
      %v3365 = vpop.f32.mrb[0].mxu0
      %v3366 = vpop.f32.mrb[0].mxu0
      %v3367 = vadd.f32 0.0, %v3366
      %v3368 = vpop.f32.mrb[0].mxu0
      %3369 = vmatprep.mubr.bf16.mxu0 0
      %3370 = vmatmul.mubr.bf16.gmra.mrb[0].mxu0 %v3242
      %v3371 = vpop.f32.mrb[0].mxu0
      %v3372 = vadd.f32 0.0, %v3371
      %v3373 = vpop.f32.mrb[0].mxu0
      %v3374 = vpop.f32.mrb[0].mxu0
      %v3375 = vadd.f32 0.0, %v3374
      %v3376 = vpop.f32.mrb[0].mxu0
      %3377 = vmatprep.mubr.bf16.mxu0 0
      %3378 = vmatmul.mubr.bf16.gmra.mrb[0].mxu0 %v3245
      %v3379 = vpop.f32.mrb[0].mxu0
      %v3380 = vadd.f32 0.0, %v3379
      %v3381 = vpop.f32.mrb[0].mxu0
      %v3382 = vpop.f32.mrb[0].mxu0
      %v3383 = vadd.f32 0.0, %v3382
      %v3384 = vpop.f32.mrb[0].mxu0
      %3385 = vmatprep.mubr.bf16.mxu0 0
      %3386 = vmatmul.mubr.bf16.gmra.mrb[0].mxu0 %v3248
      %v3387 = vpop.f32.mrb[0].mxu0
      %v3388 = vadd.f32 0.0, %v3387
      %v3389 = vpop.f32.mrb[0].mxu0
      %v3390 = vpop.f32.mrb[0].mxu0
      %v3391 = vadd.f32 0.0, %v3390
      %v3392 = vpop.f32.mrb[0].mxu0
      %3393 = vmatprep.mubr.bf16.mxu0 0
      %3394 = vmatmul.mubr.bf16.gmra.mrb[0].mxu0 %v3251
      %v3395 = vpop.f32.mrb[0].mxu0
      %v3396 = vadd.f32 0.0, %v3395
      %v3397 = vpop.f32.mrb[0].mxu0
      %v3398 = vpop.f32.mrb[0].mxu0
      %v3399 = vadd.f32 0.0, %v3398
      %v3400 = vpop.f32.mrb[0].mxu0
      %3401 = vmatprep.mubr.bf16.mxu0 0
      %3402 = vmatmul.mubr.bf16.gmra.mrb[0].mxu0 %v3254
      %v3403 = vpop.f32.mrb[0].mxu0
      %v3404 = vadd.f32 0.0, %v3403
      %v3405 = vpop.f32.mrb[0].mxu0
      %v3406 = vpop.f32.mrb[0].mxu0
      %v3407 = vadd.f32 0.0, %v3406
      %v3408 = vpop.f32.mrb[0].mxu0
      %3409 = vmatprep.mubr.bf16.mxu0 0
      %3410 = vmatmul.mubr.bf16.gmra.mrb[0].mxu0 %v3257
      %v3411 = vpop.f32.mrb[0].mxu0
      %v3412 = vadd.f32 0.0, %v3411
      %v3413 = vpop.f32.mrb[0].mxu0
      %v3414 = vpop.f32.mrb[0].mxu0
      %v3415 = vadd.f32 0.0, %v3414
      %v3416 = vpop.f32.mrb[0].mxu0
      %3417 = vmatprep.mubr.bf16.mxu0 0
      %3418 = vmatmul.mubr.bf16.gmra.mrb[0].mxu0 %v3260
      %v3419 = vpop.f32.mrb[0].mxu0
      %v3420 = vadd.f32 0.0, %v3419
      %v3421 = vpop.f32.mrb[0].mxu0
      %v3422 = vpop.f32.mrb[0].mxu0
      %v3423 = vadd.f32 0.0, %v3422
      %v3424 = vpop.f32.mrb[0].mxu0
      %3425 = vdwg.mxu0
      %v3426 = vadd.f32 %v3059, %v3300
      %v3427 = vadd.f32 %v3062, %v3303
      %v3428 = vadd.f32 %v3067, %v3308
      %v3429 = vadd.f32 %v3070, %v3311
      %v3430 = vadd.f32 %v3075, %v3316
      %v3431 = vadd.f32 %v3078, %v3319
      %v3432 = vadd.f32 %v3083, %v3324
      %v3433 = vadd.f32 %v3086, %v3327
      %v3434 = vadd.f32 %v3091, %v3332
      %v3435 = vadd.f32 %v3094, %v3335
      %v3436 = vadd.f32 %v3099, %v3340
      %v3437 = vadd.f32 %v3102, %v3343
      %v3438 = vadd.f32 %v3107, %v3348
      %v3439 = vadd.f32 %v3110, %v3351
      %v3440 = vadd.f32 %v3115, %v3356
      %v3441 = vadd.f32 %v3118, %v3359
      %v3442 = vadd.f32 %v3123, %v3364
      %v3443 = vadd.f32 %v3126, %v3367
      %v3444 = vadd.f32 %v3131, %v3372
      %v3445 = vadd.f32 %v3134, %v3375
      %v3446 = vadd.f32 %v3139, %v3380
      %v3447 = vadd.f32 %v3142, %v3383
      %v3448 = vadd.f32 %v3147, %v3388
      %v3449 = vadd.f32 %v3150, %v3391
      %v3450 = vadd.f32 %v3155, %v3396
      %v3451 = vadd.f32 %v3158, %v3399
      %v3452 = vadd.f32 %v3163, %v3404
      %v3453 = vadd.f32 %v3166, %v3407
      %v3454 = vadd.f32 %v3171, %v3412
      %v3455 = vadd.f32 %v3174, %v3415
      %v3456 = vadd.f32 %v3179, %v3420
      %v3457 = vadd.f32 %v3182, %v3423
      %v3458 = vld [vmem:[%s4] sm:$0x3]
      %v3460 = vsel %vm1139, %v1220, 0
      %v3463 = vsel %vm1139, %v1221, 0
      %v3466 = vsel %vm1139, %v1222, 0
      %v3469 = vsel %vm1139, %v1223, 0
      %v3472 = vsel %vm1139, %v1224, 0
      %v3475 = vsel %vm1139, %v1225, 0
      %v3478 = vsel %vm1139, %v1226, 0
      %v3481 = vsel %vm1139, %v1227, 0
      %v3484 = vsel %vm1139, %v1228, 0
      %v3487 = vsel %vm1139, %v1229, 0
      %v3490 = vsel %vm1139, %v1230, 0
      %v3493 = vsel %vm1139, %v1231, 0
      %v3496 = vsel %vm1139, %v1232, 0
      %v3499 = vsel %vm1139, %v1233, 0
      %v3502 = vsel %vm1139, %v1234, 0
      %v3505 = vsel %vm1139, %v1235, 0
      %vm3507 = vcmask 1041408
      %v3509 = vsel %vm3507, %v3458, 0
      %3511 = vmatprep.subr.bf16.mxu0 0
      %3512 = vmatpush1.bf16.msra.mxu0 %v3509
      %3513 = vmatprep.subr.bf16.mxu0 0
      %3514 = vmatpush1.bf16.msra.mxu0 0
      %3515 = vmatprep.subr.bf16.mxu0 0
      %3516 = vmatpush1.bf16.msra.mxu0 0
      %3517 = vmatprep.subr.bf16.mxu0 0
      %3518 = vmatpush1.bf16.msra.mxu0 0
      %3519 = vmatprep.subr.bf16.mxu0 0
      %3520 = vmatpush1.bf16.msra.mxu0 0
      %3521 = vmatprep.subr.bf16.mxu0 0
      %3522 = vmatpush1.bf16.msra.mxu0 0
      %3523 = vmatprep.subr.bf16.mxu0 0
      %3524 = vmatpush1.bf16.msra.mxu0 0
      %3525 = vmatprep.subr.bf16.mxu0 0
      %3526 = vmatpush1.bf16.msra.mxu0 0
      %3527 = vmatprep.subr.bf16.mxu0 0
      %3528 = vmatpush1.bf16.msra.mxu0 0
      %3529 = vmatprep.subr.bf16.mxu0 0
      %3530 = vmatpush1.bf16.msra.mxu0 0
      %3531 = vmatprep.subr.bf16.mxu0 0
      %3532 = vmatpush1.bf16.msra.mxu0 0
      %3533 = vmatprep.subr.bf16.mxu0 0
      %3534 = vmatpush1.bf16.msra.mxu0 0
      %3535 = vmatprep.subr.bf16.mxu0 0
      %3536 = vmatpush1.bf16.msra.mxu0 0
      %3537 = vmatprep.subr.bf16.mxu0 0
      %3538 = vmatpush1.bf16.msra.mxu0 0
      %3539 = vmatprep.subr.bf16.mxu0 0
      %3540 = vmatpush1.bf16.msra.mxu0 0
      %3541 = vmatprep.subr.bf16.mxu0 0
      %3542 = vmatpush1.bf16.msra.mxu0 0
      %3543 = vmatprep.mubr.bf16.mxu0 0
      %3544 = vmatmul.mubr.bf16.gmra.mrb[0].mxu0 %v3460
      %v3545 = vpop.f32.mrb[0].mxu0
      %v3546 = vadd.f32 0.0, %v3545
      %v3547 = vpop.f32.mrb[0].mxu0
      %v3548 = vpop.f32.mrb[0].mxu0
      %v3549 = vadd.f32 0.0, %v3548
      %v3550 = vpop.f32.mrb[0].mxu0
      %3551 = vmatprep.mubr.bf16.mxu0 0
      %3552 = vmatmul.mubr.bf16.gmra.mrb[0].mxu0 %v3463
      %v3553 = vpop.f32.mrb[0].mxu0
      %v3554 = vadd.f32 0.0, %v3553
      %v3555 = vpop.f32.mrb[0].mxu0
      %v3556 = vpop.f32.mrb[0].mxu0
      %v3557 = vadd.f32 0.0, %v3556
      %v3558 = vpop.f32.mrb[0].mxu0
      %3559 = vmatprep.mubr.bf16.mxu0 0
      %3560 = vmatmul.mubr.bf16.gmra.mrb[0].mxu0 %v3466
      %v3561 = vpop.f32.mrb[0].mxu0
      %v3562 = vadd.f32 0.0, %v3561
      %v3563 = vpop.f32.mrb[0].mxu0
      %v3564 = vpop.f32.mrb[0].mxu0
      %v3565 = vadd.f32 0.0, %v3564
      %v3566 = vpop.f32.mrb[0].mxu0
      %3567 = vmatprep.mubr.bf16.mxu0 0
      %3568 = vmatmul.mubr.bf16.gmra.mrb[0].mxu0 %v3469
      %v3569 = vpop.f32.mrb[0].mxu0
      %v3570 = vadd.f32 0.0, %v3569
      %v3571 = vpop.f32.mrb[0].mxu0
      %v3572 = vpop.f32.mrb[0].mxu0
      %v3573 = vadd.f32 0.0, %v3572
      %v3574 = vpop.f32.mrb[0].mxu0
      %3575 = vmatprep.mubr.bf16.mxu0 0
      %3576 = vmatmul.mubr.bf16.gmra.mrb[0].mxu0 %v3472
      %v3577 = vpop.f32.mrb[0].mxu0
      %v3578 = vadd.f32 0.0, %v3577
      %v3579 = vpop.f32.mrb[0].mxu0
      %v3580 = vpop.f32.mrb[0].mxu0
      %v3581 = vadd.f32 0.0, %v3580
      %v3582 = vpop.f32.mrb[0].mxu0
      %3583 = vmatprep.mubr.bf16.mxu0 0
      %3584 = vmatmul.mubr.bf16.gmra.mrb[0].mxu0 %v3475
      %v3585 = vpop.f32.mrb[0].mxu0
      %v3586 = vadd.f32 0.0, %v3585
      %v3587 = vpop.f32.mrb[0].mxu0
      %v3588 = vpop.f32.mrb[0].mxu0
      %v3589 = vadd.f32 0.0, %v3588
      %v3590 = vpop.f32.mrb[0].mxu0
      %3591 = vmatprep.mubr.bf16.mxu0 0
      %3592 = vmatmul.mubr.bf16.gmra.mrb[0].mxu0 %v3478
      %v3593 = vpop.f32.mrb[0].mxu0
      %v3594 = vadd.f32 0.0, %v3593
      %v3595 = vpop.f32.mrb[0].mxu0
      %v3596 = vpop.f32.mrb[0].mxu0
      %v3597 = vadd.f32 0.0, %v3596
      %v3598 = vpop.f32.mrb[0].mxu0
      %3599 = vmatprep.mubr.bf16.mxu0 0
      %3600 = vmatmul.mubr.bf16.gmra.mrb[0].mxu0 %v3481
      %v3601 = vpop.f32.mrb[0].mxu0
      %v3602 = vadd.f32 0.0, %v3601
      %v3603 = vpop.f32.mrb[0].mxu0
      %v3604 = vpop.f32.mrb[0].mxu0
      %v3605 = vadd.f32 0.0, %v3604
      %v3606 = vpop.f32.mrb[0].mxu0
      %3607 = vmatprep.mubr.bf16.mxu0 0
      %3608 = vmatmul.mubr.bf16.gmra.mrb[0].mxu0 %v3484
      %v3609 = vpop.f32.mrb[0].mxu0
      %v3610 = vadd.f32 0.0, %v3609
      %v3611 = vpop.f32.mrb[0].mxu0
      %v3612 = vpop.f32.mrb[0].mxu0
      %v3613 = vadd.f32 0.0, %v3612
      %v3614 = vpop.f32.mrb[0].mxu0
      %3615 = vmatprep.mubr.bf16.mxu0 0
      %3616 = vmatmul.mubr.bf16.gmra.mrb[0].mxu0 %v3487
      %v3617 = vpop.f32.mrb[0].mxu0
      %v3618 = vadd.f32 0.0, %v3617
      %v3619 = vpop.f32.mrb[0].mxu0
      %v3620 = vpop.f32.mrb[0].mxu0
      %v3621 = vadd.f32 0.0, %v3620
      %v3622 = vpop.f32.mrb[0].mxu0
      %3623 = vmatprep.mubr.bf16.mxu0 0
      %3624 = vmatmul.mubr.bf16.gmra.mrb[0].mxu0 %v3490
      %v3625 = vpop.f32.mrb[0].mxu0
      %v3626 = vadd.f32 0.0, %v3625
      %v3627 = vpop.f32.mrb[0].mxu0
      %v3628 = vpop.f32.mrb[0].mxu0
      %v3629 = vadd.f32 0.0, %v3628
      %v3630 = vpop.f32.mrb[0].mxu0
      %3631 = vmatprep.mubr.bf16.mxu0 0
      %3632 = vmatmul.mubr.bf16.gmra.mrb[0].mxu0 %v3493
      %v3633 = vpop.f32.mrb[0].mxu0
      %v3634 = vadd.f32 0.0, %v3633
      %v3635 = vpop.f32.mrb[0].mxu0
      %v3636 = vpop.f32.mrb[0].mxu0
      %v3637 = vadd.f32 0.0, %v3636
      %v3638 = vpop.f32.mrb[0].mxu0
      %3639 = vmatprep.mubr.bf16.mxu0 0
      %3640 = vmatmul.mubr.bf16.gmra.mrb[0].mxu0 %v3496
      %v3641 = vpop.f32.mrb[0].mxu0
      %v3642 = vadd.f32 0.0, %v3641
      %v3643 = vpop.f32.mrb[0].mxu0
      %v3644 = vpop.f32.mrb[0].mxu0
      %v3645 = vadd.f32 0.0, %v3644
      %v3646 = vpop.f32.mrb[0].mxu0
      %3647 = vmatprep.mubr.bf16.mxu0 0
      %3648 = vmatmul.mubr.bf16.gmra.mrb[0].mxu0 %v3499
      %v3649 = vpop.f32.mrb[0].mxu0
      %v3650 = vadd.f32 0.0, %v3649
      %v3651 = vpop.f32.mrb[0].mxu0
      %v3652 = vpop.f32.mrb[0].mxu0
      %v3653 = vadd.f32 0.0, %v3652
      %v3654 = vpop.f32.mrb[0].mxu0
      %3655 = vmatprep.mubr.bf16.mxu0 0
      %3656 = vmatmul.mubr.bf16.gmra.mrb[0].mxu0 %v3502
      %v3657 = vpop.f32.mrb[0].mxu0
      %v3658 = vadd.f32 0.0, %v3657
      %v3659 = vpop.f32.mrb[0].mxu0
      %v3660 = vpop.f32.mrb[0].mxu0
      %v3661 = vadd.f32 0.0, %v3660
      %v3662 = vpop.f32.mrb[0].mxu0
      %3663 = vmatprep.mubr.bf16.mxu0 0
      %3664 = vmatmul.mubr.bf16.gmra.mrb[0].mxu0 %v3505
      %v3665 = vpop.f32.mrb[0].mxu0
      %v3666 = vadd.f32 0.0, %v3665
      %v3667 = vpop.f32.mrb[0].mxu0
      %v3668 = vpop.f32.mrb[0].mxu0
      %v3669 = vadd.f32 0.0, %v3668
      %v3670 = vpop.f32.mrb[0].mxu0
      %3671 = vdwg.mxu0
      %v3672 = vadd.f32 %v3426, %v3546
      %v3673 = vadd.f32 %v3427, %v3549
      %v3674 = vadd.f32 %v3428, %v3554
      %v3675 = vadd.f32 %v3429, %v3557
      %v3676 = vadd.f32 %v3430, %v3562
      %v3677 = vadd.f32 %v3431, %v3565
      %v3678 = vadd.f32 %v3432, %v3570
      %v3679 = vadd.f32 %v3433, %v3573
      %v3680 = vadd.f32 %v3434, %v3578
      %v3681 = vadd.f32 %v3435, %v3581
      %v3682 = vadd.f32 %v3436, %v3586
      %v3683 = vadd.f32 %v3437, %v3589
      %v3684 = vadd.f32 %v3438, %v3594
      %v3685 = vadd.f32 %v3439, %v3597
      %v3686 = vadd.f32 %v3440, %v3602
      %v3687 = vadd.f32 %v3441, %v3605
      %v3688 = vadd.f32 %v3442, %v3610
      %v3689 = vadd.f32 %v3443, %v3613
      %v3690 = vadd.f32 %v3444, %v3618
      %v3691 = vadd.f32 %v3445, %v3621
      %v3692 = vadd.f32 %v3446, %v3626
      %v3693 = vadd.f32 %v3447, %v3629
      %v3694 = vadd.f32 %v3448, %v3634
      %v3695 = vadd.f32 %v3449, %v3637
      %v3696 = vadd.f32 %v3450, %v3642
      %v3697 = vadd.f32 %v3451, %v3645
      %v3698 = vadd.f32 %v3452, %v3650
      %v3699 = vadd.f32 %v3453, %v3653
      %v3700 = vadd.f32 %v3454, %v3658
      %v3701 = vadd.f32 %v3455, %v3661
      %v3702 = vadd.f32 %v3456, %v3666
      %v3703 = vadd.f32 %v3457, %v3669
      %v3704 = vld [vmem:[%s5] sm:$0x1]
      %v3706 = vlaneseq
      %v3707 = vshrl.u32 %v3706, 7
      %v3708 = vsub.s32 0, %v3707
      %v3709 = vrot.slane %v3704, %v3708
      %v3711 = vadd.f32 %v3672, %v3709
      %v3712 = vadd.f32 %v3673, %v3709
      %v3713 = vadd.f32 %v3674, %v3709
      %v3714 = vadd.f32 %v3675, %v3709
      %v3715 = vadd.f32 %v3676, %v3709
      %v3716 = vadd.f32 %v3677, %v3709
      %v3717 = vadd.f32 %v3678, %v3709
      %v3718 = vadd.f32 %v3679, %v3709
      %v3719 = vadd.f32 %v3680, %v3709
      %v3720 = vadd.f32 %v3681, %v3709
      %v3721 = vadd.f32 %v3682, %v3709
      %v3722 = vadd.f32 %v3683, %v3709
      %v3723 = vadd.f32 %v3684, %v3709
      %v3724 = vadd.f32 %v3685, %v3709
      %v3725 = vadd.f32 %v3686, %v3709
      %v3726 = vadd.f32 %v3687, %v3709
      %v3727 = vadd.f32 %v3688, %v3709
      %v3728 = vadd.f32 %v3689, %v3709
      %v3729 = vadd.f32 %v3690, %v3709
      %v3730 = vadd.f32 %v3691, %v3709
      %v3731 = vadd.f32 %v3692, %v3709
      %v3732 = vadd.f32 %v3693, %v3709
      %v3733 = vadd.f32 %v3694, %v3709
      %v3734 = vadd.f32 %v3695, %v3709
      %v3735 = vadd.f32 %v3696, %v3709
      %v3736 = vadd.f32 %v3697, %v3709
      %v3737 = vadd.f32 %v3698, %v3709
      %v3738 = vadd.f32 %v3699, %v3709
      %v3739 = vadd.f32 %v3700, %v3709
      %v3740 = vadd.f32 %v3701, %v3709
      %v3741 = vadd.f32 %v3702, %v3709
      %v3742 = vadd.f32 %v3703, %v3709
      %v3743 = vmax.f32 %v3711, 0.0
      %v3744 = vmax.f32 %v3712, 0.0
      %v3745 = vmax.f32 %v3713, 0.0
      %v3746 = vmax.f32 %v3714, 0.0
      %v3747 = vmax.f32 %v3715, 0.0
      %v3748 = vmax.f32 %v3716, 0.0
      %v3749 = vmax.f32 %v3717, 0.0
      %v3750 = vmax.f32 %v3718, 0.0
      %v3751 = vmax.f32 %v3719, 0.0
      %v3752 = vmax.f32 %v3720, 0.0
      %v3753 = vmax.f32 %v3721, 0.0
      %v3754 = vmax.f32 %v3722, 0.0
      %v3755 = vmax.f32 %v3723, 0.0
      %v3756 = vmax.f32 %v3724, 0.0
      %v3757 = vmax.f32 %v3725, 0.0
      %v3758 = vmax.f32 %v3726, 0.0
      %v3759 = vmax.f32 %v3727, 0.0
      %v3760 = vmax.f32 %v3728, 0.0
      %v3761 = vmax.f32 %v3729, 0.0
      %v3762 = vmax.f32 %v3730, 0.0
      %v3763 = vmax.f32 %v3731, 0.0
      %v3764 = vmax.f32 %v3732, 0.0
      %v3765 = vmax.f32 %v3733, 0.0
      %v3766 = vmax.f32 %v3734, 0.0
      %v3767 = vmax.f32 %v3735, 0.0
      %v3768 = vmax.f32 %v3736, 0.0
      %v3769 = vmax.f32 %v3737, 0.0
      %v3770 = vmax.f32 %v3738, 0.0
      %v3771 = vmax.f32 %v3739, 0.0
      %v3772 = vmax.f32 %v3740, 0.0
      %v3773 = vmax.f32 %v3741, 0.0
      %v3774 = vmax.f32 %v3742, 0.0
      %v3775 = vpack.c.bf16 %v3744, %v3743
      %v3776 = vpack.c.bf16 %v3746, %v3745
      %v3777 = vpack.c.bf16 %v3748, %v3747
      %v3778 = vpack.c.bf16 %v3750, %v3749
      %v3779 = vpack.c.bf16 %v3752, %v3751
      %v3780 = vpack.c.bf16 %v3754, %v3753
      %v3781 = vpack.c.bf16 %v3756, %v3755
      %v3782 = vpack.c.bf16 %v3758, %v3757
      %v3783 = vpack.c.bf16 %v3760, %v3759
      %v3784 = vpack.c.bf16 %v3762, %v3761
      %v3785 = vpack.c.bf16 %v3764, %v3763
      %v3786 = vpack.c.bf16 %v3766, %v3765
      %v3787 = vpack.c.bf16 %v3768, %v3767
      %v3788 = vpack.c.bf16 %v3770, %v3769
      %v3789 = vpack.c.bf16 %v3772, %v3771
      %v3790 = vpack.c.bf16 %v3774, %v3773
      %v3807 = vunpack.c.l.b16 %v3775
      %v3808 = vunpack.c.h.b16 %v3775
      %v3809 = vunpack.c.l.b16 %v3776
      %v3810 = vunpack.c.h.b16 %v3776
      %v3811 = vunpack.c.l.b16 %v3777
      %v3812 = vunpack.c.h.b16 %v3777
      %v3813 = vunpack.c.l.b16 %v3778
      %v3814 = vunpack.c.h.b16 %v3778
      %v3815 = vunpack.c.l.b16 %v3779
      %v3816 = vunpack.c.h.b16 %v3779
      %v3817 = vunpack.c.l.b16 %v3780
      %v3818 = vunpack.c.h.b16 %v3780
      %v3819 = vunpack.c.l.b16 %v3781
      %v3820 = vunpack.c.h.b16 %v3781
      %v3821 = vunpack.c.l.b16 %v3782
      %v3822 = vunpack.c.h.b16 %v3782
      %v3823 = vunpack.c.l.b16 %v3783
      %v3824 = vunpack.c.h.b16 %v3783
      %v3825 = vunpack.c.l.b16 %v3784
      %v3826 = vunpack.c.h.b16 %v3784
      %v3827 = vunpack.c.l.b16 %v3785
      %v3828 = vunpack.c.h.b16 %v3785
      %v3829 = vunpack.c.l.b16 %v3786
      %v3830 = vunpack.c.h.b16 %v3786
      %v3831 = vunpack.c.l.b16 %v3787
      %v3832 = vunpack.c.h.b16 %v3787
      %v3833 = vunpack.c.l.b16 %v3788
      %v3834 = vunpack.c.h.b16 %v3788
      %v3835 = vunpack.c.l.b16 %v3789
      %v3836 = vunpack.c.h.b16 %v3789
      %v3837 = vunpack.c.l.b16 %v3790
      %v3838 = vunpack.c.h.b16 %v3790
      %v3839 = vpack.c.b16 %v3807, %v3807
      %v3840 = vpack.c.b16 %v3808, %v3808
      %v3841 = vpack.c.b16 %v3809, %v3809
      %v3842 = vpack.c.b16 %v3810, %v3810
      %v3843 = vpack.c.b16 %v3811, %v3811
      %v3844 = vpack.c.b16 %v3812, %v3812
      %v3845 = vpack.c.b16 %v3813, %v3813
      %v3846 = vpack.c.b16 %v3814, %v3814
      %v3847 = vpack.c.b16 %v3815, %v3815
      %v3848 = vpack.c.b16 %v3816, %v3816
      %v3849 = vpack.c.b16 %v3817, %v3817
      %v3850 = vpack.c.b16 %v3818, %v3818
      %v3851 = vpack.c.b16 %v3819, %v3819
      %v3852 = vpack.c.b16 %v3820, %v3820
      %v3853 = vpack.c.b16 %v3821, %v3821
      %v3854 = vpack.c.b16 %v3822, %v3822
      %v3855 = vpack.c.b16 %v3823, %v3823
      %v3856 = vpack.c.b16 %v3824, %v3824
      %v3857 = vpack.c.b16 %v3825, %v3825
      %v3858 = vpack.c.b16 %v3826, %v3826
      %v3859 = vpack.c.b16 %v3827, %v3827
      %v3860 = vpack.c.b16 %v3828, %v3828
      %v3861 = vpack.c.b16 %v3829, %v3829
      %v3862 = vpack.c.b16 %v3830, %v3830
      %v3863 = vpack.c.b16 %v3831, %v3831
      %v3864 = vpack.c.b16 %v3832, %v3832
      %v3865 = vpack.c.b16 %v3833, %v3833
      %v3866 = vpack.c.b16 %v3834, %v3834
      %v3867 = vpack.c.b16 %v3835, %v3835
      %v3868 = vpack.c.b16 %v3836, %v3836
      %v3869 = vpack.c.b16 %v3837, %v3837
      %v3870 = vpack.c.b16 %v3838, %v3838
      %vm3903 = vcmask 60416
      %3904 = vst.msk [vmem:[%s251] sm:$0xf] %vm3903, %v3839
      %3905 = vst.msk [vmem:[%s251 + $0x4] sm:$0xf] %vm3903, %v3840
      %3906 = vst.msk [vmem:[%s251 + $0x8] sm:$0xf] %vm3903, %v3841
      %3907 = vst.msk [vmem:[%s251 + $0xc] sm:$0xf] %vm3903, %v3842
      %3908 = vst.msk [vmem:[%s251 + $0x10] sm:$0xf] %vm3903, %v3843
      %3909 = vst.msk [vmem:[%s251 + $0x14] sm:$0xf] %vm3903, %v3844
      %3910 = vst.msk [vmem:[%s251 + $0x18] sm:$0xf] %vm3903, %v3845
      %3911 = vst.msk [vmem:[%s251 + $0x1c] sm:$0xf] %vm3903, %v3846
      %3912 = vst.msk [vmem:[%s251 + $0x20] sm:$0xf] %vm3903, %v3847
      %3913 = vst.msk [vmem:[%s251 + $0x24] sm:$0xf] %vm3903, %v3848
      %3914 = vst.msk [vmem:[%s251 + $0x28] sm:$0xf] %vm3903, %v3849
      %3915 = vst.msk [vmem:[%s251 + $0x2c] sm:$0xf] %vm3903, %v3850
      %3916 = vst.msk [vmem:[%s251 + $0x30] sm:$0xf] %vm3903, %v3851
      %3917 = vst.msk [vmem:[%s251 + $0x34] sm:$0xf] %vm3903, %v3852
      %3918 = vst.msk [vmem:[%s251 + $0x38] sm:$0xf] %vm3903, %v3853
      %3919 = vst.msk [vmem:[%s251 + $0x3c] sm:$0xf] %vm3903, %v3854
      %3920 = vst.msk [vmem:[%s251 + $0x40] sm:$0xf] %vm3903, %v3855
      %3921 = vst.msk [vmem:[%s251 + $0x44] sm:$0xf] %vm3903, %v3856
      %3922 = vst.msk [vmem:[%s251 + $0x48] sm:$0xf] %vm3903, %v3857
      %3923 = vst.msk [vmem:[%s251 + $0x4c] sm:$0xf] %vm3903, %v3858
      %3924 = vst.msk [vmem:[%s251 + $0x50] sm:$0xf] %vm3903, %v3859
      %3925 = vst.msk [vmem:[%s251 + $0x54] sm:$0xf] %vm3903, %v3860
      %3926 = vst.msk [vmem:[%s251 + $0x58] sm:$0xf] %vm3903, %v3861
      %3927 = vst.msk [vmem:[%s251 + $0x5c] sm:$0xf] %vm3903, %v3862
      %3928 = vst.msk [vmem:[%s251 + $0x60] sm:$0xf] %vm3903, %v3863
      %3929 = vst.msk [vmem:[%s251 + $0x64] sm:$0xf] %vm3903, %v3864
      %3930 = vst.msk [vmem:[%s251 + $0x68] sm:$0xf] %vm3903, %v3865
      %3931 = vst.msk [vmem:[%s251 + $0x6c] sm:$0xf] %vm3903, %v3866
      %3932 = vst.msk [vmem:[%s251 + $0x70] sm:$0xf] %vm3903, %v3867
      %3933 = vst.msk [vmem:[%s251 + $0x74] sm:$0xf] %vm3903, %v3868
      %3934 = vst.msk [vmem:[%s251 + $0x78] sm:$0xf] %vm3903, %v3869
      %3935 = vst.msk [vmem:[%s251 + $0x7c] sm:$0xf] %vm3903, %v3870
      %p3936 = scmp.lt.s32.totalorder %s17, 1
      %s3937 = scalar_select %p3936, %s17, 1
      %s3938 = smul.addr %s3937, 32
      %s3939 = smul.addr %s3938, 4
      %s3940 = scalar_lea.vmem %s6, %s3939
      // Predicated region
      $region45: #{basic_block_forward.1} parent=43 // pred_check
        %p3941 = pneg %p166
      $region46: #{basic_block_forward.1} parent=43 // pred_check_branch
        %3943 = sbr.rel (%p3941) target = $region48
      $region47: #{basic_block_forward.1} parent=43 // pred_region
        _
      $region48: #{basic_block_forward.1} parent=43 // pred_fallthru
        _
    $region44: #{basic_block_forward.1} parent=5 // pred_fallthru
      _
    %p3944 = scmp.le.s32.totalorder 2, %s12
    // Predicated region
    $region49: #{basic_block_forward.1} parent=5 // pred_check
      %p3945 = pneg %p3944
    $region50: #{basic_block_forward.1} parent=5 // pred_check_branch
      %3947 = sbr.rel (%p3945) target = $region52
    $region51: #{basic_block_forward.1} parent=5 // pred_region
      %s3948 = ssub.s32 %s12, 2
      // Predicated region
      $region53: #{basic_block_forward.1} parent=51 // pred_check
        %p3949 = pneg %p172
      $region54: #{basic_block_forward.1} parent=51 // pred_check_branch
        %3951 = sbr.rel (%p3949) target = $region56
      $region55: #{basic_block_forward.1} parent=51 // pred_region
        %p3952 = scmp.lt.s32.totalorder %s18, 1
        %s3953 = scalar_select %p3952, %s18, 1
        %s3954 = smul.addr %s3953, 32
        %s3955 = smul.addr %s3954, 4
        %s3956 = scalar_lea.vmem %s6, %s3955
      $region56: #{basic_block_forward.1} parent=51 // pred_fallthru
        _
    $region52: #{basic_block_forward.1} parent=5 // pred_fallthru
      _
  $region6: #{basic_block_forward.1} parent=0 // loop_footer
    %s16 = sadd.s32 1, %s12
  $region7: #{basic_block_forward.1} parent=0 // loop_footer_branch
    %11 = sbr.rel target = $region3
  $region8: #{basic_block_forward.1} parent=0 // loop_exit
    _

</llo_original>
